<compile_context>
chip_gen: v7x
topology: tpu7x:2x2x1
jax: 0.10.0
libtpu: 0.0.40
codegen_flags: <defaults>
</compile_context>

<pallas_src>
import functools
import math

import jax
import jax.numpy as jnp
import numpy as np
from jax.experimental import pallas as pl
from jax.experimental.pallas import tpu as pltpu


# ----------------------------------------------------------------------------
# Tile choosers (no padding: tiles must exactly divide the array, or be full)
# ----------------------------------------------------------------------------
def _choose_row_tile(m):
    """Largest multiple-of-8 row tile <= 512 that exactly divides m while keeping
    >= 2 grid steps when possible (so both v7x TensorCores get work).  Falls
    back to one full-M block (allowed: block dim == full array dim)."""
    best = None
    limit = min(512, m // 2)
    for d in range(8, limit + 1, 8):
        if m % d == 0:
            best = d
    return best if best is not None else m


def _choose_batch_tile(n, per_batch_bytes):
    """Attention batch tile: as many batches per grid step as fit ~2 MiB,
    keeping >= 2 grid steps when possible."""
    budget = max(1, (2 << 20) // max(int(per_batch_bytes), 1))
    cap = max(1, min(budget, n // 2 if n > 1 else 1))
    best = 1
    for d in range(1, cap + 1):
        if n % d == 0:
            best = d
    return best


# ----------------------------------------------------------------------------
# Pallas kernels
# ----------------------------------------------------------------------------
def _matmul_affine_kernel(x_ref, w_ref, s_ref, t_ref, o_ref, *, relu):
    # bf16 x bf16 on the MXU, f32 accumulate; folded BN/bias affine (+ReLU) in f32.
    acc = jnp.dot(x_ref[...], w_ref[...], preferred_element_type=jnp.float32)
    acc = acc * s_ref[...] + t_ref[...]
    if relu:
        acc = jnp.maximum(acc, 0.0)
    o_ref[...] = acc.astype(o_ref.dtype)


def _sdpa_f32(q, k, v, sm_scale):
    # softmax(q k^T * sm_scale) v — matmuls in bf16 on the MXU, statistics in f32.
    s = jnp.einsum('bld,bmd->blm',
                   q.astype(jnp.bfloat16), k.astype(jnp.bfloat16),
                   preferred_element_type=jnp.float32) * sm_scale
    m = jnp.max(s, axis=-1, keepdims=True)
    p = jnp.exp(s - m)
    denom = jnp.sum(p, axis=-1, keepdims=True)
    attn = p * pl.reciprocal(denom, approx=True)      # EUP reciprocal, frees VALU
    return jnp.einsum('blm,bmd->bld',
                      attn.astype(jnp.bfloat16), v.astype(jnp.bfloat16),
                      preferred_element_type=jnp.float32)


def _qkv_attention_kernel(x_ref, w_ref, b_ref, o_ref, *, nq, sm_scale):
    # Fused Q/K/V projection + scaled-dot-product attention.
    tb = x_ref.shape[0]
    x = x_ref[...]                                         # (tb, L, K) bf16
    w = jnp.broadcast_to(w_ref[...], (tb,) + tuple(w_ref.shape))   # (tb, K, Ntot)
    qkv = jnp.einsum('blk,bkn->bln', x, w,
                     preferred_element_type=jnp.float32)   # (tb, L, Ntot) f32
    qkv = qkv + b_ref[...]                                 # conv biases
    q = qkv[:, :, :nq]
    k = qkv[:, :, nq:2 * nq]
    v = qkv[:, :, 2 * nq:]
    o_ref[...] = _sdpa_f32(q, k, v, sm_scale).astype(o_ref.dtype)


def _attention_kernel(q_ref, k_ref, v_ref, o_ref, *, sm_scale):
    o_ref[...] = _sdpa_f32(q_ref[...], k_ref[...], v_ref[...], sm_scale).astype(o_ref.dtype)


# ----------------------------------------------------------------------------
# pallas_call wrappers
# ----------------------------------------------------------------------------
def fused_matmul(x2d, w, scale, shift, *, relu, out_dtype):
    """(M, K) @ (K, N) + folded BN/bias affine (+ ReLU).  No padding; row-tiled."""
    M, K = x2d.shape
    N = w.shape[1]
    tm = _choose_row_tile(M)
    return pl.pallas_call(
        functools.partial(_matmul_affine_kernel, relu=relu),
        out_shape=jax.ShapeDtypeStruct((M, N), out_dtype),
        grid=(M // tm,),
        in_specs=[
            pl.BlockSpec((tm, K), lambda i: (i, 0)),
            pl.BlockSpec((K, N), lambda i: (0, 0)),   # resident weight (fetched once)
            pl.BlockSpec((1, N), lambda i: (0, 0)),
            pl.BlockSpec((1, N), lambda i: (0, 0)),
        ],
        out_specs=pl.BlockSpec((tm, N), lambda i: (i, 0)),
        compiler_params=pltpu.CompilerParams(dimension_semantics=("parallel",)),
    )(x2d.astype(jnp.bfloat16), w, scale, shift)


def fused_qkv_attention(xcol, w_qkv, b_qkv, *, nq, cv):
    """Fused Q/K/V projection + attention.  xcol: (B*W, L, K) in column order."""
    BW, L, K = xcol.shape
    ntot = w_qkv.shape[1]
    tb = _choose_batch_tile(BW, L * (2 * K + 4 * ntot + 2 * cv))
    kern = functools.partial(_qkv_attention_kernel, nq=nq, sm_scale=1.0 / math.sqrt(nq))
    return pl.pallas_call(
        kern,
        out_shape=jax.ShapeDtypeStruct((BW, L, cv), jnp.bfloat16),
        grid=(BW // tb,),
        in_specs=[
            pl.BlockSpec((tb, L, K), lambda i: (i, 0, 0)),
            pl.BlockSpec((K, ntot), lambda i: (0, 0)),
            pl.BlockSpec((1, ntot), lambda i: (0, 0)),
        ],
        out_specs=pl.BlockSpec((tb, L, cv), lambda i: (i, 0, 0)),
        compiler_params=pltpu.CompilerParams(dimension_semantics=("parallel",)),
    )(xcol.astype(jnp.bfloat16), w_qkv, b_qkv)


def batched_attention(q, k, v):
    """softmax(Q K^T / sqrt(dq)) V batched over the leading dim (several per step)."""
    BW, L, dq = q.shape
    cv = v.shape[-1]
    tb = _choose_batch_tile(BW, L * 4 * (2 * dq + 2 * cv))
    kern = functools.partial(_attention_kernel, sm_scale=1.0 / math.sqrt(dq))
    return pl.pallas_call(
        kern,
        out_shape=jax.ShapeDtypeStruct((BW, L, cv), jnp.bfloat16),
        grid=(BW // tb,),
        in_specs=[
            pl.BlockSpec((tb, L, dq), lambda i: (i, 0, 0)),
            pl.BlockSpec((tb, L, dq), lambda i: (i, 0, 0)),
            pl.BlockSpec((tb, L, cv), lambda i: (i, 0, 0)),
        ],
        out_specs=pl.BlockSpec((tb, L, cv), lambda i: (i, 0, 0)),
        compiler_params=pltpu.CompilerParams(dimension_semantics=("parallel",)),
    )(q.astype(jnp.bfloat16), k.astype(jnp.bfloat16), v.astype(jnp.bfloat16))


# ----------------------------------------------------------------------------
# Layer glue (convs-as-matmuls, kernel_size == stride), NHWC activations
# ----------------------------------------------------------------------------
def _conv_block(x, lyr, out_dtype=jnp.bfloat16):
    """Conv2d(k=s=r) + folded BN/bias affine (+ ReLU)."""
    B, H, W, C = x.shape
    r = lyr['r']
    if r == 1:
        Ho, Wo = H, W
        x2d = x.reshape(B * H * W, C)
    else:
        Ho, Wo = H // r, W // r
        x2d = (x.reshape(B, Ho, r, Wo, r, C)
                 .transpose(0, 1, 3, 2, 4, 5)
                 .reshape(B * Ho * Wo, r * r * C))
    out = fused_matmul(x2d, lyr['w'], lyr['scale'], lyr['shift'],
                       relu=lyr['relu'], out_dtype=out_dtype)
    return out.reshape(B, Ho, Wo, lyr['co'])


def _convT_block(x, lyr, out_dtype=jnp.bfloat16):
    """ConvTranspose2d(k=s=r) + folded BN affine (+ ReLU)."""
    B, H, W, C = x.shape
    r = lyr['r']
    co = lyr['co']
    out = fused_matmul(x.reshape(B * H * W, C), lyr['w'], lyr['scale'], lyr['shift'],
                       relu=lyr['relu'], out_dtype=out_dtype)
    if r == 1:
        return out.reshape(B, H, W, co)
    return (out.reshape(B, H, W, co, r, r)
               .transpose(0, 1, 4, 2, 5, 3)
               .reshape(B, H * r, W * r, co))


def _cra_block(x, ap):
    """CrossResolutionAttention on NHWC input (torch permute(0,3,2,1) layout)."""
    B, H, W, C = x.shape
    r2, nq, cv = ap['r2'], ap['nq'], ap['cv']
    if r2 >= 1:
        rr = int(r2)
        if rr == 1:
            Hq, Wq = H, W
            xcol = x.transpose(0, 2, 1, 3).reshape(B * Wq, Hq, C)
        else:
            Hq, Wq = H // rr, W // rr
            xcol = (x.reshape(B, Hq, rr, Wq, rr, C)
                      .transpose(0, 3, 1, 2, 4, 5)
                      .reshape(B * Wq, Hq, rr * rr * C))
        ocol = fused_qkv_attention(xcol, ap['w_qkv'], ap['b_qkv'], nq=nq, cv=cv)
        return ocol.reshape(B, Wq, Hq, cv).transpose(0, 2, 1, 3)

    # resize < 1: ConvTranspose q/k/v — one fused QKV matmul, then batched attention.
    rr = int(round(1.0 / r2))
    qkv = fused_matmul(x.reshape(B * H * W, C), ap['w_qkv'], ap['scale_qkv'],
                       ap['shift_qkv'], relu=False, out_dtype=jnp.bfloat16)
    nq_cols = nq * rr * rr

    def to_col(cols, co):
        return (cols.reshape(B, H, W, co, rr, rr)
                    .transpose(0, 2, 5, 1, 4, 3)          # (B, W, rw, H, rh, co)
                    .reshape(B * W * rr, H * rr, co))

    q = to_col(qkv[:, :nq_cols], nq)
    k = to_col(qkv[:, nq_cols:2 * nq_cols], nq)
    v = to_col(qkv[:, 2 * nq_cols:], cv)
    ocol = batched_attention(q, k, v)
    return ocol.reshape(B, W * rr, H * rr, cv).transpose(0, 2, 1, 3)


def attention_unet_forward(params, x_nchw):
    """AttentionUNet.forward: inc -> down* -> attn -> up* -> outc (NCHW in/out)."""
    x = jnp.transpose(x_nchw, (0, 2, 3, 1)).astype(jnp.bfloat16)   # NCHW -> NHWC
    x = _conv_block(x, params['inc'])
    for lyr in params['down']:
        x = _conv_block(x, lyr)
    x = _cra_block(x, params['attn'])
    for lyr in params['up']:
        x = _convT_block(x, lyr)
    x = _conv_block(x, params['outc'], out_dtype=jnp.float32)
    return jnp.transpose(x, (0, 3, 1, 2))


# ----------------------------------------------------------------------------
# Deterministic parameter construction (shapes follow the torch module)
# ----------------------------------------------------------------------------
def _conv_weight_matrix(w, r):
    # torch Conv2d weight (Co, Ci, r, r) with kernel_size == stride == r.
    co, ci = w.shape[0], w.shape[1]
    if r == 1:
        return w.reshape(co, ci).T
    return w.transpose(2, 3, 1, 0).reshape(r * r * ci, co)


def _fold_bn(key, c, eps=1e-5):
    k1, k2, k3, k4 = jax.random.split(key, 4)
    gamma = 1.0 + 0.1 * jax.random.normal(k1, (c,), jnp.float32)
    beta = 0.1 * jax.random.normal(k2, (c,), jnp.float32)
    mean = 0.1 * jax.random.normal(k3, (c,), jnp.float32)
    var = 1.0 + 0.1 * jnp.abs(jax.random.normal(k4, (c,), jnp.float32))
    scale = gamma / jnp.sqrt(var + eps)
    shift = beta - mean * scale
    return scale, shift


def _make_conv_layer(key, ci, co, r, *, bias, bn, relu):
    kw, kb, kn = jax.random.split(key, 3)
    w = jax.random.normal(kw, (co, ci, r, r), jnp.float32) / np.sqrt(ci * r * r)
    b = 0.05 * jax.random.normal(kb, (co,), jnp.float32) if bias else jnp.zeros((co,), jnp.float32)
    if bn:
        scale, shift = _fold_bn(kn, co)
    else:
        scale = jnp.ones((co,), jnp.float32)
        shift = jnp.zeros((co,), jnp.float32)
    shift = b * scale + shift                     # fold conv bias into the affine shift
    return {'w': _conv_weight_matrix(w, r).astype(jnp.bfloat16),
            'scale': scale.reshape(1, co), 'shift': shift.reshape(1, co),
            'r': int(r), 'relu': bool(relu), 'co': int(co)}


def _make_convT_layer(key, ci, co, r, *, bias, bn, relu):
    kw, kb, kn = jax.random.split(key, 3)
    w = jax.random.normal(kw, (ci, co, r, r), jnp.float32) / np.sqrt(ci)
    b = 0.05 * jax.random.normal(kb, (co,), jnp.float32) if bias else jnp.zeros((co,), jnp.float32)
    if bn:
        scale, shift = _fold_bn(kn, co)
    else:
        scale = jnp.ones((co,), jnp.float32)
        shift = jnp.zeros((co,), jnp.float32)
    shift = b * scale + shift
    ncols = co * r * r
    return {'w': w.reshape(ci, ncols).astype(jnp.bfloat16),
            'scale': jnp.repeat(scale, r * r).reshape(1, ncols),
            'shift': jnp.repeat(shift, r * r).reshape(1, ncols),
            'r': int(r), 'relu': bool(relu), 'co': int(co)}


def _make_attention_params(key, c, cv, r2, nq=10):
    kq, kk, kv, kbq, kbk, kbv = jax.random.split(key, 6)
    bq = 0.05 * jax.random.normal(kbq, (nq,), jnp.float32)
    bk = 0.05 * jax.random.normal(kbk, (nq,), jnp.float32)
    bv = 0.05 * jax.random.normal(kbv, (cv,), jnp.float32)
    if r2 >= 1:
        rr = int(r2)
        sd = np.sqrt(c * rr * rr)
        wq = jax.random.normal(kq, (nq, c, rr, rr), jnp.float32) / sd
        wk = jax.random.normal(kk, (nq, c, rr, rr), jnp.float32) / sd
        wv = jax.random.normal(kv, (cv, c, rr, rr), jnp.float32) / sd
        w_qkv = jnp.concatenate([_conv_weight_matrix(wq, rr),
                                 _conv_weight_matrix(wk, rr),
                                 _conv_weight_matrix(wv, rr)], axis=1).astype(jnp.bfloat16)
        b_qkv = jnp.concatenate([bq, bk, bv]).reshape(1, 2 * nq + cv)
        return {'r2': float(r2), 'nq': int(nq), 'cv': int(cv),
                'w_qkv': w_qkv, 'b_qkv': b_qkv}
    rr = int(round(1.0 / r2))
    wq = jax.random.normal(kq, (c, nq, rr, rr), jnp.float32) / np.sqrt(c)
    wk = jax.random.normal(kk, (c, nq, rr, rr), jnp.float32) / np.sqrt(c)
    wv = jax.random.normal(kv, (c, cv, rr, rr), jnp.float32) / np.sqrt(c)
    w_qkv = jnp.concatenate([wq.reshape(c, nq * rr * rr),
                             wk.reshape(c, nq * rr * rr),
                             wv.reshape(c, cv * rr * rr)], axis=1).astype(jnp.bfloat16)
    ntot = (2 * nq + cv) * rr * rr
    shift_qkv = jnp.concatenate([jnp.repeat(bq, rr * rr),
                                 jnp.repeat(bk, rr * rr),
                                 jnp.repeat(bv, rr * rr)]).reshape(1, ntot)
    return {'r2': float(r2), 'nq': int(nq), 'cv': int(cv),
            'w_qkv': w_qkv,
            'scale_qkv': jnp.ones((1, ntot), jnp.float32),
            'shift_qkv': shift_qkv}


def init_attention_unet_params(key, in_channels, out_channels, h_channels, resizes,
                               qk_channels=10):
    n = len(h_channels)
    keys = iter(jax.random.split(key, 2 * n + 2))
    p = {}
    p['inc'] = _make_conv_layer(next(keys), in_channels, h_channels[0], 1,
                                bias=True, bn=False, relu=False)
    p['down'] = [_make_conv_layer(next(keys), h_channels[i - 1], h_channels[i],
                                  int(resizes[i - 1]), bias=False, bn=True, relu=True)
                 for i in range(1, n)]
    p['attn'] = _make_attention_params(next(keys), h_channels[-1], h_channels[-1],
                                       float(resizes[-1]), nq=qk_channels)
    p['up'] = [_make_convT_layer(next(keys), h_channels[n - i], h_channels[n - i - 1],
                                 int(resizes[n - i - 1]), bias=False, bn=True, relu=True)
               for i in range(1, n)]
    p['outc'] = _make_conv_layer(next(keys), h_channels[0], out_channels, 1,
                                 bias=True, bn=False, relu=False)
    return p


# ----------------------------------------------------------------------------
# Demo / smoke test
# ----------------------------------------------------------------------------
if __name__ == "__main__":
    B, Cin, H, W = 2, 4, 16, 16
    Cout = 4
    h_channels = [32, 32, 32]

    root = jax.random.PRNGKey(0)
    kx, k1, k2 = jax.random.split(root, 3)
    x = jax.random.normal(kx, (B, Cin, H, W), jnp.float32)

    # Config 1: 16 -> 8 -> 4 bottleneck, attention resize=1
    # (exercises r>1 down/up convs and the fused QKV+attention kernel).
    params1 = init_attention_unet_params(k1, Cin, Cout, h_channels, resizes=[2, 2, 1])

    # Config 2: resize-1 down/up convs, attention resize=1/2 (ConvTranspose q/k/v
    # -> fused QKV matmul + batched attention kernel); inflates the output 2x.
    params2 = init_attention_unet_params(k2, Cin, Cout, h_channels, resizes=[1, 1, 0.5])

    fwd1 = jax.jit(lambda inp: attention_unet_forward(params1, inp))
    fwd2 = jax.jit(lambda inp: attention_unet_forward(params2, inp))

    out1 = fwd1(x)
    out2 = fwd2(x)
    jax.block_until_ready((out1, out2))

    assert out1.shape == (B, Cout, H, W), out1.shape
    assert out2.shape == (B, Cout, 2 * H, 2 * W), out2.shape
    assert bool(jnp.all(jnp.isfinite(out1))) and bool(jnp.all(jnp.isfinite(out2)))
    print("KERNEL_OK")
</pallas_src>

<mosaic_0001>
module attributes {stable_mosaic.version = 11 : i64} {
  func.func @_matmul_affine_kernel(%arg0: i32, %arg1: memref<256x4xbf16, #tpu.memory_space<vmem>>, %arg2: memref<4x32xbf16, #tpu.memory_space<vmem>>, %arg3: memref<1x32xf32, #tpu.memory_space<vmem>>, %arg4: memref<1x32xf32, #tpu.memory_space<vmem>>, %arg5: memref<256x32xbf16, #tpu.memory_space<vmem>>) attributes {dimension_semantics = [#tpu.dimension_semantics<parallel>], iteration_bounds = array<i64: 2>, scalar_prefetch = 0 : i64, scratch_operands = 0 : i64, tpu.core_type = #tpu.core_type<tc>, window_params = [{transform_indices = @transform_0, window_bounds = array<i64: 256, 4>}, {pipeline_mode = #tpu.pipeline_mode<synchronous>, transform_indices = @transform_1, window_bounds = array<i64: 4, 32>}, {pipeline_mode = #tpu.pipeline_mode<synchronous>, transform_indices = @transform_2, window_bounds = array<i64: 1, 32>}, {pipeline_mode = #tpu.pipeline_mode<synchronous>, transform_indices = @transform_3, window_bounds = array<i64: 1, 32>}, {transform_indices = @transform_4, window_bounds = array<i64: 256, 32>}]} {
    %c0 = arith.constant 0 : index
    %c0_0 = arith.constant 0 : index
    %0 = vector.load %arg1[%c0, %c0_0] : memref<256x4xbf16, #tpu.memory_space<vmem>>, vector<256x4xbf16>
    %c0_1 = arith.constant 0 : index
    %c0_2 = arith.constant 0 : index
    %1 = vector.load %arg2[%c0_1, %c0_2] : memref<4x32xbf16, #tpu.memory_space<vmem>>, vector<4x32xbf16>
    %cst = arith.constant dense<0.000000e+00> : vector<256x32xf32>
    %2 = tpu.matmul %0, %1, %cst {dimension_numbers = #tpu.dot_dimension_numbers<[1], [0], [0], [1], [0, 0, 1, 1], [], []>} : vector<256x4xbf16>, vector<4x32xbf16>, vector<256x32xf32> -> vector<256x32xf32>
    %c0_3 = arith.constant 0 : index
    %c0_4 = arith.constant 0 : index
    %3 = vector.load %arg3[%c0_3, %c0_4] : memref<1x32xf32, #tpu.memory_space<vmem>>, vector<1x32xf32>
    %4 = vector.broadcast %3 : vector<1x32xf32> to vector<256x32xf32>
    %5 = arith.mulf %2, %4 : vector<256x32xf32>
    %c0_5 = arith.constant 0 : index
    %c0_6 = arith.constant 0 : index
    %6 = vector.load %arg4[%c0_5, %c0_6] : memref<1x32xf32, #tpu.memory_space<vmem>>, vector<1x32xf32>
    %7 = vector.broadcast %6 : vector<1x32xf32> to vector<256x32xf32>
    %8 = arith.addf %5, %7 : vector<256x32xf32>
    %9 = arith.truncf %8 : vector<256x32xf32> to vector<256x32xbf16>
    %c0_7 = arith.constant 0 : index
    %c0_8 = arith.constant 0 : index
    %10 = vector.load %arg5[%c0_7, %c0_8] : memref<256x32xbf16, #tpu.memory_space<vmem>>, vector<256x32xbf16>
    tpu.vector_store %arg5[%c0_7, %c0_8], %9 {strides = array<i32>} : memref<256x32xbf16, #tpu.memory_space<vmem>>, vector<256x32xbf16>,
    return
  }
  func.func @transform_0(%arg0: i32) -> (i32, i32) {
    %c0_i32 = arith.constant 0 : i32
    %c0_i32_0 = arith.constant 0 : i32
    return %arg0, %c0_i32 : i32, i32
  }
  func.func @transform_1(%arg0: i32) -> (i32, i32) {
    %c0_i32 = arith.constant 0 : i32
    %c0_i32_0 = arith.constant 0 : i32
    %c0_i32_1 = arith.constant 0 : i32
    return %c0_i32, %c0_i32_0 : i32, i32
  }
  func.func @transform_2(%arg0: i32) -> (i32, i32) {
    %c0_i32 = arith.constant 0 : i32
    %c0_i32_0 = arith.constant 0 : i32
    %c0_i32_1 = arith.constant 0 : i32
    return %c0_i32, %c0_i32_0 : i32, i32
  }
  func.func @transform_3(%arg0: i32) -> (i32, i32) {
    %c0_i32 = arith.constant 0 : i32
    %c0_i32_0 = arith.constant 0 : i32
    %c0_i32_1 = arith.constant 0 : i32
    return %c0_i32, %c0_i32_0 : i32, i32
  }
  func.func @transform_4(%arg0: i32) -> (i32, i32) {
    %c0_i32 = arith.constant 0 : i32
    %c0_i32_0 = arith.constant 0 : i32
    return %arg0, %c0_i32 : i32, i32
  }
}

module attributes {stable_mosaic.version = 11 : i64} {
  func.func @_matmul_affine_kernel(%arg0: i32, %arg1: memref<64x128xbf16, #tpu.memory_space<vmem>>, %arg2: memref<128x32xbf16, #tpu.memory_space<vmem>>, %arg3: memref<1x32xf32, #tpu.memory_space<vmem>>, %arg4: memref<1x32xf32, #tpu.memory_space<vmem>>, %arg5: memref<64x32xbf16, #tpu.memory_space<vmem>>) attributes {dimension_semantics = [#tpu.dimension_semantics<parallel>], iteration_bounds = array<i64: 2>, scalar_prefetch = 0 : i64, scratch_operands = 0 : i64, tpu.core_type = #tpu.core_type<tc>, window_params = [{transform_indices = @transform_0, window_bounds = array<i64: 64, 128>}, {pipeline_mode = #tpu.pipeline_mode<synchronous>, transform_indices = @transform_1, window_bounds = array<i64: 128, 32>}, {pipeline_mode = #tpu.pipeline_mode<synchronous>, transform_indices = @transform_2, window_bounds = array<i64: 1, 32>}, {pipeline_mode = #tpu.pipeline_mode<synchronous>, transform_indices = @transform_3, window_bounds = array<i64: 1, 32>}, {transform_indices = @transform_4, window_bounds = array<i64: 64, 32>}]} {
    %c0 = arith.constant 0 : index
    %c0_0 = arith.constant 0 : index
    %0 = vector.load %arg1[%c0, %c0_0] : memref<64x128xbf16, #tpu.memory_space<vmem>>, vector<64x128xbf16>
    %c0_1 = arith.constant 0 : index
    %c0_2 = arith.constant 0 : index
    %1 = vector.load %arg2[%c0_1, %c0_2] : memref<128x32xbf16, #tpu.memory_space<vmem>>, vector<128x32xbf16>
    %cst = arith.constant dense<0.000000e+00> : vector<64x32xf32>
    %2 = tpu.matmul %0, %1, %cst {dimension_numbers = #tpu.dot_dimension_numbers<[1], [0], [0], [1], [0, 0, 1, 1], [], []>} : vector<64x128xbf16>, vector<128x32xbf16>, vector<64x32xf32> -> vector<64x32xf32>
    %c0_3 = arith.constant 0 : index
    %c0_4 = arith.constant 0 : index
    %3 = vector.load %arg3[%c0_3, %c0_4] : memref<1x32xf32, #tpu.memory_space<vmem>>, vector<1x32xf32>
    %4 = vector.broadcast %3 : vector<1x32xf32> to vector<64x32xf32>
    %5 = arith.mulf %2, %4 : vector<64x32xf32>
    %c0_5 = arith.constant 0 : index
    %c0_6 = arith.constant 0 : index
    %6 = vector.load %arg4[%c0_5, %c0_6] : memref<1x32xf32, #tpu.memory_space<vmem>>, vector<1x32xf32>
    %7 = vector.broadcast %6 : vector<1x32xf32> to vector<64x32xf32>
    %8 = arith.addf %5, %7 : vector<64x32xf32>
    %cst_7 = arith.constant 0.000000e+00 : f32
    %9 = vector.broadcast %cst_7 : f32 to vector<64x32xf32>
    %10 = arith.maximumf %8, %9 : vector<64x32xf32>
    %11 = arith.truncf %10 : vector<64x32xf32> to vector<64x32xbf16>
    %c0_8 = arith.constant 0 : index
    %c0_9 = arith.constant 0 : index
    %12 = vector.load %arg5[%c0_8, %c0_9] : memref<64x32xbf16, #tpu.memory_space<vmem>>, vector<64x32xbf16>
    tpu.vector_store %arg5[%c0_8, %c0_9], %11 {strides = array<i32>} : memref<64x32xbf16, #tpu.memory_space<vmem>>, vector<64x32xbf16>,
    return
  }
  func.func @transform_0(%arg0: i32) -> (i32, i32) {
    %c0_i32 = arith.constant 0 : i32
    %c0_i32_0 = arith.constant 0 : i32
    return %arg0, %c0_i32 : i32, i32
  }
  func.func @transform_1(%arg0: i32) -> (i32, i32) {
    %c0_i32 = arith.constant 0 : i32
    %c0_i32_0 = arith.constant 0 : i32
    %c0_i32_1 = arith.constant 0 : i32
    return %c0_i32, %c0_i32_0 : i32, i32
  }
  func.func @transform_2(%arg0: i32) -> (i32, i32) {
    %c0_i32 = arith.constant 0 : i32
    %c0_i32_0 = arith.constant 0 : i32
    %c0_i32_1 = arith.constant 0 : i32
    return %c0_i32, %c0_i32_0 : i32, i32
  }
  func.func @transform_3(%arg0: i32) -> (i32, i32) {
    %c0_i32 = arith.constant 0 : i32
    %c0_i32_0 = arith.constant 0 : i32
    %c0_i32_1 = arith.constant 0 : i32
    return %c0_i32, %c0_i32_0 : i32, i32
  }
  func.func @transform_4(%arg0: i32) -> (i32, i32) {
    %c0_i32 = arith.constant 0 : i32
    %c0_i32_0 = arith.constant 0 : i32
    return %arg0, %c0_i32 : i32, i32
  }
}

module attributes {stable_mosaic.version = 11 : i64} {
  func.func @_matmul_affine_kernel(%arg0: i32, %arg1: memref<16x128xbf16, #tpu.memory_space<vmem>>, %arg2: memref<128x32xbf16, #tpu.memory_space<vmem>>, %arg3: memref<1x32xf32, #tpu.memory_space<vmem>>, %arg4: memref<1x32xf32, #tpu.memory_space<vmem>>, %arg5: memref<16x32xbf16, #tpu.memory_space<vmem>>) attributes {dimension_semantics = [#tpu.dimension_semantics<parallel>], iteration_bounds = array<i64: 2>, scalar_prefetch = 0 : i64, scratch_operands = 0 : i64, tpu.core_type = #tpu.core_type<tc>, window_params = [{transform_indices = @transform_0, window_bounds = array<i64: 16, 128>}, {pipeline_mode = #tpu.pipeline_mode<synchronous>, transform_indices = @transform_1, window_bounds = array<i64: 128, 32>}, {pipeline_mode = #tpu.pipeline_mode<synchronous>, transform_indices = @transform_2, window_bounds = array<i64: 1, 32>}, {pipeline_mode = #tpu.pipeline_mode<synchronous>, transform_indices = @transform_3, window_bounds = array<i64: 1, 32>}, {transform_indices = @transform_4, window_bounds = array<i64: 16, 32>}]} {
    %c0 = arith.constant 0 : index
    %c0_0 = arith.constant 0 : index
    %0 = vector.load %arg1[%c0, %c0_0] : memref<16x128xbf16, #tpu.memory_space<vmem>>, vector<16x128xbf16>
    %c0_1 = arith.constant 0 : index
    %c0_2 = arith.constant 0 : index
    %1 = vector.load %arg2[%c0_1, %c0_2] : memref<128x32xbf16, #tpu.memory_space<vmem>>, vector<128x32xbf16>
    %cst = arith.constant dense<0.000000e+00> : vector<16x32xf32>
    %2 = tpu.matmul %0, %1, %cst {dimension_numbers = #tpu.dot_dimension_numbers<[1], [0], [0], [1], [0, 0, 1, 1], [], []>} : vector<16x128xbf16>, vector<128x32xbf16>, vector<16x32xf32> -> vector<16x32xf32>
    %c0_3 = arith.constant 0 : index
    %c0_4 = arith.constant 0 : index
    %3 = vector.load %arg3[%c0_3, %c0_4] : memref<1x32xf32, #tpu.memory_space<vmem>>, vector<1x32xf32>
    %4 = vector.broadcast %3 : vector<1x32xf32> to vector<16x32xf32>
    %5 = arith.mulf %2, %4 : vector<16x32xf32>
    %c0_5 = arith.constant 0 : index
    %c0_6 = arith.constant 0 : index
    %6 = vector.load %arg4[%c0_5, %c0_6] : memref<1x32xf32, #tpu.memory_space<vmem>>, vector<1x32xf32>
    %7 = vector.broadcast %6 : vector<1x32xf32> to vector<16x32xf32>
    %8 = arith.addf %5, %7 : vector<16x32xf32>
    %cst_7 = arith.constant 0.000000e+00 : f32
    %9 = vector.broadcast %cst_7 : f32 to vector<16x32xf32>
    %10 = arith.maximumf %8, %9 : vector<16x32xf32>
    %11 = arith.truncf %10 : vector<16x32xf32> to vector<16x32xbf16>
    %c0_8 = arith.constant 0 : index
    %c0_9 = arith.constant 0 : index
    %12 = vector.load %arg5[%c0_8, %c0_9] : memref<16x32xbf16, #tpu.memory_space<vmem>>, vector<16x32xbf16>
    tpu.vector_store %arg5[%c0_8, %c0_9], %11 {strides = array<i32>} : memref<16x32xbf16, #tpu.memory_space<vmem>>, vector<16x32xbf16>,
    return
  }
  func.func @transform_0(%arg0: i32) -> (i32, i32) {
    %c0_i32 = arith.constant 0 : i32
    %c0_i32_0 = arith.constant 0 : i32
    return %arg0, %c0_i32 : i32, i32
  }
  func.func @transform_1(%arg0: i32) -> (i32, i32) {
    %c0_i32 = arith.constant 0 : i32
    %c0_i32_0 = arith.constant 0 : i32
    %c0_i32_1 = arith.constant 0 : i32
    return %c0_i32, %c0_i32_0 : i32, i32
  }
  func.func @transform_2(%arg0: i32) -> (i32, i32) {
    %c0_i32 = arith.constant 0 : i32
    %c0_i32_0 = arith.constant 0 : i32
    %c0_i32_1 = arith.constant 0 : i32
    return %c0_i32, %c0_i32_0 : i32, i32
  }
  func.func @transform_3(%arg0: i32) -> (i32, i32) {
    %c0_i32 = arith.constant 0 : i32
    %c0_i32_0 = arith.constant 0 : i32
    %c0_i32_1 = arith.constant 0 : i32
    return %c0_i32, %c0_i32_0 : i32, i32
  }
  func.func @transform_4(%arg0: i32) -> (i32, i32) {
    %c0_i32 = arith.constant 0 : i32
    %c0_i32_0 = arith.constant 0 : i32
    return %arg0, %c0_i32 : i32, i32
  }
}

module attributes {stable_mosaic.version = 11 : i64} {
  func.func @_qkv_attention_kernel(%arg0: i32, %arg1: memref<4x4x32xbf16, #tpu.memory_space<vmem>>, %arg2: memref<32x52xbf16, #tpu.memory_space<vmem>>, %arg3: memref<1x52xf32, #tpu.memory_space<vmem>>, %arg4: memref<4x4x32xbf16, #tpu.memory_space<vmem>>) attributes {dimension_semantics = [#tpu.dimension_semantics<parallel>], iteration_bounds = array<i64: 2>, scalar_prefetch = 0 : i64, scratch_operands = 0 : i64, tpu.core_type = #tpu.core_type<tc>, window_params = [{transform_indices = @transform_0, window_bounds = array<i64: 4, 4, 32>}, {pipeline_mode = #tpu.pipeline_mode<synchronous>, transform_indices = @transform_1, window_bounds = array<i64: 32, 52>}, {pipeline_mode = #tpu.pipeline_mode<synchronous>, transform_indices = @transform_2, window_bounds = array<i64: 1, 52>}, {transform_indices = @transform_3, window_bounds = array<i64: 4, 4, 32>}]} {
    %c0 = arith.constant 0 : index
    %c0_0 = arith.constant 0 : index
    %c0_1 = arith.constant 0 : index
    %0 = vector.load %arg1[%c0, %c0_0, %c0_1] : memref<4x4x32xbf16, #tpu.memory_space<vmem>>, vector<4x4x32xbf16>
    %c0_2 = arith.constant 0 : index
    %c0_3 = arith.constant 0 : index
    %1 = vector.load %arg2[%c0_2, %c0_3] : memref<32x52xbf16, #tpu.memory_space<vmem>>, vector<32x52xbf16>
    %2 = vector.shape_cast %1 : vector<32x52xbf16> to vector<1x32x52xbf16>
    %3 = vector.broadcast %2 : vector<1x32x52xbf16> to vector<4x32x52xbf16>
    "tpu.trace_start"() <{level = 10 : i32, message = "blk,bkn->bln"}> : () -> ()
    %cst = arith.constant dense<0.000000e+00> : vector<4x4x52xf32>
    %4 = tpu.matmul %0, %3, %cst {dimension_numbers = #tpu.dot_dimension_numbers<[2], [1], [1], [2], [0, 0, 0, 1, 1, 2], [0], [0]>} : vector<4x4x32xbf16>, vector<4x32x52xbf16>, vector<4x4x52xf32> -> vector<4x4x52xf32>
    "tpu.trace_stop"() : () -> ()
    %c0_4 = arith.constant 0 : index
    %c0_5 = arith.constant 0 : index
    %5 = vector.load %arg3[%c0_4, %c0_5] : memref<1x52xf32, #tpu.memory_space<vmem>>, vector<1x52xf32>
    %6 = vector.shape_cast %5 : vector<1x52xf32> to vector<1x1x52xf32>
    %7 = vector.broadcast %6 : vector<1x1x52xf32> to vector<4x4x52xf32>
    %8 = arith.addf %4, %7 : vector<4x4x52xf32>
    %9 = vector.extract_strided_slice %8 {offsets = [0, 0, 0], sizes = [4, 4, 10], strides = [1, 1, 1]} : vector<4x4x52xf32> to vector<4x4x10xf32>
    %10 = vector.extract_strided_slice %8 {offsets = [0, 0, 10], sizes = [4, 4, 10], strides = [1, 1, 1]} : vector<4x4x52xf32> to vector<4x4x10xf32>
    %11 = vector.extract_strided_slice %8 {offsets = [0, 0, 20], sizes = [4, 4, 32], strides = [1, 1, 1]} : vector<4x4x52xf32> to vector<4x4x32xf32>
    %12 = arith.truncf %9 : vector<4x4x10xf32> to vector<4x4x10xbf16>
    %13 = arith.truncf %10 : vector<4x4x10xf32> to vector<4x4x10xbf16>
    "tpu.trace_start"() <{level = 10 : i32, message = "bld,bmd->blm"}> : () -> ()
    %cst_6 = arith.constant dense<0.000000e+00> : vector<4x4x4xf32>
    %14 = tpu.matmul %12, %13, %cst_6 {dimension_numbers = #tpu.dot_dimension_numbers<[2], [2], [1], [1], [0, 0, 0, 1, 1, 1], [0], [0]>} : vector<4x4x10xbf16>, vector<4x4x10xbf16>, vector<4x4x4xf32> -> vector<4x4x4xf32>
    "tpu.trace_stop"() : () -> ()
    %cst_7 = arith.constant 0.316227764 : f32
    %15 = vector.broadcast %cst_7 : f32 to vector<4x4x4xf32>
    %16 = arith.mulf %14, %15 : vector<4x4x4xf32>
    %cst_8 = arith.constant dense<0xFF800000> : vector<4x4xf32>
    %17 = vector.multi_reduction <maximumf>, %16, %cst_8 [2] : vector<4x4x4xf32> to vector<4x4xf32>
    %18 = vector.shape_cast %17 : vector<4x4xf32> to vector<4x4x1xf32>
    %19 = vector.broadcast %18 : vector<4x4x1xf32> to vector<4x4x4xf32>
    %20 = arith.subf %16, %19 : vector<4x4x4xf32>
    %21 = math.exp %20 : vector<4x4x4xf32>
    %cst_9 = arith.constant dense<0.000000e+00> : vector<4x4xf32>
    %22 = vector.multi_reduction <add>, %21, %cst_9 [2] : vector<4x4x4xf32> to vector<4x4xf32>
    %23 = vector.shape_cast %22 : vector<4x4xf32> to vector<4x4x1xf32>
    %24 = tpu.reciprocal %23 {approx = true} : vector<4x4x1xf32> -> vector<4x4x1xf32>
    %25 = vector.broadcast %24 : vector<4x4x1xf32> to vector<4x4x4xf32>
    %26 = arith.mulf %21, %25 : vector<4x4x4xf32>
    %27 = arith.truncf %26 : vector<4x4x4xf32> to vector<4x4x4xbf16>
    %28 = arith.truncf %11 : vector<4x4x32xf32> to vector<4x4x32xbf16>
    "tpu.trace_start"() <{level = 10 : i32, message = "blm,bmd->bld"}> : () -> ()
    %cst_10 = arith.constant dense<0.000000e+00> : vector<4x4x32xf32>
    %29 = tpu.matmul %27, %28, %cst_10 {dimension_numbers = #tpu.dot_dimension_numbers<[2], [1], [1], [2], [0, 0, 0, 1, 1, 2], [0], [0]>} : vector<4x4x4xbf16>, vector<4x4x32xbf16>, vector<4x4x32xf32> -> vector<4x4x32xf32>
    "tpu.trace_stop"() : () -> ()
    %30 = arith.truncf %29 : vector<4x4x32xf32> to vector<4x4x32xbf16>
    %c0_11 = arith.constant 0 : index
    %c0_12 = arith.constant 0 : index
    %c0_13 = arith.constant 0 : index
    %31 = vector.load %arg4[%c0_11, %c0_12, %c0_13] : memref<4x4x32xbf16, #tpu.memory_space<vmem>>, vector<4x4x32xbf16>
    tpu.vector_store %arg4[%c0_11, %c0_12, %c0_13], %30 {strides = array<i32>} : memref<4x4x32xbf16, #tpu.memory_space<vmem>>, vector<4x4x32xbf16>,
    return
  }
  func.func @transform_0(%arg0: i32) -> (i32, i32, i32) {
    %c0_i32 = arith.constant 0 : i32
    %c0_i32_0 = arith.constant 0 : i32
    %c0_i32_1 = arith.constant 0 : i32
    return %arg0, %c0_i32, %c0_i32_0 : i32, i32, i32
  }
  func.func @transform_1(%arg0: i32) -> (i32, i32) {
    %c0_i32 = arith.constant 0 : i32
    %c0_i32_0 = arith.constant 0 : i32
    %c0_i32_1 = arith.constant 0 : i32
    return %c0_i32, %c0_i32_0 : i32, i32
  }
  func.func @transform_2(%arg0: i32) -> (i32, i32) {
    %c0_i32 = arith.constant 0 : i32
    %c0_i32_0 = arith.constant 0 : i32
    %c0_i32_1 = arith.constant 0 : i32
    return %c0_i32, %c0_i32_0 : i32, i32
  }
  func.func @transform_3(%arg0: i32) -> (i32, i32, i32) {
    %c0_i32 = arith.constant 0 : i32
    %c0_i32_0 = arith.constant 0 : i32
    %c0_i32_1 = arith.constant 0 : i32
    return %arg0, %c0_i32, %c0_i32_0 : i32, i32, i32
  }
}

module attributes {stable_mosaic.version = 11 : i64} {
  func.func @_matmul_affine_kernel(%arg0: i32, %arg1: memref<16x32xbf16, #tpu.memory_space<vmem>>, %arg2: memref<32x128xbf16, #tpu.memory_space<vmem>>, %arg3: memref<1x128xf32, #tpu.memory_space<vmem>>, %arg4: memref<1x128xf32, #tpu.memory_space<vmem>>, %arg5: memref<16x128xbf16, #tpu.memory_space<vmem>>) attributes {dimension_semantics = [#tpu.dimension_semantics<parallel>], iteration_bounds = array<i64: 2>, scalar_prefetch = 0 : i64, scratch_operands = 0 : i64, tpu.core_type = #tpu.core_type<tc>, window_params = [{transform_indices = @transform_0, window_bounds = array<i64: 16, 32>}, {pipeline_mode = #tpu.pipeline_mode<synchronous>, transform_indices = @transform_1, window_bounds = array<i64: 32, 128>}, {pipeline_mode = #tpu.pipeline_mode<synchronous>, transform_indices = @transform_2, window_bounds = array<i64: 1, 128>}, {pipeline_mode = #tpu.pipeline_mode<synchronous>, transform_indices = @transform_3, window_bounds = array<i64: 1, 128>}, {transform_indices = @transform_4, window_bounds = array<i64: 16, 128>}]} {
    %c0 = arith.constant 0 : index
    %c0_0 = arith.constant 0 : index
    %0 = vector.load %arg1[%c0, %c0_0] : memref<16x32xbf16, #tpu.memory_space<vmem>>, vector<16x32xbf16>
    %c0_1 = arith.constant 0 : index
    %c0_2 = arith.constant 0 : index
    %1 = vector.load %arg2[%c0_1, %c0_2] : memref<32x128xbf16, #tpu.memory_space<vmem>>, vector<32x128xbf16>
    %cst = arith.constant dense<0.000000e+00> : vector<16x128xf32>
    %2 = tpu.matmul %0, %1, %cst {dimension_numbers = #tpu.dot_dimension_numbers<[1], [0], [0], [1], [0, 0, 1, 1], [], []>} : vector<16x32xbf16>, vector<32x128xbf16>, vector<16x128xf32> -> vector<16x128xf32>
    %c0_3 = arith.constant 0 : index
    %c0_4 = arith.constant 0 : index
    %3 = vector.load %arg3[%c0_3, %c0_4] : memref<1x128xf32, #tpu.memory_space<vmem>>, vector<1x128xf32>
    %4 = vector.broadcast %3 : vector<1x128xf32> to vector<16x128xf32>
    %5 = arith.mulf %2, %4 : vector<16x128xf32>
    %c0_5 = arith.constant 0 : index
    %c0_6 = arith.constant 0 : index
    %6 = vector.load %arg4[%c0_5, %c0_6] : memref<1x128xf32, #tpu.memory_space<vmem>>, vector<1x128xf32>
    %7 = vector.broadcast %6 : vector<1x128xf32> to vector<16x128xf32>
    %8 = arith.addf %5, %7 : vector<16x128xf32>
    %cst_7 = arith.constant 0.000000e+00 : f32
    %9 = vector.broadcast %cst_7 : f32 to vector<16x128xf32>
    %10 = arith.maximumf %8, %9 : vector<16x128xf32>
    %11 = arith.truncf %10 : vector<16x128xf32> to vector<16x128xbf16>
    %c0_8 = arith.constant 0 : index
    %c0_9 = arith.constant 0 : index
    %12 = vector.load %arg5[%c0_8, %c0_9] : memref<16x128xbf16, #tpu.memory_space<vmem>>, vector<16x128xbf16>
    tpu.vector_store %arg5[%c0_8, %c0_9], %11 {strides = array<i32>} : memref<16x128xbf16, #tpu.memory_space<vmem>>, vector<16x128xbf16>,
    return
  }
  func.func @transform_0(%arg0: i32) -> (i32, i32) {
    %c0_i32 = arith.constant 0 : i32
    %c0_i32_0 = arith.constant 0 : i32
    return %arg0, %c0_i32 : i32, i32
  }
  func.func @transform_1(%arg0: i32) -> (i32, i32) {
    %c0_i32 = arith.constant 0 : i32
    %c0_i32_0 = arith.constant 0 : i32
    %c0_i32_1 = arith.constant 0 : i32
    return %c0_i32, %c0_i32_0 : i32, i32
  }
  func.func @transform_2(%arg0: i32) -> (i32, i32) {
    %c0_i32 = arith.constant 0 : i32
    %c0_i32_0 = arith.constant 0 : i32
    %c0_i32_1 = arith.constant 0 : i32
    return %c0_i32, %c0_i32_0 : i32, i32
  }
  func.func @transform_3(%arg0: i32) -> (i32, i32) {
    %c0_i32 = arith.constant 0 : i32
    %c0_i32_0 = arith.constant 0 : i32
    %c0_i32_1 = arith.constant 0 : i32
    return %c0_i32, %c0_i32_0 : i32, i32
  }
  func.func @transform_4(%arg0: i32) -> (i32, i32) {
    %c0_i32 = arith.constant 0 : i32
    %c0_i32_0 = arith.constant 0 : i32
    return %arg0, %c0_i32 : i32, i32
  }
}

module attributes {stable_mosaic.version = 11 : i64} {
  func.func @_matmul_affine_kernel(%arg0: i32, %arg1: memref<64x32xbf16, #tpu.memory_space<vmem>>, %arg2: memref<32x128xbf16, #tpu.memory_space<vmem>>, %arg3: memref<1x128xf32, #tpu.memory_space<vmem>>, %arg4: memref<1x128xf32, #tpu.memory_space<vmem>>, %arg5: memref<64x128xbf16, #tpu.memory_space<vmem>>) attributes {dimension_semantics = [#tpu.dimension_semantics<parallel>], iteration_bounds = array<i64: 2>, scalar_prefetch = 0 : i64, scratch_operands = 0 : i64, tpu.core_type = #tpu.core_type<tc>, window_params = [{transform_indices = @transform_0, window_bounds = array<i64: 64, 32>}, {pipeline_mode = #tpu.pipeline_mode<synchronous>, transform_indices = @transform_1, window_bounds = array<i64: 32, 128>}, {pipeline_mode = #tpu.pipeline_mode<synchronous>, transform_indices = @transform_2, window_bounds = array<i64: 1, 128>}, {pipeline_mode = #tpu.pipeline_mode<synchronous>, transform_indices = @transform_3, window_bounds = array<i64: 1, 128>}, {transform_indices = @transform_4, window_bounds = array<i64: 64, 128>}]} {
    %c0 = arith.constant 0 : index
    %c0_0 = arith.constant 0 : index
    %0 = vector.load %arg1[%c0, %c0_0] : memref<64x32xbf16, #tpu.memory_space<vmem>>, vector<64x32xbf16>
    %c0_1 = arith.constant 0 : index
    %c0_2 = arith.constant 0 : index
    %1 = vector.load %arg2[%c0_1, %c0_2] : memref<32x128xbf16, #tpu.memory_space<vmem>>, vector<32x128xbf16>
    %cst = arith.constant dense<0.000000e+00> : vector<64x128xf32>
    %2 = tpu.matmul %0, %1, %cst {dimension_numbers = #tpu.dot_dimension_numbers<[1], [0], [0], [1], [0, 0, 1, 1], [], []>} : vector<64x32xbf16>, vector<32x128xbf16>, vector<64x128xf32> -> vector<64x128xf32>
    %c0_3 = arith.constant 0 : index
    %c0_4 = arith.constant 0 : index
    %3 = vector.load %arg3[%c0_3, %c0_4] : memref<1x128xf32, #tpu.memory_space<vmem>>, vector<1x128xf32>
    %4 = vector.broadcast %3 : vector<1x128xf32> to vector<64x128xf32>
    %5 = arith.mulf %2, %4 : vector<64x128xf32>
    %c0_5 = arith.constant 0 : index
    %c0_6 = arith.constant 0 : index
    %6 = vector.load %arg4[%c0_5, %c0_6] : memref<1x128xf32, #tpu.memory_space<vmem>>, vector<1x128xf32>
    %7 = vector.broadcast %6 : vector<1x128xf32> to vector<64x128xf32>
    %8 = arith.addf %5, %7 : vector<64x128xf32>
    %cst_7 = arith.constant 0.000000e+00 : f32
    %9 = vector.broadcast %cst_7 : f32 to vector<64x128xf32>
    %10 = arith.maximumf %8, %9 : vector<64x128xf32>
    %11 = arith.truncf %10 : vector<64x128xf32> to vector<64x128xbf16>
    %c0_8 = arith.constant 0 : index
    %c0_9 = arith.constant 0 : index
    %12 = vector.load %arg5[%c0_8, %c0_9] : memref<64x128xbf16, #tpu.memory_space<vmem>>, vector<64x128xbf16>
    tpu.vector_store %arg5[%c0_8, %c0_9], %11 {strides = array<i32>} : memref<64x128xbf16, #tpu.memory_space<vmem>>, vector<64x128xbf16>,
    return
  }
  func.func @transform_0(%arg0: i32) -> (i32, i32) {
    %c0_i32 = arith.constant 0 : i32
    %c0_i32_0 = arith.constant 0 : i32
    return %arg0, %c0_i32 : i32, i32
  }
  func.func @transform_1(%arg0: i32) -> (i32, i32) {
    %c0_i32 = arith.constant 0 : i32
    %c0_i32_0 = arith.constant 0 : i32
    %c0_i32_1 = arith.constant 0 : i32
    return %c0_i32, %c0_i32_0 : i32, i32
  }
  func.func @transform_2(%arg0: i32) -> (i32, i32) {
    %c0_i32 = arith.constant 0 : i32
    %c0_i32_0 = arith.constant 0 : i32
    %c0_i32_1 = arith.constant 0 : i32
    return %c0_i32, %c0_i32_0 : i32, i32
  }
  func.func @transform_3(%arg0: i32) -> (i32, i32) {
    %c0_i32 = arith.constant 0 : i32
    %c0_i32_0 = arith.constant 0 : i32
    %c0_i32_1 = arith.constant 0 : i32
    return %c0_i32, %c0_i32_0 : i32, i32
  }
  func.func @transform_4(%arg0: i32) -> (i32, i32) {
    %c0_i32 = arith.constant 0 : i32
    %c0_i32_0 = arith.constant 0 : i32
    return %arg0, %c0_i32 : i32, i32
  }
}

module attributes {stable_mosaic.version = 11 : i64} {
  func.func @_matmul_affine_kernel(%arg0: i32, %arg1: memref<256x32xbf16, #tpu.memory_space<vmem>>, %arg2: memref<32x4xbf16, #tpu.memory_space<vmem>>, %arg3: memref<1x4xf32, #tpu.memory_space<vmem>>, %arg4: memref<1x4xf32, #tpu.memory_space<vmem>>, %arg5: memref<256x4xf32, #tpu.memory_space<vmem>>) attributes {dimension_semantics = [#tpu.dimension_semantics<parallel>], iteration_bounds = array<i64: 2>, scalar_prefetch = 0 : i64, scratch_operands = 0 : i64, tpu.core_type = #tpu.core_type<tc>, window_params = [{transform_indices = @transform_0, window_bounds = array<i64: 256, 32>}, {pipeline_mode = #tpu.pipeline_mode<synchronous>, transform_indices = @transform_1, window_bounds = array<i64: 32, 4>}, {pipeline_mode = #tpu.pipeline_mode<synchronous>, transform_indices = @transform_2, window_bounds = array<i64: 1, 4>}, {pipeline_mode = #tpu.pipeline_mode<synchronous>, transform_indices = @transform_3, window_bounds = array<i64: 1, 4>}, {transform_indices = @transform_4, window_bounds = array<i64: 256, 4>}]} {
    %c0 = arith.constant 0 : index
    %c0_0 = arith.constant 0 : index
    %0 = vector.load %arg1[%c0, %c0_0] : memref<256x32xbf16, #tpu.memory_space<vmem>>, vector<256x32xbf16>
    %c0_1 = arith.constant 0 : index
    %c0_2 = arith.constant 0 : index
    %1 = vector.load %arg2[%c0_1, %c0_2] : memref<32x4xbf16, #tpu.memory_space<vmem>>, vector<32x4xbf16>
    %cst = arith.constant dense<0.000000e+00> : vector<256x4xf32>
    %2 = tpu.matmul %0, %1, %cst {dimension_numbers = #tpu.dot_dimension_numbers<[1], [0], [0], [1], [0, 0, 1, 1], [], []>} : vector<256x32xbf16>, vector<32x4xbf16>, vector<256x4xf32> -> vector<256x4xf32>
    %c0_3 = arith.constant 0 : index
    %c0_4 = arith.constant 0 : index
    %3 = vector.load %arg3[%c0_3, %c0_4] : memref<1x4xf32, #tpu.memory_space<vmem>>, vector<1x4xf32>
    %4 = vector.broadcast %3 : vector<1x4xf32> to vector<256x4xf32>
    %5 = arith.mulf %2, %4 : vector<256x4xf32>
    %c0_5 = arith.constant 0 : index
    %c0_6 = arith.constant 0 : index
    %6 = vector.load %arg4[%c0_5, %c0_6] : memref<1x4xf32, #tpu.memory_space<vmem>>, vector<1x4xf32>
    %7 = vector.broadcast %6 : vector<1x4xf32> to vector<256x4xf32>
    %8 = arith.addf %5, %7 : vector<256x4xf32>
    %c0_7 = arith.constant 0 : index
    %c0_8 = arith.constant 0 : index
    %9 = vector.load %arg5[%c0_7, %c0_8] : memref<256x4xf32, #tpu.memory_space<vmem>>, vector<256x4xf32>
    tpu.vector_store %arg5[%c0_7, %c0_8], %8 {strides = array<i32>} : memref<256x4xf32, #tpu.memory_space<vmem>>, vector<256x4xf32>,
    return
  }
  func.func @transform_0(%arg0: i32) -> (i32, i32) {
    %c0_i32 = arith.constant 0 : i32
    %c0_i32_0 = arith.constant 0 : i32
    return %arg0, %c0_i32 : i32, i32
  }
  func.func @transform_1(%arg0: i32) -> (i32, i32) {
    %c0_i32 = arith.constant 0 : i32
    %c0_i32_0 = arith.constant 0 : i32
    %c0_i32_1 = arith.constant 0 : i32
    return %c0_i32, %c0_i32_0 : i32, i32
  }
  func.func @transform_2(%arg0: i32) -> (i32, i32) {
    %c0_i32 = arith.constant 0 : i32
    %c0_i32_0 = arith.constant 0 : i32
    %c0_i32_1 = arith.constant 0 : i32
    return %c0_i32, %c0_i32_0 : i32, i32
  }
  func.func @transform_3(%arg0: i32) -> (i32, i32) {
    %c0_i32 = arith.constant 0 : i32
    %c0_i32_0 = arith.constant 0 : i32
    %c0_i32_1 = arith.constant 0 : i32
    return %c0_i32, %c0_i32_0 : i32, i32
  }
  func.func @transform_4(%arg0: i32) -> (i32, i32) {
    %c0_i32 = arith.constant 0 : i32
    %c0_i32_0 = arith.constant 0 : i32
    return %arg0, %c0_i32 : i32, i32
  }
}

</mosaic_0001>

<llo_original>
// kernel: _lambda_.7
$region0: #{_lambda_.7}
  #allocation0 [shape = 'u32[]', space=smem, size = 0x4, offset = 0x4, fixed_abs, tag = 'smem constant byte address 0x4 - core index']
  #allocation1 [shape = 'u32[144,128]{1,0:T(1,128)}', space=vmem, size = 0x12000, scoped, tag = 'internal scratch']
  %s0 = inlined_call_operand.vmem [shape: bf16[512,4], index: 0, kind: input, shape index: {}]
  %s1 = inlined_call_operand.vmem [shape: bf16[4,32], index: 1, kind: input, shape index: {}]
  %s2 = inlined_call_operand.vmem [shape: f32[1,32], index: 2, kind: input, shape index: {}]
  %s3 = inlined_call_operand.vmem [shape: f32[1,32], index: 3, kind: input, shape index: {}]
  %s4 = inlined_call_operand.vmem [shape: bf16[512,32], index: 4, kind: output, shape index: {}]
  %s5 = sld [smem:[#allocation0]]
  $region49: #{_lambda_.7} parent=0
    _
  %s7 = ssub.s32 1, %s5
  %s8 = scalar_select 0, %s7, %s5
  loop: start=0, step=1, limit=4
  $region2: #{_lambda_.7} parent=0 // loop_pre_header
    _
  $region3: #{_lambda_.7} parent=0 // loop_header
    %s10 = sphi 0, %s14
    %p11 = scmp.ge.s32.totalorder %s10, 4
    %s20 = sphi 0, %s22
    %s23 = sphi 0, %s20
    %s24 = sphi 0, %s23
    %s40 = sphi 0, %s24
    %s44 = sphi 0, %s44
    %s46 = sphi 0, %s44
    %s47 = sphi 0, %s46
    %s61 = sphi 0, %s47
    %s65 = sphi 0, %s65
    %s67 = sphi 0, %s65
    %s68 = sphi 0, %s67
    %s82 = sphi 0, %s68
    %s86 = sphi 0, %s86
    %s88 = sphi 0, %s86
    %s89 = sphi 0, %s88
    %s103 = sphi 0, %s89
    %s109 = sphi 0, %s111
    %s112 = sphi 0, %s109
    %s113 = sphi 0, %s112
    %s129 = sphi 0, %s113
  $region4: #{_lambda_.7} parent=0 // loop_header_branch
    %13 = sbr.rel (%p11) target = $region8
  $region5: #{_lambda_.7} parent=0 // loop_body
    %s15 = ssub.s32 %s10, 1
    %s16 = ssub.s32 %s10, 2
    %s17 = sadd.s32 %s10, 1
    %s18 = ssub.s32 %s10, %s17
    %p19 = scmp.eq.s32.totalorder %s18, 0
    %s21 = sadd.s32 %s20, 1
    %s22 = scalar_select %p19, %s20, %s21
    %p25 = pneg %p19
    %p26 = scmp.eq.s32.totalorder %s10, 1
    %p27 = por %p25, %p26
    %p28 = scmp.ne.s32.totalorder %s20, %s23
    %p29 = scmp.eq.s32.totalorder %s10, 0
    %p30 = por %p28, %p29
    %p31 = scmp.ne.s32.totalorder %s20, %s23
    %p32 = scmp.eq.s32.totalorder %s15, 1
    %p33 = por %p31, %p32
    %p34 = scmp.ne.s32.totalorder %s23, %s24
    %p35 = scmp.eq.s32.totalorder %s15, 0
    %p36 = por %p34, %p35
    %p37 = scmp.ne.s32.totalorder %s23, %s24
    %p38 = scmp.eq.s32.totalorder %s16, 1
    %p39 = por %p37, %p38
    %p41 = scmp.ne.s32.totalorder %s24, %s40
    %p42 = scmp.eq.s32.totalorder %s16, 0
    %p43 = por %p41, %p42
    %s45 = sadd.s32 %s44, 1
    %p48 = scmp.eq.s32.totalorder %s10, 1
    %p49 = scmp.ne.s32.totalorder %s44, %s46
    %p50 = scmp.eq.s32.totalorder %s10, 0
    %p51 = por %p49, %p50
    %p52 = scmp.ne.s32.totalorder %s44, %s46
    %p53 = scmp.eq.s32.totalorder %s15, 1
    %p54 = por %p52, %p53
    %p55 = scmp.ne.s32.totalorder %s46, %s47
    %p56 = scmp.eq.s32.totalorder %s15, 0
    %p57 = por %p55, %p56
    %p58 = scmp.ne.s32.totalorder %s46, %s47
    %p59 = scmp.eq.s32.totalorder %s16, 1
    %p60 = por %p58, %p59
    %p62 = scmp.ne.s32.totalorder %s47, %s61
    %p63 = scmp.eq.s32.totalorder %s16, 0
    %p64 = por %p62, %p63
    %s66 = sadd.s32 %s65, 1
    %p69 = scmp.eq.s32.totalorder %s10, 1
    %p70 = scmp.ne.s32.totalorder %s65, %s67
    %p71 = scmp.eq.s32.totalorder %s10, 0
    %p72 = por %p70, %p71
    %p73 = scmp.ne.s32.totalorder %s65, %s67
    %p74 = scmp.eq.s32.totalorder %s15, 1
    %p75 = por %p73, %p74
    %p76 = scmp.ne.s32.totalorder %s67, %s68
    %p77 = scmp.eq.s32.totalorder %s15, 0
    %p78 = por %p76, %p77
    %p79 = scmp.ne.s32.totalorder %s67, %s68
    %p80 = scmp.eq.s32.totalorder %s16, 1
    %p81 = por %p79, %p80
    %p83 = scmp.ne.s32.totalorder %s68, %s82
    %p84 = scmp.eq.s32.totalorder %s16, 0
    %p85 = por %p83, %p84
    %s87 = sadd.s32 %s86, 1
    %p90 = scmp.eq.s32.totalorder %s10, 1
    %p91 = scmp.ne.s32.totalorder %s86, %s88
    %p92 = scmp.eq.s32.totalorder %s10, 0
    %p93 = por %p91, %p92
    %p94 = scmp.ne.s32.totalorder %s86, %s88
    %p95 = scmp.eq.s32.totalorder %s15, 1
    %p96 = por %p94, %p95
    %p97 = scmp.ne.s32.totalorder %s88, %s89
    %p98 = scmp.eq.s32.totalorder %s15, 0
    %p99 = por %p97, %p98
    %p100 = scmp.ne.s32.totalorder %s88, %s89
    %p101 = scmp.eq.s32.totalorder %s16, 1
    %p102 = por %p100, %p101
    %p104 = scmp.ne.s32.totalorder %s89, %s103
    %p105 = scmp.eq.s32.totalorder %s16, 0
    %p106 = por %p104, %p105
    %s107 = ssub.s32 %s10, %s17
    %p108 = scmp.eq.s32.totalorder %s107, 0
    %s110 = sadd.s32 %s109, 1
    %s111 = scalar_select %p108, %s109, %s110
    %p114 = pneg %p108
    %p115 = scmp.eq.s32.totalorder %s10, 1
    %p116 = por %p114, %p115
    %p117 = scmp.ne.s32.totalorder %s109, %s112
    %p118 = scmp.eq.s32.totalorder %s10, 0
    %p119 = por %p117, %p118
    %p120 = scmp.ne.s32.totalorder %s109, %s112
    %p121 = scmp.eq.s32.totalorder %s15, 1
    %p122 = por %p120, %p121
    %p123 = scmp.ne.s32.totalorder %s112, %s113
    %p124 = scmp.eq.s32.totalorder %s15, 0
    %p125 = por %p123, %p124
    %p126 = scmp.ne.s32.totalorder %s112, %s113
    %p127 = scmp.eq.s32.totalorder %s16, 1
    %p128 = por %p126, %p127
    %p130 = scmp.ne.s32.totalorder %s113, %s129
    %p131 = scmp.eq.s32.totalorder %s16, 0
    %p132 = por %p130, %p131
    %p133 = scmp.le.s32.totalorder 1, %s10
    %p134 = scmp.lt.s32.totalorder %s10, 3
    %p135 = pnand %p133, %p134
    %p136 = pneg %p135
    // Predicated region
    $region9: #{_lambda_.7} parent=5 // pred_check
      _
    $region10: #{_lambda_.7} parent=5 // pred_check_branch
      %138 = sbr.rel (%p135) target = $region12
    $region11: #{_lambda_.7} parent=5 // pred_region
      %s139 = ssub.s32 %s10, 1
      // Predicated region
      $region13: #{_lambda_.7} parent=11 // pred_check
        %p140 = pneg %p57
      $region14: #{_lambda_.7} parent=11 // pred_check_branch
        %142 = sbr.rel (%p140) target = $region16
      $region15: #{_lambda_.7} parent=11 // pred_region
        _
      $region16: #{_lambda_.7} parent=11 // pred_fallthru
        _
      // Predicated region
      $region17: #{_lambda_.7} parent=11 // pred_check
        %p143 = pneg %p78
      $region18: #{_lambda_.7} parent=11 // pred_check_branch
        %145 = sbr.rel (%p143) target = $region20
      $region19: #{_lambda_.7} parent=11 // pred_region
        _
      $region20: #{_lambda_.7} parent=11 // pred_fallthru
        _
      // Predicated region
      $region21: #{_lambda_.7} parent=11 // pred_check
        %p146 = pneg %p99
      $region22: #{_lambda_.7} parent=11 // pred_check_branch
        %148 = sbr.rel (%p146) target = $region24
      $region23: #{_lambda_.7} parent=11 // pred_region
        _
      $region24: #{_lambda_.7} parent=11 // pred_fallthru
        _
    $region12: #{_lambda_.7} parent=5 // pred_fallthru
      _
    %p149 = scmp.lt.s32.totalorder %s10, 2
    // Predicated region
    $region25: #{_lambda_.7} parent=5 // pred_check
      %p150 = pneg %p149
    $region26: #{_lambda_.7} parent=5 // pred_check_branch
      %152 = sbr.rel (%p150) target = $region28
    $region27: #{_lambda_.7} parent=5 // pred_region
      // Predicated region
      $region29: #{_lambda_.7} parent=27 // pred_check
        %p153 = pneg %p30
      $region30: #{_lambda_.7} parent=27 // pred_check_branch
        %155 = sbr.rel (%p153) target = $region32
      $region31: #{_lambda_.7} parent=27 // pred_region
        %s156 = smul.u32 32, %s10
        %p157 = scmp.lt.s32.totalorder %s156, 63
        %s158 = scalar_select %p157, %s156, 63
        %s159 = smul.addr %s158, 4
        %s160 = scalar_lea.vmem %s0, %s159
        %s161 = smul.u32 32, %s10
      $region32: #{_lambda_.7} parent=27 // pred_fallthru
        _
    $region28: #{_lambda_.7} parent=5 // pred_fallthru
      _
    %p162 = scmp.le.s32.totalorder 1, %s10
    %p163 = scmp.lt.s32.totalorder %s10, 3
    %p164 = pnand %p162, %p163
    %p165 = pneg %p164
    // Predicated region
    $region33: #{_lambda_.7} parent=5 // pred_check
      _
    $region34: #{_lambda_.7} parent=5 // pred_check_branch
      %167 = sbr.rel (%p164) target = $region36
    $region35: #{_lambda_.7} parent=5 // pred_region
      %s168 = ssub.s32 %s10, 1
      %s169 = smul.u32 32, %s15
      %p170 = scmp.lt.s32.totalorder %s169, 63
      %s171 = scalar_select %p170, %s169, 63
      %s172 = smul.addr %s171, 4
      %s173 = scalar_lea.vmem %s0, %s172
      %p174 = pneg %p36
      %p175 = pneg %p33
      %p176 = pneg %p57
      %p177 = pneg %p54
      %p178 = pneg %p78
      %p179 = pneg %p75
      %p180 = pneg %p99
      %p181 = pneg %p96
      %p182 = pneg %p125
      %p183 = pneg %p122
      %s184 = smul.u32 32, %s15
      %p185 = scmp.lt.s32.totalorder %s184, 63
      %s186 = scalar_select %p185, %s184, 63
      %s187 = smul.addr %s186, 4
      %s188 = scalar_lea.vmem %s4, %s187
      %s189 = smul.u32 32, %s15
      %p190 = scmp.lt.s32.totalorder %s189, 63
      %s191 = scalar_select %p190, %s189, 63
      %s192 = smul.addr %s191, 4
      %s193 = scalar_lea.vmem %s0, %s192
      %s194 = smul.u32 32, %s15
      %s195 = smul.u32 32, %s15
      %p196 = scmp.lt.s32.totalorder %s195, 63
      %s197 = scalar_select %p196, %s195, 63
      %s198 = smul.addr %s197, 4
      %s199 = scalar_lea.vmem %s4, %s198
      %s200 = smul.u32 32, %s15
      %v202 = vld [vmem:[%s193] sm:$0xf]
      %v203 = vld [vmem:[%s193 + $0x4] sm:$0xf]
      %v204 = vld [vmem:[%s193 + $0x8] sm:$0xf]
      %v205 = vld [vmem:[%s193 + $0xc] sm:$0xf]
      %v206 = vld [vmem:[%s193 + $0x10] sm:$0xf]
      %v207 = vld [vmem:[%s193 + $0x14] sm:$0xf]
      %v208 = vld [vmem:[%s193 + $0x18] sm:$0xf]
      %v209 = vld [vmem:[%s193 + $0x1c] sm:$0xf]
      %v210 = vld [vmem:[%s193 + $0x20] sm:$0xf]
      %v211 = vld [vmem:[%s193 + $0x24] sm:$0xf]
      %v212 = vld [vmem:[%s193 + $0x28] sm:$0xf]
      %v213 = vld [vmem:[%s193 + $0x2c] sm:$0xf]
      %v214 = vld [vmem:[%s193 + $0x30] sm:$0xf]
      %v215 = vld [vmem:[%s193 + $0x34] sm:$0xf]
      %v216 = vld [vmem:[%s193 + $0x38] sm:$0xf]
      %v217 = vld [vmem:[%s193 + $0x3c] sm:$0xf]
      %v218 = vld [vmem:[%s193 + $0x40] sm:$0xf]
      %v219 = vld [vmem:[%s193 + $0x44] sm:$0xf]
      %v220 = vld [vmem:[%s193 + $0x48] sm:$0xf]
      %v221 = vld [vmem:[%s193 + $0x4c] sm:$0xf]
      %v222 = vld [vmem:[%s193 + $0x50] sm:$0xf]
      %v223 = vld [vmem:[%s193 + $0x54] sm:$0xf]
      %v224 = vld [vmem:[%s193 + $0x58] sm:$0xf]
      %v225 = vld [vmem:[%s193 + $0x5c] sm:$0xf]
      %v226 = vld [vmem:[%s193 + $0x60] sm:$0xf]
      %v227 = vld [vmem:[%s193 + $0x64] sm:$0xf]
      %v228 = vld [vmem:[%s193 + $0x68] sm:$0xf]
      %v229 = vld [vmem:[%s193 + $0x6c] sm:$0xf]
      %v230 = vld [vmem:[%s193 + $0x70] sm:$0xf]
      %v231 = vld [vmem:[%s193 + $0x74] sm:$0xf]
      %v232 = vld [vmem:[%s193 + $0x78] sm:$0xf]
      %v233 = vld [vmem:[%s193 + $0x7c] sm:$0xf]
      %v234 = vld [vmem:[%s1] sm:$0x3]
      %v267 = vunpack.c.l.b16 %v202
      %v268 = vunpack.c.l.b16 %v203
      %v269 = vunpack.c.l.b16 %v204
      %v270 = vunpack.c.l.b16 %v205
      %v271 = vunpack.c.l.b16 %v206
      %v272 = vunpack.c.l.b16 %v207
      %v273 = vunpack.c.l.b16 %v208
      %v274 = vunpack.c.l.b16 %v209
      %v275 = vunpack.c.l.b16 %v210
      %v276 = vunpack.c.l.b16 %v211
      %v277 = vunpack.c.l.b16 %v212
      %v278 = vunpack.c.l.b16 %v213
      %v279 = vunpack.c.l.b16 %v214
      %v280 = vunpack.c.l.b16 %v215
      %v281 = vunpack.c.l.b16 %v216
      %v282 = vunpack.c.l.b16 %v217
      %v283 = vunpack.c.l.b16 %v218
      %v284 = vunpack.c.l.b16 %v219
      %v285 = vunpack.c.l.b16 %v220
      %v286 = vunpack.c.l.b16 %v221
      %v287 = vunpack.c.l.b16 %v222
      %v288 = vunpack.c.l.b16 %v223
      %v289 = vunpack.c.l.b16 %v224
      %v290 = vunpack.c.l.b16 %v225
      %v291 = vunpack.c.l.b16 %v226
      %v292 = vunpack.c.l.b16 %v227
      %v293 = vunpack.c.l.b16 %v228
      %v294 = vunpack.c.l.b16 %v229
      %v295 = vunpack.c.l.b16 %v230
      %v296 = vunpack.c.l.b16 %v231
      %v297 = vunpack.c.l.b16 %v232
      %v298 = vunpack.c.l.b16 %v233
      %v299 = vpack.c.b16 %v268, %v267
      %v300 = vpack.c.b16 %v270, %v269
      %v301 = vpack.c.b16 %v272, %v271
      %v302 = vpack.c.b16 %v274, %v273
      %v303 = vpack.c.b16 %v276, %v275
      %v304 = vpack.c.b16 %v278, %v277
      %v305 = vpack.c.b16 %v280, %v279
      %v306 = vpack.c.b16 %v282, %v281
      %v307 = vpack.c.b16 %v284, %v283
      %v308 = vpack.c.b16 %v286, %v285
      %v309 = vpack.c.b16 %v288, %v287
      %v310 = vpack.c.b16 %v290, %v289
      %v311 = vpack.c.b16 %v292, %v291
      %v312 = vpack.c.b16 %v294, %v293
      %v313 = vpack.c.b16 %v296, %v295
      %v314 = vpack.c.b16 %v298, %v297
      %vm315 = vcmask 31744
      %v317 = vsel %vm315, %v299, 0
      %v320 = vsel %vm315, %v300, 0
      %v323 = vsel %vm315, %v301, 0
      %v326 = vsel %vm315, %v302, 0
      %v329 = vsel %vm315, %v303, 0
      %v332 = vsel %vm315, %v304, 0
      %v335 = vsel %vm315, %v305, 0
      %v338 = vsel %vm315, %v306, 0
      %v341 = vsel %vm315, %v307, 0
      %v344 = vsel %vm315, %v308, 0
      %v347 = vsel %vm315, %v309, 0
      %v350 = vsel %vm315, %v310, 0
      %v353 = vsel %vm315, %v311, 0
      %v356 = vsel %vm315, %v312, 0
      %v359 = vsel %vm315, %v313, 0
      %v362 = vsel %vm315, %v314, 0
      %vm364 = vcmask 1041408
      %v366 = vsel %vm364, %v234, 0
      %368 = vmatprep.subr.bf16.mxu0 0
      %369 = vmatpush1.bf16.msra.mxu0 %v366
      %370 = vmatprep.subr.bf16.mxu0 0
      %371 = vmatpush1.bf16.msra.mxu0 0
      %372 = vmatprep.subr.bf16.mxu0 0
      %373 = vmatpush1.bf16.msra.mxu0 0
      %374 = vmatprep.subr.bf16.mxu0 0
      %375 = vmatpush1.bf16.msra.mxu0 0
      %376 = vmatprep.subr.bf16.mxu0 0
      %377 = vmatpush1.bf16.msra.mxu0 0
      %378 = vmatprep.subr.bf16.mxu0 0
      %379 = vmatpush1.bf16.msra.mxu0 0
      %380 = vmatprep.subr.bf16.mxu0 0
      %381 = vmatpush1.bf16.msra.mxu0 0
      %382 = vmatprep.subr.bf16.mxu0 0
      %383 = vmatpush1.bf16.msra.mxu0 0
      %384 = vmatprep.subr.bf16.mxu0 0
      %385 = vmatpush1.bf16.msra.mxu0 0
      %386 = vmatprep.subr.bf16.mxu0 0
      %387 = vmatpush1.bf16.msra.mxu0 0
      %388 = vmatprep.subr.bf16.mxu0 0
      %389 = vmatpush1.bf16.msra.mxu0 0
      %390 = vmatprep.subr.bf16.mxu0 0
      %391 = vmatpush1.bf16.msra.mxu0 0
      %392 = vmatprep.subr.bf16.mxu0 0
      %393 = vmatpush1.bf16.msra.mxu0 0
      %394 = vmatprep.subr.bf16.mxu0 0
      %395 = vmatpush1.bf16.msra.mxu0 0
      %396 = vmatprep.subr.bf16.mxu0 0
      %397 = vmatpush1.bf16.msra.mxu0 0
      %398 = vmatprep.subr.bf16.mxu0 0
      %399 = vmatpush1.bf16.msra.mxu0 0
      %400 = vmatprep.mubr.bf16.mxu0 0
      %401 = vmatmul.mubr.bf16.gmra.mrb[0].mxu0 %v317
      %v402 = vpop.f32.mrb[0].mxu0
      %v403 = vadd.f32 0.0, %v402
      %v404 = vpop.f32.mrb[0].mxu0
      %v405 = vpop.f32.mrb[0].mxu0
      %v406 = vadd.f32 0.0, %v405
      %v407 = vpop.f32.mrb[0].mxu0
      %408 = vmatprep.mubr.bf16.mxu0 0
      %409 = vmatmul.mubr.bf16.gmra.mrb[0].mxu0 %v320
      %v410 = vpop.f32.mrb[0].mxu0
      %v411 = vadd.f32 0.0, %v410
      %v412 = vpop.f32.mrb[0].mxu0
      %v413 = vpop.f32.mrb[0].mxu0
      %v414 = vadd.f32 0.0, %v413
      %v415 = vpop.f32.mrb[0].mxu0
      %416 = vmatprep.mubr.bf16.mxu0 0
      %417 = vmatmul.mubr.bf16.gmra.mrb[0].mxu0 %v323
      %v418 = vpop.f32.mrb[0].mxu0
      %v419 = vadd.f32 0.0, %v418
      %v420 = vpop.f32.mrb[0].mxu0
      %v421 = vpop.f32.mrb[0].mxu0
      %v422 = vadd.f32 0.0, %v421
      %v423 = vpop.f32.mrb[0].mxu0
      %424 = vmatprep.mubr.bf16.mxu0 0
      %425 = vmatmul.mubr.bf16.gmra.mrb[0].mxu0 %v326
      %v426 = vpop.f32.mrb[0].mxu0
      %v427 = vadd.f32 0.0, %v426
      %v428 = vpop.f32.mrb[0].mxu0
      %v429 = vpop.f32.mrb[0].mxu0
      %v430 = vadd.f32 0.0, %v429
      %v431 = vpop.f32.mrb[0].mxu0
      %432 = vmatprep.mubr.bf16.mxu0 0
      %433 = vmatmul.mubr.bf16.gmra.mrb[0].mxu0 %v329
      %v434 = vpop.f32.mrb[0].mxu0
      %v435 = vadd.f32 0.0, %v434
      %v436 = vpop.f32.mrb[0].mxu0
      %v437 = vpop.f32.mrb[0].mxu0
      %v438 = vadd.f32 0.0, %v437
      %v439 = vpop.f32.mrb[0].mxu0
      %440 = vmatprep.mubr.bf16.mxu0 0
      %441 = vmatmul.mubr.bf16.gmra.mrb[0].mxu0 %v332
      %v442 = vpop.f32.mrb[0].mxu0
      %v443 = vadd.f32 0.0, %v442
      %v444 = vpop.f32.mrb[0].mxu0
      %v445 = vpop.f32.mrb[0].mxu0
      %v446 = vadd.f32 0.0, %v445
      %v447 = vpop.f32.mrb[0].mxu0
      %448 = vmatprep.mubr.bf16.mxu0 0
      %449 = vmatmul.mubr.bf16.gmra.mrb[0].mxu0 %v335
      %v450 = vpop.f32.mrb[0].mxu0
      %v451 = vadd.f32 0.0, %v450
      %v452 = vpop.f32.mrb[0].mxu0
      %v453 = vpop.f32.mrb[0].mxu0
      %v454 = vadd.f32 0.0, %v453
      %v455 = vpop.f32.mrb[0].mxu0
      %456 = vmatprep.mubr.bf16.mxu0 0
      %457 = vmatmul.mubr.bf16.gmra.mrb[0].mxu0 %v338
      %v458 = vpop.f32.mrb[0].mxu0
      %v459 = vadd.f32 0.0, %v458
      %v460 = vpop.f32.mrb[0].mxu0
      %v461 = vpop.f32.mrb[0].mxu0
      %v462 = vadd.f32 0.0, %v461
      %v463 = vpop.f32.mrb[0].mxu0
      %464 = vmatprep.mubr.bf16.mxu0 0
      %465 = vmatmul.mubr.bf16.gmra.mrb[0].mxu0 %v341
      %v466 = vpop.f32.mrb[0].mxu0
      %v467 = vadd.f32 0.0, %v466
      %v468 = vpop.f32.mrb[0].mxu0
      %v469 = vpop.f32.mrb[0].mxu0
      %v470 = vadd.f32 0.0, %v469
      %v471 = vpop.f32.mrb[0].mxu0
      %472 = vmatprep.mubr.bf16.mxu0 0
      %473 = vmatmul.mubr.bf16.gmra.mrb[0].mxu0 %v344
      %v474 = vpop.f32.mrb[0].mxu0
      %v475 = vadd.f32 0.0, %v474
      %v476 = vpop.f32.mrb[0].mxu0
      %v477 = vpop.f32.mrb[0].mxu0
      %v478 = vadd.f32 0.0, %v477
      %v479 = vpop.f32.mrb[0].mxu0
      %480 = vmatprep.mubr.bf16.mxu0 0
      %481 = vmatmul.mubr.bf16.gmra.mrb[0].mxu0 %v347
      %v482 = vpop.f32.mrb[0].mxu0
      %v483 = vadd.f32 0.0, %v482
      %v484 = vpop.f32.mrb[0].mxu0
      %v485 = vpop.f32.mrb[0].mxu0
      %v486 = vadd.f32 0.0, %v485
      %v487 = vpop.f32.mrb[0].mxu0
      %488 = vmatprep.mubr.bf16.mxu0 0
      %489 = vmatmul.mubr.bf16.gmra.mrb[0].mxu0 %v350
      %v490 = vpop.f32.mrb[0].mxu0
      %v491 = vadd.f32 0.0, %v490
      %v492 = vpop.f32.mrb[0].mxu0
      %v493 = vpop.f32.mrb[0].mxu0
      %v494 = vadd.f32 0.0, %v493
      %v495 = vpop.f32.mrb[0].mxu0
      %496 = vmatprep.mubr.bf16.mxu0 0
      %497 = vmatmul.mubr.bf16.gmra.mrb[0].mxu0 %v353
      %v498 = vpop.f32.mrb[0].mxu0
      %v499 = vadd.f32 0.0, %v498
      %v500 = vpop.f32.mrb[0].mxu0
      %v501 = vpop.f32.mrb[0].mxu0
      %v502 = vadd.f32 0.0, %v501
      %v503 = vpop.f32.mrb[0].mxu0
      %504 = vmatprep.mubr.bf16.mxu0 0
      %505 = vmatmul.mubr.bf16.gmra.mrb[0].mxu0 %v356
      %v506 = vpop.f32.mrb[0].mxu0
      %v507 = vadd.f32 0.0, %v506
      %v508 = vpop.f32.mrb[0].mxu0
      %v509 = vpop.f32.mrb[0].mxu0
      %v510 = vadd.f32 0.0, %v509
      %v511 = vpop.f32.mrb[0].mxu0
      %512 = vmatprep.mubr.bf16.mxu0 0
      %513 = vmatmul.mubr.bf16.gmra.mrb[0].mxu0 %v359
      %v514 = vpop.f32.mrb[0].mxu0
      %v515 = vadd.f32 0.0, %v514
      %v516 = vpop.f32.mrb[0].mxu0
      %v517 = vpop.f32.mrb[0].mxu0
      %v518 = vadd.f32 0.0, %v517
      %v519 = vpop.f32.mrb[0].mxu0
      %520 = vmatprep.mubr.bf16.mxu0 0
      %521 = vmatmul.mubr.bf16.gmra.mrb[0].mxu0 %v362
      %v522 = vpop.f32.mrb[0].mxu0
      %v523 = vadd.f32 0.0, %v522
      %v524 = vpop.f32.mrb[0].mxu0
      %v525 = vpop.f32.mrb[0].mxu0
      %v526 = vadd.f32 0.0, %v525
      %v527 = vpop.f32.mrb[0].mxu0
      %528 = vdwg.mxu0
      %v529 = vld [vmem:[%s2] sm:$0x1]
      %v531 = vlaneseq
      %v532 = vshrl.u32 %v531, 7
      %v533 = vsub.s32 0, %v532
      %v534 = vrot.slane %v529, %v533
      %v536 = vmul.f32 %v403, %v534
      %v537 = vmul.f32 %v406, %v534
      %v538 = vmul.f32 %v411, %v534
      %v539 = vmul.f32 %v414, %v534
      %v540 = vmul.f32 %v419, %v534
      %v541 = vmul.f32 %v422, %v534
      %v542 = vmul.f32 %v427, %v534
      %v543 = vmul.f32 %v430, %v534
      %v544 = vmul.f32 %v435, %v534
      %v545 = vmul.f32 %v438, %v534
      %v546 = vmul.f32 %v443, %v534
      %v547 = vmul.f32 %v446, %v534
      %v548 = vmul.f32 %v451, %v534
      %v549 = vmul.f32 %v454, %v534
      %v550 = vmul.f32 %v459, %v534
      %v551 = vmul.f32 %v462, %v534
      %v552 = vmul.f32 %v467, %v534
      %v553 = vmul.f32 %v470, %v534
      %v554 = vmul.f32 %v475, %v534
      %v555 = vmul.f32 %v478, %v534
      %v556 = vmul.f32 %v483, %v534
      %v557 = vmul.f32 %v486, %v534
      %v558 = vmul.f32 %v491, %v534
      %v559 = vmul.f32 %v494, %v534
      %v560 = vmul.f32 %v499, %v534
      %v561 = vmul.f32 %v502, %v534
      %v562 = vmul.f32 %v507, %v534
      %v563 = vmul.f32 %v510, %v534
      %v564 = vmul.f32 %v515, %v534
      %v565 = vmul.f32 %v518, %v534
      %v566 = vmul.f32 %v523, %v534
      %v567 = vmul.f32 %v526, %v534
      %v568 = vld [vmem:[%s3] sm:$0x1]
      %v570 = vlaneseq
      %v571 = vshrl.u32 %v570, 7
      %v572 = vsub.s32 0, %v571
      %v573 = vrot.slane %v568, %v572
      %v575 = vadd.f32 %v536, %v573
      %v576 = vadd.f32 %v537, %v573
      %v577 = vadd.f32 %v538, %v573
      %v578 = vadd.f32 %v539, %v573
      %v579 = vadd.f32 %v540, %v573
      %v580 = vadd.f32 %v541, %v573
      %v581 = vadd.f32 %v542, %v573
      %v582 = vadd.f32 %v543, %v573
      %v583 = vadd.f32 %v544, %v573
      %v584 = vadd.f32 %v545, %v573
      %v585 = vadd.f32 %v546, %v573
      %v586 = vadd.f32 %v547, %v573
      %v587 = vadd.f32 %v548, %v573
      %v588 = vadd.f32 %v549, %v573
      %v589 = vadd.f32 %v550, %v573
      %v590 = vadd.f32 %v551, %v573
      %v591 = vadd.f32 %v552, %v573
      %v592 = vadd.f32 %v553, %v573
      %v593 = vadd.f32 %v554, %v573
      %v594 = vadd.f32 %v555, %v573
      %v595 = vadd.f32 %v556, %v573
      %v596 = vadd.f32 %v557, %v573
      %v597 = vadd.f32 %v558, %v573
      %v598 = vadd.f32 %v559, %v573
      %v599 = vadd.f32 %v560, %v573
      %v600 = vadd.f32 %v561, %v573
      %v601 = vadd.f32 %v562, %v573
      %v602 = vadd.f32 %v563, %v573
      %v603 = vadd.f32 %v564, %v573
      %v604 = vadd.f32 %v565, %v573
      %v605 = vadd.f32 %v566, %v573
      %v606 = vadd.f32 %v567, %v573
      %v607 = vpack.c.bf16 %v576, %v575
      %v608 = vpack.c.bf16 %v578, %v577
      %v609 = vpack.c.bf16 %v580, %v579
      %v610 = vpack.c.bf16 %v582, %v581
      %v611 = vpack.c.bf16 %v584, %v583
      %v612 = vpack.c.bf16 %v586, %v585
      %v613 = vpack.c.bf16 %v588, %v587
      %v614 = vpack.c.bf16 %v590, %v589
      %v615 = vpack.c.bf16 %v592, %v591
      %v616 = vpack.c.bf16 %v594, %v593
      %v617 = vpack.c.bf16 %v596, %v595
      %v618 = vpack.c.bf16 %v598, %v597
      %v619 = vpack.c.bf16 %v600, %v599
      %v620 = vpack.c.bf16 %v602, %v601
      %v621 = vpack.c.bf16 %v604, %v603
      %v622 = vpack.c.bf16 %v606, %v605
      %v639 = vunpack.c.l.b16 %v607
      %v640 = vunpack.c.h.b16 %v607
      %v641 = vunpack.c.l.b16 %v608
      %v642 = vunpack.c.h.b16 %v608
      %v643 = vunpack.c.l.b16 %v609
      %v644 = vunpack.c.h.b16 %v609
      %v645 = vunpack.c.l.b16 %v610
      %v646 = vunpack.c.h.b16 %v610
      %v647 = vunpack.c.l.b16 %v611
      %v648 = vunpack.c.h.b16 %v611
      %v649 = vunpack.c.l.b16 %v612
      %v650 = vunpack.c.h.b16 %v612
      %v651 = vunpack.c.l.b16 %v613
      %v652 = vunpack.c.h.b16 %v613
      %v653 = vunpack.c.l.b16 %v614
      %v654 = vunpack.c.h.b16 %v614
      %v655 = vunpack.c.l.b16 %v615
      %v656 = vunpack.c.h.b16 %v615
      %v657 = vunpack.c.l.b16 %v616
      %v658 = vunpack.c.h.b16 %v616
      %v659 = vunpack.c.l.b16 %v617
      %v660 = vunpack.c.h.b16 %v617
      %v661 = vunpack.c.l.b16 %v618
      %v662 = vunpack.c.h.b16 %v618
      %v663 = vunpack.c.l.b16 %v619
      %v664 = vunpack.c.h.b16 %v619
      %v665 = vunpack.c.l.b16 %v620
      %v666 = vunpack.c.h.b16 %v620
      %v667 = vunpack.c.l.b16 %v621
      %v668 = vunpack.c.h.b16 %v621
      %v669 = vunpack.c.l.b16 %v622
      %v670 = vunpack.c.h.b16 %v622
      %v671 = vpack.c.b16 %v639, %v639
      %v672 = vpack.c.b16 %v640, %v640
      %v673 = vpack.c.b16 %v641, %v641
      %v674 = vpack.c.b16 %v642, %v642
      %v675 = vpack.c.b16 %v643, %v643
      %v676 = vpack.c.b16 %v644, %v644
      %v677 = vpack.c.b16 %v645, %v645
      %v678 = vpack.c.b16 %v646, %v646
      %v679 = vpack.c.b16 %v647, %v647
      %v680 = vpack.c.b16 %v648, %v648
      %v681 = vpack.c.b16 %v649, %v649
      %v682 = vpack.c.b16 %v650, %v650
      %v683 = vpack.c.b16 %v651, %v651
      %v684 = vpack.c.b16 %v652, %v652
      %v685 = vpack.c.b16 %v653, %v653
      %v686 = vpack.c.b16 %v654, %v654
      %v687 = vpack.c.b16 %v655, %v655
      %v688 = vpack.c.b16 %v656, %v656
      %v689 = vpack.c.b16 %v657, %v657
      %v690 = vpack.c.b16 %v658, %v658
      %v691 = vpack.c.b16 %v659, %v659
      %v692 = vpack.c.b16 %v660, %v660
      %v693 = vpack.c.b16 %v661, %v661
      %v694 = vpack.c.b16 %v662, %v662
      %v695 = vpack.c.b16 %v663, %v663
      %v696 = vpack.c.b16 %v664, %v664
      %v697 = vpack.c.b16 %v665, %v665
      %v698 = vpack.c.b16 %v666, %v666
      %v699 = vpack.c.b16 %v667, %v667
      %v700 = vpack.c.b16 %v668, %v668
      %v701 = vpack.c.b16 %v669, %v669
      %v702 = vpack.c.b16 %v670, %v670
      %vm735 = vcmask 257024
      %736 = vst.msk [vmem:[%s199] sm:$0xf] %vm735, %v671
      %737 = vst.msk [vmem:[%s199 + $0x4] sm:$0xf] %vm735, %v672
      %738 = vst.msk [vmem:[%s199 + $0x8] sm:$0xf] %vm735, %v673
      %739 = vst.msk [vmem:[%s199 + $0xc] sm:$0xf] %vm735, %v674
      %740 = vst.msk [vmem:[%s199 + $0x10] sm:$0xf] %vm735, %v675
      %741 = vst.msk [vmem:[%s199 + $0x14] sm:$0xf] %vm735, %v676
      %742 = vst.msk [vmem:[%s199 + $0x18] sm:$0xf] %vm735, %v677
      %743 = vst.msk [vmem:[%s199 + $0x1c] sm:$0xf] %vm735, %v678
      %744 = vst.msk [vmem:[%s199 + $0x20] sm:$0xf] %vm735, %v679
      %745 = vst.msk [vmem:[%s199 + $0x24] sm:$0xf] %vm735, %v680
      %746 = vst.msk [vmem:[%s199 + $0x28] sm:$0xf] %vm735, %v681
      %747 = vst.msk [vmem:[%s199 + $0x2c] sm:$0xf] %vm735, %v682
      %748 = vst.msk [vmem:[%s199 + $0x30] sm:$0xf] %vm735, %v683
      %749 = vst.msk [vmem:[%s199 + $0x34] sm:$0xf] %vm735, %v684
      %750 = vst.msk [vmem:[%s199 + $0x38] sm:$0xf] %vm735, %v685
      %751 = vst.msk [vmem:[%s199 + $0x3c] sm:$0xf] %vm735, %v686
      %752 = vst.msk [vmem:[%s199 + $0x40] sm:$0xf] %vm735, %v687
      %753 = vst.msk [vmem:[%s199 + $0x44] sm:$0xf] %vm735, %v688
      %754 = vst.msk [vmem:[%s199 + $0x48] sm:$0xf] %vm735, %v689
      %755 = vst.msk [vmem:[%s199 + $0x4c] sm:$0xf] %vm735, %v690
      %756 = vst.msk [vmem:[%s199 + $0x50] sm:$0xf] %vm735, %v691
      %757 = vst.msk [vmem:[%s199 + $0x54] sm:$0xf] %vm735, %v692
      %758 = vst.msk [vmem:[%s199 + $0x58] sm:$0xf] %vm735, %v693
      %759 = vst.msk [vmem:[%s199 + $0x5c] sm:$0xf] %vm735, %v694
      %760 = vst.msk [vmem:[%s199 + $0x60] sm:$0xf] %vm735, %v695
      %761 = vst.msk [vmem:[%s199 + $0x64] sm:$0xf] %vm735, %v696
      %762 = vst.msk [vmem:[%s199 + $0x68] sm:$0xf] %vm735, %v697
      %763 = vst.msk [vmem:[%s199 + $0x6c] sm:$0xf] %vm735, %v698
      %764 = vst.msk [vmem:[%s199 + $0x70] sm:$0xf] %vm735, %v699
      %765 = vst.msk [vmem:[%s199 + $0x74] sm:$0xf] %vm735, %v700
      %766 = vst.msk [vmem:[%s199 + $0x78] sm:$0xf] %vm735, %v701
      %767 = vst.msk [vmem:[%s199 + $0x7c] sm:$0xf] %vm735, %v702
      %s768 = smul.u32 32, %s15
      %p769 = scmp.lt.s32.totalorder %s768, 63
      %s770 = scalar_select %p769, %s768, 63
      %s771 = smul.addr %s770, 4
      %s772 = scalar_lea.vmem %s4, %s771
      // Predicated region
      $region37: #{_lambda_.7} parent=35 // pred_check
        %p773 = pneg %p122
      $region38: #{_lambda_.7} parent=35 // pred_check_branch
        %775 = sbr.rel (%p773) target = $region40
      $region39: #{_lambda_.7} parent=35 // pred_region
        %s776 = smul.u32 32, %s15
      $region40: #{_lambda_.7} parent=35 // pred_fallthru
        _
    $region36: #{_lambda_.7} parent=5 // pred_fallthru
      _
    %p777 = scmp.le.s32.totalorder 2, %s10
    // Predicated region
    $region41: #{_lambda_.7} parent=5 // pred_check
      %p778 = pneg %p777
    $region42: #{_lambda_.7} parent=5 // pred_check_branch
      %780 = sbr.rel (%p778) target = $region44
    $region43: #{_lambda_.7} parent=5 // pred_region
      %s781 = ssub.s32 %s10, 2
      // Predicated region
      $region45: #{_lambda_.7} parent=43 // pred_check
        %p782 = pneg %p128
      $region46: #{_lambda_.7} parent=43 // pred_check_branch
        %784 = sbr.rel (%p782) target = $region48
      $region47: #{_lambda_.7} parent=43 // pred_region
        %s785 = smul.u32 32, %s16
        %p786 = scmp.lt.s32.totalorder %s785, 63
        %s787 = scalar_select %p786, %s785, 63
        %s788 = smul.addr %s787, 4
        %s789 = scalar_lea.vmem %s4, %s788
      $region48: #{_lambda_.7} parent=43 // pred_fallthru
        _
    $region44: #{_lambda_.7} parent=5 // pred_fallthru
      _
  $region6: #{_lambda_.7} parent=0 // loop_footer
    %s14 = sadd.s32 1, %s10
  $region7: #{_lambda_.7} parent=0 // loop_footer_branch
    %9 = sbr.rel target = $region3
  $region8: #{_lambda_.7} parent=0 // loop_exit
    _

// kernel: _lambda_.8
$region0: #{_lambda_.8}
  #allocation0 [shape = 'u32[]', space=smem, size = 0x4, offset = 0x4, fixed_abs, tag = 'smem constant byte address 0x4 - core index']
  #allocation1 [shape = 'u32[144,128]{1,0:T(1,128)}', space=vmem, size = 0x12000, scoped, tag = 'internal scratch']
  %s0 = inlined_call_operand.vmem [shape: bf16[128,128], index: 0, kind: input, shape index: {}]
  %s1 = inlined_call_operand.vmem [shape: bf16[128,32], index: 1, kind: input, shape index: {}]
  %s2 = inlined_call_operand.vmem [shape: f32[1,32], index: 2, kind: input, shape index: {}]
  %s3 = inlined_call_operand.vmem [shape: f32[1,32], index: 3, kind: input, shape index: {}]
  %s4 = inlined_call_operand.vmem [shape: bf16[128,32], index: 4, kind: output, shape index: {}]
  %s5 = sld [smem:[#allocation0]]
  $region49: #{_lambda_.8} parent=0
    _
  %s7 = ssub.s32 1, %s5
  %s8 = scalar_select 0, %s7, %s5
  loop: start=0, step=1, limit=4
  $region2: #{_lambda_.8} parent=0 // loop_pre_header
    _
  $region3: #{_lambda_.8} parent=0 // loop_header
    %s10 = sphi 0, %s14
    %p11 = scmp.ge.s32.totalorder %s10, 4
    %s20 = sphi 0, %s22
    %s23 = sphi 0, %s20
    %s24 = sphi 0, %s23
    %s40 = sphi 0, %s24
    %s44 = sphi 0, %s44
    %s46 = sphi 0, %s44
    %s47 = sphi 0, %s46
    %s61 = sphi 0, %s47
    %s65 = sphi 0, %s65
    %s67 = sphi 0, %s65
    %s68 = sphi 0, %s67
    %s82 = sphi 0, %s68
    %s86 = sphi 0, %s86
    %s88 = sphi 0, %s86
    %s89 = sphi 0, %s88
    %s103 = sphi 0, %s89
    %s109 = sphi 0, %s111
    %s112 = sphi 0, %s109
    %s113 = sphi 0, %s112
    %s129 = sphi 0, %s113
  $region4: #{_lambda_.8} parent=0 // loop_header_branch
    %13 = sbr.rel (%p11) target = $region8
  $region5: #{_lambda_.8} parent=0 // loop_body
    %s15 = ssub.s32 %s10, 1
    %s16 = ssub.s32 %s10, 2
    %s17 = sadd.s32 %s10, 1
    %s18 = ssub.s32 %s10, %s17
    %p19 = scmp.eq.s32.totalorder %s18, 0
    %s21 = sadd.s32 %s20, 1
    %s22 = scalar_select %p19, %s20, %s21
    %p25 = pneg %p19
    %p26 = scmp.eq.s32.totalorder %s10, 1
    %p27 = por %p25, %p26
    %p28 = scmp.ne.s32.totalorder %s20, %s23
    %p29 = scmp.eq.s32.totalorder %s10, 0
    %p30 = por %p28, %p29
    %p31 = scmp.ne.s32.totalorder %s20, %s23
    %p32 = scmp.eq.s32.totalorder %s15, 1
    %p33 = por %p31, %p32
    %p34 = scmp.ne.s32.totalorder %s23, %s24
    %p35 = scmp.eq.s32.totalorder %s15, 0
    %p36 = por %p34, %p35
    %p37 = scmp.ne.s32.totalorder %s23, %s24
    %p38 = scmp.eq.s32.totalorder %s16, 1
    %p39 = por %p37, %p38
    %p41 = scmp.ne.s32.totalorder %s24, %s40
    %p42 = scmp.eq.s32.totalorder %s16, 0
    %p43 = por %p41, %p42
    %s45 = sadd.s32 %s44, 1
    %p48 = scmp.eq.s32.totalorder %s10, 1
    %p49 = scmp.ne.s32.totalorder %s44, %s46
    %p50 = scmp.eq.s32.totalorder %s10, 0
    %p51 = por %p49, %p50
    %p52 = scmp.ne.s32.totalorder %s44, %s46
    %p53 = scmp.eq.s32.totalorder %s15, 1
    %p54 = por %p52, %p53
    %p55 = scmp.ne.s32.totalorder %s46, %s47
    %p56 = scmp.eq.s32.totalorder %s15, 0
    %p57 = por %p55, %p56
    %p58 = scmp.ne.s32.totalorder %s46, %s47
    %p59 = scmp.eq.s32.totalorder %s16, 1
    %p60 = por %p58, %p59
    %p62 = scmp.ne.s32.totalorder %s47, %s61
    %p63 = scmp.eq.s32.totalorder %s16, 0
    %p64 = por %p62, %p63
    %s66 = sadd.s32 %s65, 1
    %p69 = scmp.eq.s32.totalorder %s10, 1
    %p70 = scmp.ne.s32.totalorder %s65, %s67
    %p71 = scmp.eq.s32.totalorder %s10, 0
    %p72 = por %p70, %p71
    %p73 = scmp.ne.s32.totalorder %s65, %s67
    %p74 = scmp.eq.s32.totalorder %s15, 1
    %p75 = por %p73, %p74
    %p76 = scmp.ne.s32.totalorder %s67, %s68
    %p77 = scmp.eq.s32.totalorder %s15, 0
    %p78 = por %p76, %p77
    %p79 = scmp.ne.s32.totalorder %s67, %s68
    %p80 = scmp.eq.s32.totalorder %s16, 1
    %p81 = por %p79, %p80
    %p83 = scmp.ne.s32.totalorder %s68, %s82
    %p84 = scmp.eq.s32.totalorder %s16, 0
    %p85 = por %p83, %p84
    %s87 = sadd.s32 %s86, 1
    %p90 = scmp.eq.s32.totalorder %s10, 1
    %p91 = scmp.ne.s32.totalorder %s86, %s88
    %p92 = scmp.eq.s32.totalorder %s10, 0
    %p93 = por %p91, %p92
    %p94 = scmp.ne.s32.totalorder %s86, %s88
    %p95 = scmp.eq.s32.totalorder %s15, 1
    %p96 = por %p94, %p95
    %p97 = scmp.ne.s32.totalorder %s88, %s89
    %p98 = scmp.eq.s32.totalorder %s15, 0
    %p99 = por %p97, %p98
    %p100 = scmp.ne.s32.totalorder %s88, %s89
    %p101 = scmp.eq.s32.totalorder %s16, 1
    %p102 = por %p100, %p101
    %p104 = scmp.ne.s32.totalorder %s89, %s103
    %p105 = scmp.eq.s32.totalorder %s16, 0
    %p106 = por %p104, %p105
    %s107 = ssub.s32 %s10, %s17
    %p108 = scmp.eq.s32.totalorder %s107, 0
    %s110 = sadd.s32 %s109, 1
    %s111 = scalar_select %p108, %s109, %s110
    %p114 = pneg %p108
    %p115 = scmp.eq.s32.totalorder %s10, 1
    %p116 = por %p114, %p115
    %p117 = scmp.ne.s32.totalorder %s109, %s112
    %p118 = scmp.eq.s32.totalorder %s10, 0
    %p119 = por %p117, %p118
    %p120 = scmp.ne.s32.totalorder %s109, %s112
    %p121 = scmp.eq.s32.totalorder %s15, 1
    %p122 = por %p120, %p121
    %p123 = scmp.ne.s32.totalorder %s112, %s113
    %p124 = scmp.eq.s32.totalorder %s15, 0
    %p125 = por %p123, %p124
    %p126 = scmp.ne.s32.totalorder %s112, %s113
    %p127 = scmp.eq.s32.totalorder %s16, 1
    %p128 = por %p126, %p127
    %p130 = scmp.ne.s32.totalorder %s113, %s129
    %p131 = scmp.eq.s32.totalorder %s16, 0
    %p132 = por %p130, %p131
    %p133 = scmp.le.s32.totalorder 1, %s10
    %p134 = scmp.lt.s32.totalorder %s10, 3
    %p135 = pnand %p133, %p134
    %p136 = pneg %p135
    // Predicated region
    $region9: #{_lambda_.8} parent=5 // pred_check
      _
    $region10: #{_lambda_.8} parent=5 // pred_check_branch
      %138 = sbr.rel (%p135) target = $region12
    $region11: #{_lambda_.8} parent=5 // pred_region
      %s139 = ssub.s32 %s10, 1
      // Predicated region
      $region13: #{_lambda_.8} parent=11 // pred_check
        %p140 = pneg %p57
      $region14: #{_lambda_.8} parent=11 // pred_check_branch
        %142 = sbr.rel (%p140) target = $region16
      $region15: #{_lambda_.8} parent=11 // pred_region
        _
      $region16: #{_lambda_.8} parent=11 // pred_fallthru
        _
      // Predicated region
      $region17: #{_lambda_.8} parent=11 // pred_check
        %p143 = pneg %p78
      $region18: #{_lambda_.8} parent=11 // pred_check_branch
        %145 = sbr.rel (%p143) target = $region20
      $region19: #{_lambda_.8} parent=11 // pred_region
        _
      $region20: #{_lambda_.8} parent=11 // pred_fallthru
        _
      // Predicated region
      $region21: #{_lambda_.8} parent=11 // pred_check
        %p146 = pneg %p99
      $region22: #{_lambda_.8} parent=11 // pred_check_branch
        %148 = sbr.rel (%p146) target = $region24
      $region23: #{_lambda_.8} parent=11 // pred_region
        _
      $region24: #{_lambda_.8} parent=11 // pred_fallthru
        _
    $region12: #{_lambda_.8} parent=5 // pred_fallthru
      _
    %p149 = scmp.lt.s32.totalorder %s10, 2
    // Predicated region
    $region25: #{_lambda_.8} parent=5 // pred_check
      %p150 = pneg %p149
    $region26: #{_lambda_.8} parent=5 // pred_check_branch
      %152 = sbr.rel (%p150) target = $region28
    $region27: #{_lambda_.8} parent=5 // pred_region
      // Predicated region
      $region29: #{_lambda_.8} parent=27 // pred_check
        %p153 = pneg %p30
      $region30: #{_lambda_.8} parent=27 // pred_check_branch
        %155 = sbr.rel (%p153) target = $region32
      $region31: #{_lambda_.8} parent=27 // pred_region
        %s156 = smul.u32 8, %s10
        %p157 = scmp.lt.s32.totalorder %s156, 15
        %s158 = scalar_select %p157, %s156, 15
        %s159 = smul.addr %s158, 4
        %s160 = scalar_lea.vmem %s0, %s159
        %s161 = smul.u32 8, %s10
      $region32: #{_lambda_.8} parent=27 // pred_fallthru
        _
    $region28: #{_lambda_.8} parent=5 // pred_fallthru
      _
    %p162 = scmp.le.s32.totalorder 1, %s10
    %p163 = scmp.lt.s32.totalorder %s10, 3
    %p164 = pnand %p162, %p163
    %p165 = pneg %p164
    // Predicated region
    $region33: #{_lambda_.8} parent=5 // pred_check
      _
    $region34: #{_lambda_.8} parent=5 // pred_check_branch
      %167 = sbr.rel (%p164) target = $region36
    $region35: #{_lambda_.8} parent=5 // pred_region
      %s168 = ssub.s32 %s10, 1
      %s169 = smul.u32 8, %s15
      %p170 = scmp.lt.s32.totalorder %s169, 15
      %s171 = scalar_select %p170, %s169, 15
      %s172 = smul.addr %s171, 4
      %s173 = scalar_lea.vmem %s0, %s172
      %p174 = pneg %p36
      %p175 = pneg %p33
      %p176 = pneg %p57
      %p177 = pneg %p54
      %p178 = pneg %p78
      %p179 = pneg %p75
      %p180 = pneg %p99
      %p181 = pneg %p96
      %p182 = pneg %p125
      %p183 = pneg %p122
      %s184 = smul.u32 8, %s15
      %p185 = scmp.lt.s32.totalorder %s184, 15
      %s186 = scalar_select %p185, %s184, 15
      %s187 = smul.addr %s186, 4
      %s188 = scalar_lea.vmem %s4, %s187
      %s189 = smul.u32 8, %s15
      %p190 = scmp.lt.s32.totalorder %s189, 15
      %s191 = scalar_select %p190, %s189, 15
      %s192 = smul.addr %s191, 4
      %s193 = scalar_lea.vmem %s0, %s192
      %s194 = smul.u32 8, %s15
      %s195 = smul.u32 8, %s15
      %p196 = scmp.lt.s32.totalorder %s195, 15
      %s197 = scalar_select %p196, %s195, 15
      %s198 = smul.addr %s197, 4
      %s199 = scalar_lea.vmem %s4, %s198
      %s200 = smul.u32 8, %s15
      %v202 = vld [vmem:[%s193] sm:$0xf]
      %v203 = vld [vmem:[%s193 + $0x4] sm:$0xf]
      %v204 = vld [vmem:[%s193 + $0x8] sm:$0xf]
      %v205 = vld [vmem:[%s193 + $0xc] sm:$0xf]
      %v206 = vld [vmem:[%s193 + $0x10] sm:$0xf]
      %v207 = vld [vmem:[%s193 + $0x14] sm:$0xf]
      %v208 = vld [vmem:[%s193 + $0x18] sm:$0xf]
      %v209 = vld [vmem:[%s193 + $0x1c] sm:$0xf]
      %v210 = vld [vmem:[%s1] sm:$0xf]
      %v211 = vld [vmem:[%s1 + $0x4] sm:$0xf]
      %v212 = vld [vmem:[%s1 + $0x8] sm:$0xf]
      %v213 = vld [vmem:[%s1 + $0xc] sm:$0xf]
      %v214 = vld [vmem:[%s1 + $0x10] sm:$0xf]
      %v215 = vld [vmem:[%s1 + $0x14] sm:$0xf]
      %v216 = vld [vmem:[%s1 + $0x18] sm:$0xf]
      %v217 = vld [vmem:[%s1 + $0x1c] sm:$0xf]
      %v218 = vld [vmem:[%s1 + $0x20] sm:$0xf]
      %v219 = vld [vmem:[%s1 + $0x24] sm:$0xf]
      %v220 = vld [vmem:[%s1 + $0x28] sm:$0xf]
      %v221 = vld [vmem:[%s1 + $0x2c] sm:$0xf]
      %v222 = vld [vmem:[%s1 + $0x30] sm:$0xf]
      %v223 = vld [vmem:[%s1 + $0x34] sm:$0xf]
      %v224 = vld [vmem:[%s1 + $0x38] sm:$0xf]
      %v225 = vld [vmem:[%s1 + $0x3c] sm:$0xf]
      %v234 = vunpack.c.l.b16 %v202
      %v235 = vunpack.c.l.b16 %v203
      %v236 = vunpack.c.l.b16 %v204
      %v237 = vunpack.c.l.b16 %v205
      %v238 = vunpack.c.l.b16 %v206
      %v239 = vunpack.c.l.b16 %v207
      %v240 = vunpack.c.l.b16 %v208
      %v241 = vunpack.c.l.b16 %v209
      %v242 = vpack.c.b16 %v235, %v234
      %v243 = vpack.c.b16 %v237, %v236
      %v244 = vpack.c.b16 %v239, %v238
      %v245 = vpack.c.b16 %v241, %v240
      %v266 = vunpack.c.l.b16 %v210
      %v267 = vunpack.c.l.b16 %v211
      %v268 = vunpack.c.l.b16 %v212
      %v269 = vunpack.c.l.b16 %v213
      %v270 = vunpack.c.l.b16 %v214
      %v271 = vunpack.c.l.b16 %v215
      %v272 = vunpack.c.l.b16 %v216
      %v273 = vunpack.c.l.b16 %v217
      %v274 = vunpack.c.l.b16 %v218
      %v275 = vunpack.c.l.b16 %v219
      %v276 = vunpack.c.l.b16 %v220
      %v277 = vunpack.c.l.b16 %v221
      %v278 = vunpack.c.l.b16 %v222
      %v279 = vunpack.c.l.b16 %v223
      %v280 = vunpack.c.l.b16 %v224
      %v281 = vunpack.c.l.b16 %v225
      %v282 = vpack.c.b16 %v267, %v266
      %v283 = vpack.c.b16 %v269, %v268
      %v284 = vpack.c.b16 %v271, %v270
      %v285 = vpack.c.b16 %v273, %v272
      %v286 = vpack.c.b16 %v275, %v274
      %v287 = vpack.c.b16 %v277, %v276
      %v288 = vpack.c.b16 %v279, %v278
      %v289 = vpack.c.b16 %v281, %v280
      %298 = vmatprep.subr.bf16.mxu0 0
      %299 = vmatpush1.bf16.msra.mxu0 %v282
      %300 = vmatprep.subr.bf16.mxu0 0
      %301 = vmatpush1.bf16.msra.mxu0 %v283
      %302 = vmatprep.subr.bf16.mxu0 0
      %303 = vmatpush1.bf16.msra.mxu0 %v284
      %304 = vmatprep.subr.bf16.mxu0 0
      %305 = vmatpush1.bf16.msra.mxu0 %v285
      %306 = vmatprep.subr.bf16.mxu0 0
      %307 = vmatpush1.bf16.msra.mxu0 %v286
      %308 = vmatprep.subr.bf16.mxu0 0
      %309 = vmatpush1.bf16.msra.mxu0 %v287
      %310 = vmatprep.subr.bf16.mxu0 0
      %311 = vmatpush1.bf16.msra.mxu0 %v288
      %312 = vmatprep.subr.bf16.mxu0 0
      %313 = vmatpush1.bf16.msra.mxu0 %v289
      %314 = vmatprep.subr.bf16.mxu0 0
      %315 = vmatpush1.bf16.msra.mxu0 0
      %316 = vmatprep.subr.bf16.mxu0 0
      %317 = vmatpush1.bf16.msra.mxu0 0
      %318 = vmatprep.subr.bf16.mxu0 0
      %319 = vmatpush1.bf16.msra.mxu0 0
      %320 = vmatprep.subr.bf16.mxu0 0
      %321 = vmatpush1.bf16.msra.mxu0 0
      %322 = vmatprep.subr.bf16.mxu0 0
      %323 = vmatpush1.bf16.msra.mxu0 0
      %324 = vmatprep.subr.bf16.mxu0 0
      %325 = vmatpush1.bf16.msra.mxu0 0
      %326 = vmatprep.subr.bf16.mxu0 0
      %327 = vmatpush1.bf16.msra.mxu0 0
      %328 = vmatprep.subr.bf16.mxu0 0
      %329 = vmatpush1.bf16.msra.mxu0 0
      %330 = vmatprep.mubr.bf16.mxu0 0
      %331 = vmatmul.mubr.bf16.gmra.mrb[0].mxu0 %v242
      %v332 = vpop.f32.mrb[0].mxu0
      %v333 = vadd.f32 0.0, %v332
      %v334 = vpop.f32.mrb[0].mxu0
      %v335 = vpop.f32.mrb[0].mxu0
      %v336 = vadd.f32 0.0, %v335
      %v337 = vpop.f32.mrb[0].mxu0
      %338 = vmatprep.mubr.bf16.mxu0 0
      %339 = vmatmul.mubr.bf16.gmra.mrb[0].mxu0 %v243
      %v340 = vpop.f32.mrb[0].mxu0
      %v341 = vadd.f32 0.0, %v340
      %v342 = vpop.f32.mrb[0].mxu0
      %v343 = vpop.f32.mrb[0].mxu0
      %v344 = vadd.f32 0.0, %v343
      %v345 = vpop.f32.mrb[0].mxu0
      %346 = vmatprep.mubr.bf16.mxu0 0
      %347 = vmatmul.mubr.bf16.gmra.mrb[0].mxu0 %v244
      %v348 = vpop.f32.mrb[0].mxu0
      %v349 = vadd.f32 0.0, %v348
      %v350 = vpop.f32.mrb[0].mxu0
      %v351 = vpop.f32.mrb[0].mxu0
      %v352 = vadd.f32 0.0, %v351
      %v353 = vpop.f32.mrb[0].mxu0
      %354 = vmatprep.mubr.bf16.mxu0 0
      %355 = vmatmul.mubr.bf16.gmra.mrb[0].mxu0 %v245
      %v356 = vpop.f32.mrb[0].mxu0
      %v357 = vadd.f32 0.0, %v356
      %v358 = vpop.f32.mrb[0].mxu0
      %v359 = vpop.f32.mrb[0].mxu0
      %v360 = vadd.f32 0.0, %v359
      %v361 = vpop.f32.mrb[0].mxu0
      %362 = vdwg.mxu0
      %v363 = vld [vmem:[%s2] sm:$0x1]
      %v365 = vlaneseq
      %v366 = vshrl.u32 %v365, 7
      %v367 = vsub.s32 0, %v366
      %v368 = vrot.slane %v363, %v367
      %v370 = vmul.f32 %v333, %v368
      %v371 = vmul.f32 %v336, %v368
      %v372 = vmul.f32 %v341, %v368
      %v373 = vmul.f32 %v344, %v368
      %v374 = vmul.f32 %v349, %v368
      %v375 = vmul.f32 %v352, %v368
      %v376 = vmul.f32 %v357, %v368
      %v377 = vmul.f32 %v360, %v368
      %v378 = vld [vmem:[%s3] sm:$0x1]
      %v380 = vlaneseq
      %v381 = vshrl.u32 %v380, 7
      %v382 = vsub.s32 0, %v381
      %v383 = vrot.slane %v378, %v382
      %v385 = vadd.f32 %v370, %v383
      %v386 = vadd.f32 %v371, %v383
      %v387 = vadd.f32 %v372, %v383
      %v388 = vadd.f32 %v373, %v383
      %v389 = vadd.f32 %v374, %v383
      %v390 = vadd.f32 %v375, %v383
      %v391 = vadd.f32 %v376, %v383
      %v392 = vadd.f32 %v377, %v383
      %v393 = vmax.f32 %v385, 0.0
      %v394 = vmax.f32 %v386, 0.0
      %v395 = vmax.f32 %v387, 0.0
      %v396 = vmax.f32 %v388, 0.0
      %v397 = vmax.f32 %v389, 0.0
      %v398 = vmax.f32 %v390, 0.0
      %v399 = vmax.f32 %v391, 0.0
      %v400 = vmax.f32 %v392, 0.0
      %v401 = vpack.c.bf16 %v394, %v393
      %v402 = vpack.c.bf16 %v396, %v395
      %v403 = vpack.c.bf16 %v398, %v397
      %v404 = vpack.c.bf16 %v400, %v399
      %v409 = vunpack.c.l.b16 %v401
      %v410 = vunpack.c.h.b16 %v401
      %v411 = vunpack.c.l.b16 %v402
      %v412 = vunpack.c.h.b16 %v402
      %v413 = vunpack.c.l.b16 %v403
      %v414 = vunpack.c.h.b16 %v403
      %v415 = vunpack.c.l.b16 %v404
      %v416 = vunpack.c.h.b16 %v404
      %v417 = vpack.c.b16 %v409, %v409
      %v418 = vpack.c.b16 %v410, %v410
      %v419 = vpack.c.b16 %v411, %v411
      %v420 = vpack.c.b16 %v412, %v412
      %v421 = vpack.c.b16 %v413, %v413
      %v422 = vpack.c.b16 %v414, %v414
      %v423 = vpack.c.b16 %v415, %v415
      %v424 = vpack.c.b16 %v416, %v416
      %vm433 = vcmask 257024
      %434 = vst.msk [vmem:[%s199] sm:$0xf] %vm433, %v417
      %435 = vst.msk [vmem:[%s199 + $0x4] sm:$0xf] %vm433, %v418
      %436 = vst.msk [vmem:[%s199 + $0x8] sm:$0xf] %vm433, %v419
      %437 = vst.msk [vmem:[%s199 + $0xc] sm:$0xf] %vm433, %v420
      %438 = vst.msk [vmem:[%s199 + $0x10] sm:$0xf] %vm433, %v421
      %439 = vst.msk [vmem:[%s199 + $0x14] sm:$0xf] %vm433, %v422
      %440 = vst.msk [vmem:[%s199 + $0x18] sm:$0xf] %vm433, %v423
      %441 = vst.msk [vmem:[%s199 + $0x1c] sm:$0xf] %vm433, %v424
      %s442 = smul.u32 8, %s15
      %p443 = scmp.lt.s32.totalorder %s442, 15
      %s444 = scalar_select %p443, %s442, 15
      %s445 = smul.addr %s444, 4
      %s446 = scalar_lea.vmem %s4, %s445
      // Predicated region
      $region37: #{_lambda_.8} parent=35 // pred_check
        %p447 = pneg %p122
      $region38: #{_lambda_.8} parent=35 // pred_check_branch
        %449 = sbr.rel (%p447) target = $region40
      $region39: #{_lambda_.8} parent=35 // pred_region
        %s450 = smul.u32 8, %s15
      $region40: #{_lambda_.8} parent=35 // pred_fallthru
        _
    $region36: #{_lambda_.8} parent=5 // pred_fallthru
      _
    %p451 = scmp.le.s32.totalorder 2, %s10
    // Predicated region
    $region41: #{_lambda_.8} parent=5 // pred_check
      %p452 = pneg %p451
    $region42: #{_lambda_.8} parent=5 // pred_check_branch
      %454 = sbr.rel (%p452) target = $region44
    $region43: #{_lambda_.8} parent=5 // pred_region
      %s455 = ssub.s32 %s10, 2
      // Predicated region
      $region45: #{_lambda_.8} parent=43 // pred_check
        %p456 = pneg %p128
      $region46: #{_lambda_.8} parent=43 // pred_check_branch
        %458 = sbr.rel (%p456) target = $region48
      $region47: #{_lambda_.8} parent=43 // pred_region
        %s459 = smul.u32 8, %s16
        %p460 = scmp.lt.s32.totalorder %s459, 15
        %s461 = scalar_select %p460, %s459, 15
        %s462 = smul.addr %s461, 4
        %s463 = scalar_lea.vmem %s4, %s462
      $region48: #{_lambda_.8} parent=43 // pred_fallthru
        _
    $region44: #{_lambda_.8} parent=5 // pred_fallthru
      _
  $region6: #{_lambda_.8} parent=0 // loop_footer
    %s14 = sadd.s32 1, %s10
  $region7: #{_lambda_.8} parent=0 // loop_footer_branch
    %9 = sbr.rel target = $region3
  $region8: #{_lambda_.8} parent=0 // loop_exit
    _

// kernel: _lambda_.9
$region0: #{_lambda_.9}
  #allocation0 [shape = 'u32[]', space=smem, size = 0x4, offset = 0x4, fixed_abs, tag = 'smem constant byte address 0x4 - core index']
  #allocation1 [shape = 'u32[144,128]{1,0:T(1,128)}', space=vmem, size = 0x12000, scoped, tag = 'internal scratch']
  %s0 = inlined_call_operand.vmem [shape: bf16[32,128], index: 0, kind: input, shape index: {}]
  %s1 = inlined_call_operand.vmem [shape: bf16[128,32], index: 1, kind: input, shape index: {}]
  %s2 = inlined_call_operand.vmem [shape: f32[1,32], index: 2, kind: input, shape index: {}]
  %s3 = inlined_call_operand.vmem [shape: f32[1,32], index: 3, kind: input, shape index: {}]
  %s4 = inlined_call_operand.vmem [shape: bf16[32,32], index: 4, kind: output, shape index: {}]
  %s5 = sld [smem:[#allocation0]]
  $region49: #{_lambda_.9} parent=0
    _
  %s7 = ssub.s32 1, %s5
  %s8 = scalar_select 0, %s7, %s5
  loop: start=0, step=1, limit=4
  $region2: #{_lambda_.9} parent=0 // loop_pre_header
    _
  $region3: #{_lambda_.9} parent=0 // loop_header
    %s10 = sphi 0, %s14
    %p11 = scmp.ge.s32.totalorder %s10, 4
    %s20 = sphi 0, %s22
    %s23 = sphi 0, %s20
    %s24 = sphi 0, %s23
    %s40 = sphi 0, %s24
    %s44 = sphi 0, %s44
    %s46 = sphi 0, %s44
    %s47 = sphi 0, %s46
    %s61 = sphi 0, %s47
    %s65 = sphi 0, %s65
    %s67 = sphi 0, %s65
    %s68 = sphi 0, %s67
    %s82 = sphi 0, %s68
    %s86 = sphi 0, %s86
    %s88 = sphi 0, %s86
    %s89 = sphi 0, %s88
    %s103 = sphi 0, %s89
    %s109 = sphi 0, %s111
    %s112 = sphi 0, %s109
    %s113 = sphi 0, %s112
    %s129 = sphi 0, %s113
  $region4: #{_lambda_.9} parent=0 // loop_header_branch
    %13 = sbr.rel (%p11) target = $region8
  $region5: #{_lambda_.9} parent=0 // loop_body
    %s15 = ssub.s32 %s10, 1
    %s16 = ssub.s32 %s10, 2
    %s17 = sadd.s32 %s10, 1
    %s18 = ssub.s32 %s10, %s17
    %p19 = scmp.eq.s32.totalorder %s18, 0
    %s21 = sadd.s32 %s20, 1
    %s22 = scalar_select %p19, %s20, %s21
    %p25 = pneg %p19
    %p26 = scmp.eq.s32.totalorder %s10, 1
    %p27 = por %p25, %p26
    %p28 = scmp.ne.s32.totalorder %s20, %s23
    %p29 = scmp.eq.s32.totalorder %s10, 0
    %p30 = por %p28, %p29
    %p31 = scmp.ne.s32.totalorder %s20, %s23
    %p32 = scmp.eq.s32.totalorder %s15, 1
    %p33 = por %p31, %p32
    %p34 = scmp.ne.s32.totalorder %s23, %s24
    %p35 = scmp.eq.s32.totalorder %s15, 0
    %p36 = por %p34, %p35
    %p37 = scmp.ne.s32.totalorder %s23, %s24
    %p38 = scmp.eq.s32.totalorder %s16, 1
    %p39 = por %p37, %p38
    %p41 = scmp.ne.s32.totalorder %s24, %s40
    %p42 = scmp.eq.s32.totalorder %s16, 0
    %p43 = por %p41, %p42
    %s45 = sadd.s32 %s44, 1
    %p48 = scmp.eq.s32.totalorder %s10, 1
    %p49 = scmp.ne.s32.totalorder %s44, %s46
    %p50 = scmp.eq.s32.totalorder %s10, 0
    %p51 = por %p49, %p50
    %p52 = scmp.ne.s32.totalorder %s44, %s46
    %p53 = scmp.eq.s32.totalorder %s15, 1
    %p54 = por %p52, %p53
    %p55 = scmp.ne.s32.totalorder %s46, %s47
    %p56 = scmp.eq.s32.totalorder %s15, 0
    %p57 = por %p55, %p56
    %p58 = scmp.ne.s32.totalorder %s46, %s47
    %p59 = scmp.eq.s32.totalorder %s16, 1
    %p60 = por %p58, %p59
    %p62 = scmp.ne.s32.totalorder %s47, %s61
    %p63 = scmp.eq.s32.totalorder %s16, 0
    %p64 = por %p62, %p63
    %s66 = sadd.s32 %s65, 1
    %p69 = scmp.eq.s32.totalorder %s10, 1
    %p70 = scmp.ne.s32.totalorder %s65, %s67
    %p71 = scmp.eq.s32.totalorder %s10, 0
    %p72 = por %p70, %p71
    %p73 = scmp.ne.s32.totalorder %s65, %s67
    %p74 = scmp.eq.s32.totalorder %s15, 1
    %p75 = por %p73, %p74
    %p76 = scmp.ne.s32.totalorder %s67, %s68
    %p77 = scmp.eq.s32.totalorder %s15, 0
    %p78 = por %p76, %p77
    %p79 = scmp.ne.s32.totalorder %s67, %s68
    %p80 = scmp.eq.s32.totalorder %s16, 1
    %p81 = por %p79, %p80
    %p83 = scmp.ne.s32.totalorder %s68, %s82
    %p84 = scmp.eq.s32.totalorder %s16, 0
    %p85 = por %p83, %p84
    %s87 = sadd.s32 %s86, 1
    %p90 = scmp.eq.s32.totalorder %s10, 1
    %p91 = scmp.ne.s32.totalorder %s86, %s88
    %p92 = scmp.eq.s32.totalorder %s10, 0
    %p93 = por %p91, %p92
    %p94 = scmp.ne.s32.totalorder %s86, %s88
    %p95 = scmp.eq.s32.totalorder %s15, 1
    %p96 = por %p94, %p95
    %p97 = scmp.ne.s32.totalorder %s88, %s89
    %p98 = scmp.eq.s32.totalorder %s15, 0
    %p99 = por %p97, %p98
    %p100 = scmp.ne.s32.totalorder %s88, %s89
    %p101 = scmp.eq.s32.totalorder %s16, 1
    %p102 = por %p100, %p101
    %p104 = scmp.ne.s32.totalorder %s89, %s103
    %p105 = scmp.eq.s32.totalorder %s16, 0
    %p106 = por %p104, %p105
    %s107 = ssub.s32 %s10, %s17
    %p108 = scmp.eq.s32.totalorder %s107, 0
    %s110 = sadd.s32 %s109, 1
    %s111 = scalar_select %p108, %s109, %s110
    %p114 = pneg %p108
    %p115 = scmp.eq.s32.totalorder %s10, 1
    %p116 = por %p114, %p115
    %p117 = scmp.ne.s32.totalorder %s109, %s112
    %p118 = scmp.eq.s32.totalorder %s10, 0
    %p119 = por %p117, %p118
    %p120 = scmp.ne.s32.totalorder %s109, %s112
    %p121 = scmp.eq.s32.totalorder %s15, 1
    %p122 = por %p120, %p121
    %p123 = scmp.ne.s32.totalorder %s112, %s113
    %p124 = scmp.eq.s32.totalorder %s15, 0
    %p125 = por %p123, %p124
    %p126 = scmp.ne.s32.totalorder %s112, %s113
    %p127 = scmp.eq.s32.totalorder %s16, 1
    %p128 = por %p126, %p127
    %p130 = scmp.ne.s32.totalorder %s113, %s129
    %p131 = scmp.eq.s32.totalorder %s16, 0
    %p132 = por %p130, %p131
    %p133 = scmp.le.s32.totalorder 1, %s10
    %p134 = scmp.lt.s32.totalorder %s10, 3
    %p135 = pnand %p133, %p134
    %p136 = pneg %p135
    // Predicated region
    $region9: #{_lambda_.9} parent=5 // pred_check
      _
    $region10: #{_lambda_.9} parent=5 // pred_check_branch
      %138 = sbr.rel (%p135) target = $region12
    $region11: #{_lambda_.9} parent=5 // pred_region
      %s139 = ssub.s32 %s10, 1
      // Predicated region
      $region13: #{_lambda_.9} parent=11 // pred_check
        %p140 = pneg %p57
      $region14: #{_lambda_.9} parent=11 // pred_check_branch
        %142 = sbr.rel (%p140) target = $region16
      $region15: #{_lambda_.9} parent=11 // pred_region
        _
      $region16: #{_lambda_.9} parent=11 // pred_fallthru
        _
      // Predicated region
      $region17: #{_lambda_.9} parent=11 // pred_check
        %p143 = pneg %p78
      $region18: #{_lambda_.9} parent=11 // pred_check_branch
        %145 = sbr.rel (%p143) target = $region20
      $region19: #{_lambda_.9} parent=11 // pred_region
        _
      $region20: #{_lambda_.9} parent=11 // pred_fallthru
        _
      // Predicated region
      $region21: #{_lambda_.9} parent=11 // pred_check
        %p146 = pneg %p99
      $region22: #{_lambda_.9} parent=11 // pred_check_branch
        %148 = sbr.rel (%p146) target = $region24
      $region23: #{_lambda_.9} parent=11 // pred_region
        _
      $region24: #{_lambda_.9} parent=11 // pred_fallthru
        _
    $region12: #{_lambda_.9} parent=5 // pred_fallthru
      _
    %p149 = scmp.lt.s32.totalorder %s10, 2
    // Predicated region
    $region25: #{_lambda_.9} parent=5 // pred_check
      %p150 = pneg %p149
    $region26: #{_lambda_.9} parent=5 // pred_check_branch
      %152 = sbr.rel (%p150) target = $region28
    $region27: #{_lambda_.9} parent=5 // pred_region
      // Predicated region
      $region29: #{_lambda_.9} parent=27 // pred_check
        %p153 = pneg %p30
      $region30: #{_lambda_.9} parent=27 // pred_check_branch
        %155 = sbr.rel (%p153) target = $region32
      $region31: #{_lambda_.9} parent=27 // pred_region
        %s156 = smul.u32 2, %s10
        %p157 = scmp.lt.s32.totalorder %s156, 3
        %s158 = scalar_select %p157, %s156, 3
        %s159 = smul.addr %s158, 4
        %s160 = scalar_lea.vmem %s0, %s159
        %s161 = smul.u32 2, %s10
      $region32: #{_lambda_.9} parent=27 // pred_fallthru
        _
    $region28: #{_lambda_.9} parent=5 // pred_fallthru
      _
    %p162 = scmp.le.s32.totalorder 1, %s10
    %p163 = scmp.lt.s32.totalorder %s10, 3
    %p164 = pnand %p162, %p163
    %p165 = pneg %p164
    // Predicated region
    $region33: #{_lambda_.9} parent=5 // pred_check
      _
    $region34: #{_lambda_.9} parent=5 // pred_check_branch
      %167 = sbr.rel (%p164) target = $region36
    $region35: #{_lambda_.9} parent=5 // pred_region
      %s168 = ssub.s32 %s10, 1
      %s169 = smul.u32 2, %s15
      %p170 = scmp.lt.s32.totalorder %s169, 3
      %s171 = scalar_select %p170, %s169, 3
      %s172 = smul.addr %s171, 4
      %s173 = scalar_lea.vmem %s0, %s172
      %p174 = pneg %p36
      %p175 = pneg %p33
      %p176 = pneg %p57
      %p177 = pneg %p54
      %p178 = pneg %p78
      %p179 = pneg %p75
      %p180 = pneg %p99
      %p181 = pneg %p96
      %p182 = pneg %p125
      %p183 = pneg %p122
      %s184 = smul.u32 2, %s15
      %p185 = scmp.lt.s32.totalorder %s184, 3
      %s186 = scalar_select %p185, %s184, 3
      %s187 = smul.addr %s186, 4
      %s188 = scalar_lea.vmem %s4, %s187
      %s189 = smul.u32 2, %s15
      %p190 = scmp.lt.s32.totalorder %s189, 3
      %s191 = scalar_select %p190, %s189, 3
      %s192 = smul.addr %s191, 4
      %s193 = scalar_lea.vmem %s0, %s192
      %s194 = smul.u32 2, %s15
      %s195 = smul.u32 2, %s15
      %p196 = scmp.lt.s32.totalorder %s195, 3
      %s197 = scalar_select %p196, %s195, 3
      %s198 = smul.addr %s197, 4
      %s199 = scalar_lea.vmem %s4, %s198
      %s200 = smul.u32 2, %s15
      %v202 = vld [vmem:[%s193] sm:$0xf]
      %v203 = vld [vmem:[%s193 + $0x4] sm:$0xf]
      %v204 = vld [vmem:[%s1] sm:$0xf]
      %v205 = vld [vmem:[%s1 + $0x4] sm:$0xf]
      %v206 = vld [vmem:[%s1 + $0x8] sm:$0xf]
      %v207 = vld [vmem:[%s1 + $0xc] sm:$0xf]
      %v208 = vld [vmem:[%s1 + $0x10] sm:$0xf]
      %v209 = vld [vmem:[%s1 + $0x14] sm:$0xf]
      %v210 = vld [vmem:[%s1 + $0x18] sm:$0xf]
      %v211 = vld [vmem:[%s1 + $0x1c] sm:$0xf]
      %v212 = vld [vmem:[%s1 + $0x20] sm:$0xf]
      %v213 = vld [vmem:[%s1 + $0x24] sm:$0xf]
      %v214 = vld [vmem:[%s1 + $0x28] sm:$0xf]
      %v215 = vld [vmem:[%s1 + $0x2c] sm:$0xf]
      %v216 = vld [vmem:[%s1 + $0x30] sm:$0xf]
      %v217 = vld [vmem:[%s1 + $0x34] sm:$0xf]
      %v218 = vld [vmem:[%s1 + $0x38] sm:$0xf]
      %v219 = vld [vmem:[%s1 + $0x3c] sm:$0xf]
      %v222 = vunpack.c.l.b16 %v202
      %v223 = vunpack.c.l.b16 %v203
      %v224 = vpack.c.b16 %v223, %v222
      %v242 = vunpack.c.l.b16 %v204
      %v243 = vunpack.c.l.b16 %v205
      %v244 = vunpack.c.l.b16 %v206
      %v245 = vunpack.c.l.b16 %v207
      %v246 = vunpack.c.l.b16 %v208
      %v247 = vunpack.c.l.b16 %v209
      %v248 = vunpack.c.l.b16 %v210
      %v249 = vunpack.c.l.b16 %v211
      %v250 = vunpack.c.l.b16 %v212
      %v251 = vunpack.c.l.b16 %v213
      %v252 = vunpack.c.l.b16 %v214
      %v253 = vunpack.c.l.b16 %v215
      %v254 = vunpack.c.l.b16 %v216
      %v255 = vunpack.c.l.b16 %v217
      %v256 = vunpack.c.l.b16 %v218
      %v257 = vunpack.c.l.b16 %v219
      %v258 = vpack.c.b16 %v243, %v242
      %v259 = vpack.c.b16 %v245, %v244
      %v260 = vpack.c.b16 %v247, %v246
      %v261 = vpack.c.b16 %v249, %v248
      %v262 = vpack.c.b16 %v251, %v250
      %v263 = vpack.c.b16 %v253, %v252
      %v264 = vpack.c.b16 %v255, %v254
      %v265 = vpack.c.b16 %v257, %v256
      %274 = vmatprep.subr.bf16.mxu0 0
      %275 = vmatpush1.bf16.msra.mxu0 %v258
      %276 = vmatprep.subr.bf16.mxu0 0
      %277 = vmatpush1.bf16.msra.mxu0 %v259
      %278 = vmatprep.subr.bf16.mxu0 0
      %279 = vmatpush1.bf16.msra.mxu0 %v260
      %280 = vmatprep.subr.bf16.mxu0 0
      %281 = vmatpush1.bf16.msra.mxu0 %v261
      %282 = vmatprep.subr.bf16.mxu0 0
      %283 = vmatpush1.bf16.msra.mxu0 %v262
      %284 = vmatprep.subr.bf16.mxu0 0
      %285 = vmatpush1.bf16.msra.mxu0 %v263
      %286 = vmatprep.subr.bf16.mxu0 0
      %287 = vmatpush1.bf16.msra.mxu0 %v264
      %288 = vmatprep.subr.bf16.mxu0 0
      %289 = vmatpush1.bf16.msra.mxu0 %v265
      %290 = vmatprep.subr.bf16.mxu0 0
      %291 = vmatpush1.bf16.msra.mxu0 0
      %292 = vmatprep.subr.bf16.mxu0 0
      %293 = vmatpush1.bf16.msra.mxu0 0
      %294 = vmatprep.subr.bf16.mxu0 0
      %295 = vmatpush1.bf16.msra.mxu0 0
      %296 = vmatprep.subr.bf16.mxu0 0
      %297 = vmatpush1.bf16.msra.mxu0 0
      %298 = vmatprep.subr.bf16.mxu0 0
      %299 = vmatpush1.bf16.msra.mxu0 0
      %300 = vmatprep.subr.bf16.mxu0 0
      %301 = vmatpush1.bf16.msra.mxu0 0
      %302 = vmatprep.subr.bf16.mxu0 0
      %303 = vmatpush1.bf16.msra.mxu0 0
      %304 = vmatprep.subr.bf16.mxu0 0
      %305 = vmatpush1.bf16.msra.mxu0 0
      %306 = vmatprep.mubr.bf16.mxu0 0
      %307 = vmatmul.mubr.bf16.gmra.mrb[0].mxu0 %v224
      %v308 = vpop.f32.mrb[0].mxu0
      %v309 = vadd.f32 0.0, %v308
      %v310 = vpop.f32.mrb[0].mxu0
      %v311 = vpop.f32.mrb[0].mxu0
      %v312 = vadd.f32 0.0, %v311
      %v313 = vpop.f32.mrb[0].mxu0
      %314 = vdwg.mxu0
      %v315 = vld [vmem:[%s2] sm:$0x1]
      %v317 = vlaneseq
      %v318 = vshrl.u32 %v317, 7
      %v319 = vsub.s32 0, %v318
      %v320 = vrot.slane %v315, %v319
      %v322 = vmul.f32 %v309, %v320
      %v323 = vmul.f32 %v312, %v320
      %v324 = vld [vmem:[%s3] sm:$0x1]
      %v326 = vlaneseq
      %v327 = vshrl.u32 %v326, 7
      %v328 = vsub.s32 0, %v327
      %v329 = vrot.slane %v324, %v328
      %v331 = vadd.f32 %v322, %v329
      %v332 = vadd.f32 %v323, %v329
      %v333 = vmax.f32 %v331, 0.0
      %v334 = vmax.f32 %v332, 0.0
      %v335 = vpack.c.bf16 %v334, %v333
      %v337 = vunpack.c.l.b16 %v335
      %v338 = vunpack.c.h.b16 %v335
      %v339 = vpack.c.b16 %v337, %v337
      %v340 = vpack.c.b16 %v338, %v338
      %vm343 = vcmask 257024
      %344 = vst.msk [vmem:[%s199] sm:$0xf] %vm343, %v339
      %345 = vst.msk [vmem:[%s199 + $0x4] sm:$0xf] %vm343, %v340
      %s346 = smul.u32 2, %s15
      %p347 = scmp.lt.s32.totalorder %s346, 3
      %s348 = scalar_select %p347, %s346, 3
      %s349 = smul.addr %s348, 4
      %s350 = scalar_lea.vmem %s4, %s349
      // Predicated region
      $region37: #{_lambda_.9} parent=35 // pred_check
        %p351 = pneg %p122
      $region38: #{_lambda_.9} parent=35 // pred_check_branch
        %353 = sbr.rel (%p351) target = $region40
      $region39: #{_lambda_.9} parent=35 // pred_region
        %s354 = smul.u32 2, %s15
      $region40: #{_lambda_.9} parent=35 // pred_fallthru
        _
    $region36: #{_lambda_.9} parent=5 // pred_fallthru
      _
    %p355 = scmp.le.s32.totalorder 2, %s10
    // Predicated region
    $region41: #{_lambda_.9} parent=5 // pred_check
      %p356 = pneg %p355
    $region42: #{_lambda_.9} parent=5 // pred_check_branch
      %358 = sbr.rel (%p356) target = $region44
    $region43: #{_lambda_.9} parent=5 // pred_region
      %s359 = ssub.s32 %s10, 2
      // Predicated region
      $region45: #{_lambda_.9} parent=43 // pred_check
        %p360 = pneg %p128
      $region46: #{_lambda_.9} parent=43 // pred_check_branch
        %362 = sbr.rel (%p360) target = $region48
      $region47: #{_lambda_.9} parent=43 // pred_region
        %s363 = smul.u32 2, %s16
        %p364 = scmp.lt.s32.totalorder %s363, 3
        %s365 = scalar_select %p364, %s363, 3
        %s366 = smul.addr %s365, 4
        %s367 = scalar_lea.vmem %s4, %s366
      $region48: #{_lambda_.9} parent=43 // pred_fallthru
        _
    $region44: #{_lambda_.9} parent=5 // pred_fallthru
      _
  $region6: #{_lambda_.9} parent=0 // loop_footer
    %s14 = sadd.s32 1, %s10
  $region7: #{_lambda_.9} parent=0 // loop_footer_branch
    %9 = sbr.rel target = $region3
  $region8: #{_lambda_.9} parent=0 // loop_exit
    _

// kernel: _lambda_.11
$region0: #{_lambda_.11}
  #allocation0 [shape = 'u32[]', space=smem, size = 0x4, offset = 0x4, fixed_abs, tag = 'smem constant byte address 0x4 - core index']
  #allocation1 [shape = 'u32[144,128]{1,0:T(1,128)}', space=vmem, size = 0x12000, scoped, tag = 'internal scratch']
  %s0 = inlined_call_operand.vmem [shape: bf16[32,32], index: 0, kind: input, shape index: {}]
  %s1 = inlined_call_operand.vmem [shape: bf16[32,128], index: 1, kind: input, shape index: {}]
  %s2 = inlined_call_operand.vmem [shape: f32[1,128], index: 2, kind: input, shape index: {}]
  %s3 = inlined_call_operand.vmem [shape: f32[1,128], index: 3, kind: input, shape index: {}]
  %s4 = inlined_call_operand.vmem [shape: bf16[32,128], index: 4, kind: output, shape index: {}]
  %s5 = sld [smem:[#allocation0]]
  $region49: #{_lambda_.11} parent=0
    _
  %s7 = ssub.s32 1, %s5
  %s8 = scalar_select 0, %s7, %s5
  loop: start=0, step=1, limit=4
  $region2: #{_lambda_.11} parent=0 // loop_pre_header
    _
  $region3: #{_lambda_.11} parent=0 // loop_header
    %s10 = sphi 0, %s14
    %p11 = scmp.ge.s32.totalorder %s10, 4
    %s20 = sphi 0, %s22
    %s23 = sphi 0, %s20
    %s24 = sphi 0, %s23
    %s40 = sphi 0, %s24
    %s44 = sphi 0, %s44
    %s46 = sphi 0, %s44
    %s47 = sphi 0, %s46
    %s61 = sphi 0, %s47
    %s65 = sphi 0, %s65
    %s67 = sphi 0, %s65
    %s68 = sphi 0, %s67
    %s82 = sphi 0, %s68
    %s86 = sphi 0, %s86
    %s88 = sphi 0, %s86
    %s89 = sphi 0, %s88
    %s103 = sphi 0, %s89
    %s109 = sphi 0, %s111
    %s112 = sphi 0, %s109
    %s113 = sphi 0, %s112
    %s129 = sphi 0, %s113
  $region4: #{_lambda_.11} parent=0 // loop_header_branch
    %13 = sbr.rel (%p11) target = $region8
  $region5: #{_lambda_.11} parent=0 // loop_body
    %s15 = ssub.s32 %s10, 1
    %s16 = ssub.s32 %s10, 2
    %s17 = sadd.s32 %s10, 1
    %s18 = ssub.s32 %s10, %s17
    %p19 = scmp.eq.s32.totalorder %s18, 0
    %s21 = sadd.s32 %s20, 1
    %s22 = scalar_select %p19, %s20, %s21
    %p25 = pneg %p19
    %p26 = scmp.eq.s32.totalorder %s10, 1
    %p27 = por %p25, %p26
    %p28 = scmp.ne.s32.totalorder %s20, %s23
    %p29 = scmp.eq.s32.totalorder %s10, 0
    %p30 = por %p28, %p29
    %p31 = scmp.ne.s32.totalorder %s20, %s23
    %p32 = scmp.eq.s32.totalorder %s15, 1
    %p33 = por %p31, %p32
    %p34 = scmp.ne.s32.totalorder %s23, %s24
    %p35 = scmp.eq.s32.totalorder %s15, 0
    %p36 = por %p34, %p35
    %p37 = scmp.ne.s32.totalorder %s23, %s24
    %p38 = scmp.eq.s32.totalorder %s16, 1
    %p39 = por %p37, %p38
    %p41 = scmp.ne.s32.totalorder %s24, %s40
    %p42 = scmp.eq.s32.totalorder %s16, 0
    %p43 = por %p41, %p42
    %s45 = sadd.s32 %s44, 1
    %p48 = scmp.eq.s32.totalorder %s10, 1
    %p49 = scmp.ne.s32.totalorder %s44, %s46
    %p50 = scmp.eq.s32.totalorder %s10, 0
    %p51 = por %p49, %p50
    %p52 = scmp.ne.s32.totalorder %s44, %s46
    %p53 = scmp.eq.s32.totalorder %s15, 1
    %p54 = por %p52, %p53
    %p55 = scmp.ne.s32.totalorder %s46, %s47
    %p56 = scmp.eq.s32.totalorder %s15, 0
    %p57 = por %p55, %p56
    %p58 = scmp.ne.s32.totalorder %s46, %s47
    %p59 = scmp.eq.s32.totalorder %s16, 1
    %p60 = por %p58, %p59
    %p62 = scmp.ne.s32.totalorder %s47, %s61
    %p63 = scmp.eq.s32.totalorder %s16, 0
    %p64 = por %p62, %p63
    %s66 = sadd.s32 %s65, 1
    %p69 = scmp.eq.s32.totalorder %s10, 1
    %p70 = scmp.ne.s32.totalorder %s65, %s67
    %p71 = scmp.eq.s32.totalorder %s10, 0
    %p72 = por %p70, %p71
    %p73 = scmp.ne.s32.totalorder %s65, %s67
    %p74 = scmp.eq.s32.totalorder %s15, 1
    %p75 = por %p73, %p74
    %p76 = scmp.ne.s32.totalorder %s67, %s68
    %p77 = scmp.eq.s32.totalorder %s15, 0
    %p78 = por %p76, %p77
    %p79 = scmp.ne.s32.totalorder %s67, %s68
    %p80 = scmp.eq.s32.totalorder %s16, 1
    %p81 = por %p79, %p80
    %p83 = scmp.ne.s32.totalorder %s68, %s82
    %p84 = scmp.eq.s32.totalorder %s16, 0
    %p85 = por %p83, %p84
    %s87 = sadd.s32 %s86, 1
    %p90 = scmp.eq.s32.totalorder %s10, 1
    %p91 = scmp.ne.s32.totalorder %s86, %s88
    %p92 = scmp.eq.s32.totalorder %s10, 0
    %p93 = por %p91, %p92
    %p94 = scmp.ne.s32.totalorder %s86, %s88
    %p95 = scmp.eq.s32.totalorder %s15, 1
    %p96 = por %p94, %p95
    %p97 = scmp.ne.s32.totalorder %s88, %s89
    %p98 = scmp.eq.s32.totalorder %s15, 0
    %p99 = por %p97, %p98
    %p100 = scmp.ne.s32.totalorder %s88, %s89
    %p101 = scmp.eq.s32.totalorder %s16, 1
    %p102 = por %p100, %p101
    %p104 = scmp.ne.s32.totalorder %s89, %s103
    %p105 = scmp.eq.s32.totalorder %s16, 0
    %p106 = por %p104, %p105
    %s107 = ssub.s32 %s10, %s17
    %p108 = scmp.eq.s32.totalorder %s107, 0
    %s110 = sadd.s32 %s109, 1
    %s111 = scalar_select %p108, %s109, %s110
    %p114 = pneg %p108
    %p115 = scmp.eq.s32.totalorder %s10, 1
    %p116 = por %p114, %p115
    %p117 = scmp.ne.s32.totalorder %s109, %s112
    %p118 = scmp.eq.s32.totalorder %s10, 0
    %p119 = por %p117, %p118
    %p120 = scmp.ne.s32.totalorder %s109, %s112
    %p121 = scmp.eq.s32.totalorder %s15, 1
    %p122 = por %p120, %p121
    %p123 = scmp.ne.s32.totalorder %s112, %s113
    %p124 = scmp.eq.s32.totalorder %s15, 0
    %p125 = por %p123, %p124
    %p126 = scmp.ne.s32.totalorder %s112, %s113
    %p127 = scmp.eq.s32.totalorder %s16, 1
    %p128 = por %p126, %p127
    %p130 = scmp.ne.s32.totalorder %s113, %s129
    %p131 = scmp.eq.s32.totalorder %s16, 0
    %p132 = por %p130, %p131
    %p133 = scmp.le.s32.totalorder 1, %s10
    %p134 = scmp.lt.s32.totalorder %s10, 3
    %p135 = pnand %p133, %p134
    %p136 = pneg %p135
    // Predicated region
    $region9: #{_lambda_.11} parent=5 // pred_check
      _
    $region10: #{_lambda_.11} parent=5 // pred_check_branch
      %138 = sbr.rel (%p135) target = $region12
    $region11: #{_lambda_.11} parent=5 // pred_region
      %s139 = ssub.s32 %s10, 1
      // Predicated region
      $region13: #{_lambda_.11} parent=11 // pred_check
        %p140 = pneg %p57
      $region14: #{_lambda_.11} parent=11 // pred_check_branch
        %142 = sbr.rel (%p140) target = $region16
      $region15: #{_lambda_.11} parent=11 // pred_region
        _
      $region16: #{_lambda_.11} parent=11 // pred_fallthru
        _
      // Predicated region
      $region17: #{_lambda_.11} parent=11 // pred_check
        %p143 = pneg %p78
      $region18: #{_lambda_.11} parent=11 // pred_check_branch
        %145 = sbr.rel (%p143) target = $region20
      $region19: #{_lambda_.11} parent=11 // pred_region
        _
      $region20: #{_lambda_.11} parent=11 // pred_fallthru
        _
      // Predicated region
      $region21: #{_lambda_.11} parent=11 // pred_check
        %p146 = pneg %p99
      $region22: #{_lambda_.11} parent=11 // pred_check_branch
        %148 = sbr.rel (%p146) target = $region24
      $region23: #{_lambda_.11} parent=11 // pred_region
        _
      $region24: #{_lambda_.11} parent=11 // pred_fallthru
        _
    $region12: #{_lambda_.11} parent=5 // pred_fallthru
      _
    %p149 = scmp.lt.s32.totalorder %s10, 2
    // Predicated region
    $region25: #{_lambda_.11} parent=5 // pred_check
      %p150 = pneg %p149
    $region26: #{_lambda_.11} parent=5 // pred_check_branch
      %152 = sbr.rel (%p150) target = $region28
    $region27: #{_lambda_.11} parent=5 // pred_region
      // Predicated region
      $region29: #{_lambda_.11} parent=27 // pred_check
        %p153 = pneg %p30
      $region30: #{_lambda_.11} parent=27 // pred_check_branch
        %155 = sbr.rel (%p153) target = $region32
      $region31: #{_lambda_.11} parent=27 // pred_region
        %s156 = smul.u32 2, %s10
        %p157 = scmp.lt.s32.totalorder %s156, 3
        %s158 = scalar_select %p157, %s156, 3
        %s159 = smul.addr %s158, 4
        %s160 = scalar_lea.vmem %s0, %s159
        %s161 = smul.u32 2, %s10
      $region32: #{_lambda_.11} parent=27 // pred_fallthru
        _
    $region28: #{_lambda_.11} parent=5 // pred_fallthru
      _
    %p162 = scmp.le.s32.totalorder 1, %s10
    %p163 = scmp.lt.s32.totalorder %s10, 3
    %p164 = pnand %p162, %p163
    %p165 = pneg %p164
    // Predicated region
    $region33: #{_lambda_.11} parent=5 // pred_check
      _
    $region34: #{_lambda_.11} parent=5 // pred_check_branch
      %167 = sbr.rel (%p164) target = $region36
    $region35: #{_lambda_.11} parent=5 // pred_region
      %s168 = ssub.s32 %s10, 1
      %s169 = smul.u32 2, %s15
      %p170 = scmp.lt.s32.totalorder %s169, 3
      %s171 = scalar_select %p170, %s169, 3
      %s172 = smul.addr %s171, 4
      %s173 = scalar_lea.vmem %s0, %s172
      %p174 = pneg %p36
      %p175 = pneg %p33
      %p176 = pneg %p57
      %p177 = pneg %p54
      %p178 = pneg %p78
      %p179 = pneg %p75
      %p180 = pneg %p99
      %p181 = pneg %p96
      %p182 = pneg %p125
      %p183 = pneg %p122
      %s184 = smul.u32 2, %s15
      %p185 = scmp.lt.s32.totalorder %s184, 3
      %s186 = scalar_select %p185, %s184, 3
      %s187 = smul.addr %s186, 4
      %s188 = scalar_lea.vmem %s4, %s187
      %s189 = smul.u32 2, %s15
      %p190 = scmp.lt.s32.totalorder %s189, 3
      %s191 = scalar_select %p190, %s189, 3
      %s192 = smul.addr %s191, 4
      %s193 = scalar_lea.vmem %s0, %s192
      %s194 = smul.u32 2, %s15
      %s195 = smul.u32 2, %s15
      %p196 = scmp.lt.s32.totalorder %s195, 3
      %s197 = scalar_select %p196, %s195, 3
      %s198 = smul.addr %s197, 4
      %s199 = scalar_lea.vmem %s4, %s198
      %s200 = smul.u32 2, %s15
      %v202 = vld [vmem:[%s193] sm:$0xf]
      %v203 = vld [vmem:[%s193 + $0x4] sm:$0xf]
      %v204 = vld [vmem:[%s1] sm:$0xf]
      %v205 = vld [vmem:[%s1 + $0x4] sm:$0xf]
      %v206 = vld [vmem:[%s1 + $0x8] sm:$0xf]
      %v207 = vld [vmem:[%s1 + $0xc] sm:$0xf]
      %v210 = vunpack.c.l.b16 %v202
      %v211 = vunpack.c.l.b16 %v203
      %v212 = vpack.c.b16 %v211, %v210
      %v217 = vunpack.c.l.b16 %v204
      %v218 = vunpack.c.l.b16 %v205
      %v219 = vunpack.c.l.b16 %v206
      %v220 = vunpack.c.l.b16 %v207
      %v221 = vpack.c.b16 %v218, %v217
      %v222 = vpack.c.b16 %v220, %v219
      %vm225 = vcmask 261120
      %v227 = vsel %vm225, %v212, 0
      %229 = vmatprep.subr.bf16.mxu0 0
      %230 = vmatpush1.bf16.msra.mxu0 %v221
      %231 = vmatprep.subr.bf16.mxu0 0
      %232 = vmatpush1.bf16.msra.mxu0 %v222
      %233 = vmatprep.subr.bf16.mxu0 0
      %234 = vmatpush1.bf16.msra.mxu0 0
      %235 = vmatprep.subr.bf16.mxu0 0
      %236 = vmatpush1.bf16.msra.mxu0 0
      %237 = vmatprep.subr.bf16.mxu0 0
      %238 = vmatpush1.bf16.msra.mxu0 0
      %239 = vmatprep.subr.bf16.mxu0 0
      %240 = vmatpush1.bf16.msra.mxu0 0
      %241 = vmatprep.subr.bf16.mxu0 0
      %242 = vmatpush1.bf16.msra.mxu0 0
      %243 = vmatprep.subr.bf16.mxu0 0
      %244 = vmatpush1.bf16.msra.mxu0 0
      %245 = vmatprep.subr.bf16.mxu0 0
      %246 = vmatpush1.bf16.msra.mxu0 0
      %247 = vmatprep.subr.bf16.mxu0 0
      %248 = vmatpush1.bf16.msra.mxu0 0
      %249 = vmatprep.subr.bf16.mxu0 0
      %250 = vmatpush1.bf16.msra.mxu0 0
      %251 = vmatprep.subr.bf16.mxu0 0
      %252 = vmatpush1.bf16.msra.mxu0 0
      %253 = vmatprep.subr.bf16.mxu0 0
      %254 = vmatpush1.bf16.msra.mxu0 0
      %255 = vmatprep.subr.bf16.mxu0 0
      %256 = vmatpush1.bf16.msra.mxu0 0
      %257 = vmatprep.subr.bf16.mxu0 0
      %258 = vmatpush1.bf16.msra.mxu0 0
      %259 = vmatprep.subr.bf16.mxu0 0
      %260 = vmatpush1.bf16.msra.mxu0 0
      %261 = vmatprep.mubr.bf16.mxu0 0
      %262 = vmatmul.mubr.bf16.gmra.mrb[0].mxu0 %v227
      %v263 = vpop.f32.mrb[0].mxu0
      %v264 = vadd.f32 0.0, %v263
      %v265 = vpop.f32.mrb[0].mxu0
      %v266 = vpop.f32.mrb[0].mxu0
      %v267 = vadd.f32 0.0, %v266
      %v268 = vpop.f32.mrb[0].mxu0
      %269 = vdwg.mxu0
      %v270 = vld [vmem:[%s2] sm:$0x1]
      %v272 = vlaneseq
      %v273 = vshrl.u32 %v272, 7
      %v274 = vsub.s32 0, %v273
      %v275 = vrot.slane %v270, %v274
      %v277 = vmul.f32 %v264, %v275
      %v278 = vmul.f32 %v267, %v275
      %v279 = vld [vmem:[%s3] sm:$0x1]
      %v281 = vlaneseq
      %v282 = vshrl.u32 %v281, 7
      %v283 = vsub.s32 0, %v282
      %v284 = vrot.slane %v279, %v283
      %v286 = vadd.f32 %v277, %v284
      %v287 = vadd.f32 %v278, %v284
      %v288 = vmax.f32 %v286, 0.0
      %v289 = vmax.f32 %v287, 0.0
      %v290 = vpack.c.bf16 %v289, %v288
      %v292 = vunpack.c.l.b16 %v290
      %v293 = vunpack.c.h.b16 %v290
      %v294 = vpack.c.b16 %v292, %v292
      %v295 = vpack.c.b16 %v293, %v293
      %298 = vst [vmem:[%s199] sm:$0xf] %v294
      %299 = vst [vmem:[%s199 + $0x4] sm:$0xf] %v295
      %s300 = smul.u32 2, %s15
      %p301 = scmp.lt.s32.totalorder %s300, 3
      %s302 = scalar_select %p301, %s300, 3
      %s303 = smul.addr %s302, 4
      %s304 = scalar_lea.vmem %s4, %s303
      // Predicated region
      $region37: #{_lambda_.11} parent=35 // pred_check
        %p305 = pneg %p122
      $region38: #{_lambda_.11} parent=35 // pred_check_branch
        %307 = sbr.rel (%p305) target = $region40
      $region39: #{_lambda_.11} parent=35 // pred_region
        %s308 = smul.u32 2, %s15
      $region40: #{_lambda_.11} parent=35 // pred_fallthru
        _
    $region36: #{_lambda_.11} parent=5 // pred_fallthru
      _
    %p309 = scmp.le.s32.totalorder 2, %s10
    // Predicated region
    $region41: #{_lambda_.11} parent=5 // pred_check
      %p310 = pneg %p309
    $region42: #{_lambda_.11} parent=5 // pred_check_branch
      %312 = sbr.rel (%p310) target = $region44
    $region43: #{_lambda_.11} parent=5 // pred_region
      %s313 = ssub.s32 %s10, 2
      // Predicated region
      $region45: #{_lambda_.11} parent=43 // pred_check
        %p314 = pneg %p128
      $region46: #{_lambda_.11} parent=43 // pred_check_branch
        %316 = sbr.rel (%p314) target = $region48
      $region47: #{_lambda_.11} parent=43 // pred_region
        %s317 = smul.u32 2, %s16
        %p318 = scmp.lt.s32.totalorder %s317, 3
        %s319 = scalar_select %p318, %s317, 3
        %s320 = smul.addr %s319, 4
        %s321 = scalar_lea.vmem %s4, %s320
      $region48: #{_lambda_.11} parent=43 // pred_fallthru
        _
    $region44: #{_lambda_.11} parent=5 // pred_fallthru
      _
  $region6: #{_lambda_.11} parent=0 // loop_footer
    %s14 = sadd.s32 1, %s10
  $region7: #{_lambda_.11} parent=0 // loop_footer_branch
    %9 = sbr.rel target = $region3
  $region8: #{_lambda_.11} parent=0 // loop_exit
    _

// kernel: _lambda_.10
$region0: #{_lambda_.10}
  #allocation0 [shape = 'u32[]', space=smem, size = 0x4, offset = 0x4, fixed_abs, tag = 'smem constant byte address 0x4 - core index']
  #allocation1 [shape = 'u32[144,128]{1,0:T(1,128)}', space=vmem, size = 0x12000, scoped, tag = 'internal scratch']
  %s0 = inlined_call_operand.vmem [shape: bf16[8,4,32], index: 0, kind: input, shape index: {}]
  %s1 = inlined_call_operand.vmem [shape: bf16[32,52], index: 1, kind: input, shape index: {}]
  %s2 = inlined_call_operand.vmem [shape: f32[1,52], index: 2, kind: input, shape index: {}]
  %s3 = inlined_call_operand.vmem [shape: bf16[8,4,32], index: 3, kind: output, shape index: {}]
  %s4 = sld [smem:[#allocation0]]
  $region45: #{_lambda_.10} parent=0
    _
  %s6 = ssub.s32 1, %s4
  %s7 = scalar_select 0, %s6, %s4
  loop: start=0, step=1, limit=4
  $region2: #{_lambda_.10} parent=0 // loop_pre_header
    _
  $region3: #{_lambda_.10} parent=0 // loop_header
    %s9 = sphi 0, %s13
    %p10 = scmp.ge.s32.totalorder %s9, 4
    %s19 = sphi 0, %s21
    %s22 = sphi 0, %s19
    %s23 = sphi 0, %s22
    %s39 = sphi 0, %s23
    %s43 = sphi 0, %s43
    %s45 = sphi 0, %s43
    %s46 = sphi 0, %s45
    %s60 = sphi 0, %s46
    %s64 = sphi 0, %s64
    %s66 = sphi 0, %s64
    %s67 = sphi 0, %s66
    %s81 = sphi 0, %s67
    %s87 = sphi 0, %s89
    %s90 = sphi 0, %s87
    %s91 = sphi 0, %s90
    %s107 = sphi 0, %s91
  $region4: #{_lambda_.10} parent=0 // loop_header_branch
    %12 = sbr.rel (%p10) target = $region8
  $region5: #{_lambda_.10} parent=0 // loop_body
    %s14 = ssub.s32 %s9, 1
    %s15 = ssub.s32 %s9, 2
    %s16 = sadd.s32 %s9, 1
    %s17 = ssub.s32 %s9, %s16
    %p18 = scmp.eq.s32.totalorder %s17, 0
    %s20 = sadd.s32 %s19, 1
    %s21 = scalar_select %p18, %s19, %s20
    %p24 = pneg %p18
    %p25 = scmp.eq.s32.totalorder %s9, 1
    %p26 = por %p24, %p25
    %p27 = scmp.ne.s32.totalorder %s19, %s22
    %p28 = scmp.eq.s32.totalorder %s9, 0
    %p29 = por %p27, %p28
    %p30 = scmp.ne.s32.totalorder %s19, %s22
    %p31 = scmp.eq.s32.totalorder %s14, 1
    %p32 = por %p30, %p31
    %p33 = scmp.ne.s32.totalorder %s22, %s23
    %p34 = scmp.eq.s32.totalorder %s14, 0
    %p35 = por %p33, %p34
    %p36 = scmp.ne.s32.totalorder %s22, %s23
    %p37 = scmp.eq.s32.totalorder %s15, 1
    %p38 = por %p36, %p37
    %p40 = scmp.ne.s32.totalorder %s23, %s39
    %p41 = scmp.eq.s32.totalorder %s15, 0
    %p42 = por %p40, %p41
    %s44 = sadd.s32 %s43, 1
    %p47 = scmp.eq.s32.totalorder %s9, 1
    %p48 = scmp.ne.s32.totalorder %s43, %s45
    %p49 = scmp.eq.s32.totalorder %s9, 0
    %p50 = por %p48, %p49
    %p51 = scmp.ne.s32.totalorder %s43, %s45
    %p52 = scmp.eq.s32.totalorder %s14, 1
    %p53 = por %p51, %p52
    %p54 = scmp.ne.s32.totalorder %s45, %s46
    %p55 = scmp.eq.s32.totalorder %s14, 0
    %p56 = por %p54, %p55
    %p57 = scmp.ne.s32.totalorder %s45, %s46
    %p58 = scmp.eq.s32.totalorder %s15, 1
    %p59 = por %p57, %p58
    %p61 = scmp.ne.s32.totalorder %s46, %s60
    %p62 = scmp.eq.s32.totalorder %s15, 0
    %p63 = por %p61, %p62
    %s65 = sadd.s32 %s64, 1
    %p68 = scmp.eq.s32.totalorder %s9, 1
    %p69 = scmp.ne.s32.totalorder %s64, %s66
    %p70 = scmp.eq.s32.totalorder %s9, 0
    %p71 = por %p69, %p70
    %p72 = scmp.ne.s32.totalorder %s64, %s66
    %p73 = scmp.eq.s32.totalorder %s14, 1
    %p74 = por %p72, %p73
    %p75 = scmp.ne.s32.totalorder %s66, %s67
    %p76 = scmp.eq.s32.totalorder %s14, 0
    %p77 = por %p75, %p76
    %p78 = scmp.ne.s32.totalorder %s66, %s67
    %p79 = scmp.eq.s32.totalorder %s15, 1
    %p80 = por %p78, %p79
    %p82 = scmp.ne.s32.totalorder %s67, %s81
    %p83 = scmp.eq.s32.totalorder %s15, 0
    %p84 = por %p82, %p83
    %s85 = ssub.s32 %s9, %s16
    %p86 = scmp.eq.s32.totalorder %s85, 0
    %s88 = sadd.s32 %s87, 1
    %s89 = scalar_select %p86, %s87, %s88
    %p92 = pneg %p86
    %p93 = scmp.eq.s32.totalorder %s9, 1
    %p94 = por %p92, %p93
    %p95 = scmp.ne.s32.totalorder %s87, %s90
    %p96 = scmp.eq.s32.totalorder %s9, 0
    %p97 = por %p95, %p96
    %p98 = scmp.ne.s32.totalorder %s87, %s90
    %p99 = scmp.eq.s32.totalorder %s14, 1
    %p100 = por %p98, %p99
    %p101 = scmp.ne.s32.totalorder %s90, %s91
    %p102 = scmp.eq.s32.totalorder %s14, 0
    %p103 = por %p101, %p102
    %p104 = scmp.ne.s32.totalorder %s90, %s91
    %p105 = scmp.eq.s32.totalorder %s15, 1
    %p106 = por %p104, %p105
    %p108 = scmp.ne.s32.totalorder %s91, %s107
    %p109 = scmp.eq.s32.totalorder %s15, 0
    %p110 = por %p108, %p109
    %p111 = scmp.le.s32.totalorder 1, %s9
    %p112 = scmp.lt.s32.totalorder %s9, 3
    %p113 = pnand %p111, %p112
    %p114 = pneg %p113
    // Predicated region
    $region9: #{_lambda_.10} parent=5 // pred_check
      _
    $region10: #{_lambda_.10} parent=5 // pred_check_branch
      %116 = sbr.rel (%p113) target = $region12
    $region11: #{_lambda_.10} parent=5 // pred_region
      %s117 = ssub.s32 %s9, 1
      // Predicated region
      $region13: #{_lambda_.10} parent=11 // pred_check
        %p118 = pneg %p56
      $region14: #{_lambda_.10} parent=11 // pred_check_branch
        %120 = sbr.rel (%p118) target = $region16
      $region15: #{_lambda_.10} parent=11 // pred_region
        _
      $region16: #{_lambda_.10} parent=11 // pred_fallthru
        _
      // Predicated region
      $region17: #{_lambda_.10} parent=11 // pred_check
        %p121 = pneg %p77
      $region18: #{_lambda_.10} parent=11 // pred_check_branch
        %123 = sbr.rel (%p121) target = $region20
      $region19: #{_lambda_.10} parent=11 // pred_region
        _
      $region20: #{_lambda_.10} parent=11 // pred_fallthru
        _
    $region12: #{_lambda_.10} parent=5 // pred_fallthru
      _
    %p124 = scmp.lt.s32.totalorder %s9, 2
    // Predicated region
    $region21: #{_lambda_.10} parent=5 // pred_check
      %p125 = pneg %p124
    $region22: #{_lambda_.10} parent=5 // pred_check_branch
      %127 = sbr.rel (%p125) target = $region24
    $region23: #{_lambda_.10} parent=5 // pred_region
      // Predicated region
      $region25: #{_lambda_.10} parent=23 // pred_check
        %p128 = pneg %p29
      $region26: #{_lambda_.10} parent=23 // pred_check_branch
        %130 = sbr.rel (%p128) target = $region28
      $region27: #{_lambda_.10} parent=23 // pred_region
        %s131 = smul.u32 4, %s9
        %p132 = scmp.lt.s32.totalorder %s131, 7
        %s133 = scalar_select %p132, %s131, 7
        %s134 = smul.addr %s133, 2
        %s135 = scalar_lea.vmem %s0, %s134
        %s136 = smul.u32 4, %s9
      $region28: #{_lambda_.10} parent=23 // pred_fallthru
        _
    $region24: #{_lambda_.10} parent=5 // pred_fallthru
      _
    %p137 = scmp.le.s32.totalorder 1, %s9
    %p138 = scmp.lt.s32.totalorder %s9, 3
    %p139 = pnand %p137, %p138
    %p140 = pneg %p139
    // Predicated region
    $region29: #{_lambda_.10} parent=5 // pred_check
      _
    $region30: #{_lambda_.10} parent=5 // pred_check_branch
      %142 = sbr.rel (%p139) target = $region32
    $region31: #{_lambda_.10} parent=5 // pred_region
      %s143 = ssub.s32 %s9, 1
      %s144 = smul.u32 4, %s14
      %p145 = scmp.lt.s32.totalorder %s144, 7
      %s146 = scalar_select %p145, %s144, 7
      %s147 = smul.addr %s146, 2
      %s148 = scalar_lea.vmem %s0, %s147
      %p149 = pneg %p35
      %p150 = pneg %p32
      %p151 = pneg %p56
      %p152 = pneg %p53
      %p153 = pneg %p77
      %p154 = pneg %p74
      %p155 = pneg %p103
      %p156 = pneg %p100
      %s157 = smul.u32 4, %s14
      %p158 = scmp.lt.s32.totalorder %s157, 7
      %s159 = scalar_select %p158, %s157, 7
      %s160 = smul.addr %s159, 2
      %s161 = scalar_lea.vmem %s3, %s160
      %s162 = smul.u32 4, %s14
      %p163 = scmp.lt.s32.totalorder %s162, 7
      %s164 = scalar_select %p163, %s162, 7
      %s165 = smul.addr %s164, 2
      %s166 = scalar_lea.vmem %s0, %s165
      %s167 = smul.u32 4, %s14
      %s168 = smul.u32 4, %s14
      %p169 = scmp.lt.s32.totalorder %s168, 7
      %s170 = scalar_select %p169, %s168, 7
      %s171 = smul.addr %s170, 2
      %s172 = scalar_lea.vmem %s3, %s171
      %s173 = smul.u32 4, %s14
      %v175 = vld [vmem:[%s166] sm:$0x3]
      %v176 = vld [vmem:[%s166 + $0x2] sm:$0x3]
      %v177 = vld [vmem:[%s166 + $0x4] sm:$0x3]
      %v178 = vld [vmem:[%s166 + $0x6] sm:$0x3]
      %v179 = vld [vmem:[%s1] sm:$0xf]
      %v180 = vld [vmem:[%s1 + $0x4] sm:$0xf]
      %v181 = vld [vmem:[%s1 + $0x8] sm:$0xf]
      %v182 = vld [vmem:[%s1 + $0xc] sm:$0xf]
      %v183 = vld [vmem:[%s2] sm:$0x1]
      %v185 = vlaneseq
      %v186 = vshrl.u32 %v185, 7
      %v187 = vsub.s32 0, %v186
      %v188 = vrot.slane %v183, %v187
      %v194 = vunpack.c.l.b16 %v179
      %v195 = vunpack.c.l.b16 %v180
      %v196 = vunpack.c.l.b16 %v181
      %v197 = vunpack.c.l.b16 %v182
      %v198 = vpack.c.b16 %v195, %v194
      %v199 = vpack.c.b16 %v197, %v196
      %vm202 = vcmask 261120
      %v204 = vsel %vm202, %v175, 0
      %206 = vmatprep.subr.bf16.mxu0 0
      %207 = vmatpush1.bf16.msra.mxu0 %v198
      %208 = vmatprep.subr.bf16.mxu0 0
      %209 = vmatpush1.bf16.msra.mxu0 %v199
      %210 = vmatprep.subr.bf16.mxu0 0
      %211 = vmatpush1.bf16.msra.mxu0 0
      %212 = vmatprep.subr.bf16.mxu0 0
      %213 = vmatpush1.bf16.msra.mxu0 0
      %214 = vmatprep.subr.bf16.mxu0 0
      %215 = vmatpush1.bf16.msra.mxu0 0
      %216 = vmatprep.subr.bf16.mxu0 0
      %217 = vmatpush1.bf16.msra.mxu0 0
      %218 = vmatprep.subr.bf16.mxu0 0
      %219 = vmatpush1.bf16.msra.mxu0 0
      %220 = vmatprep.subr.bf16.mxu0 0
      %221 = vmatpush1.bf16.msra.mxu0 0
      %222 = vmatprep.subr.bf16.mxu0 0
      %223 = vmatpush1.bf16.msra.mxu0 0
      %224 = vmatprep.subr.bf16.mxu0 0
      %225 = vmatpush1.bf16.msra.mxu0 0
      %226 = vmatprep.subr.bf16.mxu0 0
      %227 = vmatpush1.bf16.msra.mxu0 0
      %228 = vmatprep.subr.bf16.mxu0 0
      %229 = vmatpush1.bf16.msra.mxu0 0
      %230 = vmatprep.subr.bf16.mxu0 0
      %231 = vmatpush1.bf16.msra.mxu0 0
      %232 = vmatprep.subr.bf16.mxu0 0
      %233 = vmatpush1.bf16.msra.mxu0 0
      %234 = vmatprep.subr.bf16.mxu0 0
      %235 = vmatpush1.bf16.msra.mxu0 0
      %236 = vmatprep.subr.bf16.mxu0 0
      %237 = vmatpush1.bf16.msra.mxu0 0
      %238 = vmatprep.mubr.bf16.mxu0 0
      %239 = vmatmul.mubr.bf16.gmra.mrb[0].mxu0 %v204
      %v240 = vpop.f32.mrb[0].mxu0
      %v241 = vadd.f32 %v188, %v240
      %v242 = vpop.f32.mrb[0].mxu0
      %v243 = vpop.f32.mrb[0].mxu0
      %v244 = vpop.f32.mrb[0].mxu0
      %245 = vdwg.mxu0
      %v247 = vsel %vm202, %v176, 0
      %249 = vmatprep.subr.bf16.mxu0 0
      %250 = vmatpush1.bf16.msra.mxu0 %v198
      %251 = vmatprep.subr.bf16.mxu0 0
      %252 = vmatpush1.bf16.msra.mxu0 %v199
      %253 = vmatprep.subr.bf16.mxu0 0
      %254 = vmatpush1.bf16.msra.mxu0 0
      %255 = vmatprep.subr.bf16.mxu0 0
      %256 = vmatpush1.bf16.msra.mxu0 0
      %257 = vmatprep.subr.bf16.mxu0 0
      %258 = vmatpush1.bf16.msra.mxu0 0
      %259 = vmatprep.subr.bf16.mxu0 0
      %260 = vmatpush1.bf16.msra.mxu0 0
      %261 = vmatprep.subr.bf16.mxu0 0
      %262 = vmatpush1.bf16.msra.mxu0 0
      %263 = vmatprep.subr.bf16.mxu0 0
      %264 = vmatpush1.bf16.msra.mxu0 0
      %265 = vmatprep.subr.bf16.mxu0 0
      %266 = vmatpush1.bf16.msra.mxu0 0
      %267 = vmatprep.subr.bf16.mxu0 0
      %268 = vmatpush1.bf16.msra.mxu0 0
      %269 = vmatprep.subr.bf16.mxu0 0
      %270 = vmatpush1.bf16.msra.mxu0 0
      %271 = vmatprep.subr.bf16.mxu0 0
      %272 = vmatpush1.bf16.msra.mxu0 0
      %273 = vmatprep.subr.bf16.mxu0 0
      %274 = vmatpush1.bf16.msra.mxu0 0
      %275 = vmatprep.subr.bf16.mxu0 0
      %276 = vmatpush1.bf16.msra.mxu0 0
      %277 = vmatprep.subr.bf16.mxu0 0
      %278 = vmatpush1.bf16.msra.mxu0 0
      %279 = vmatprep.subr.bf16.mxu0 0
      %280 = vmatpush1.bf16.msra.mxu0 0
      %281 = vmatprep.mubr.bf16.mxu0 0
      %282 = vmatmul.mubr.bf16.gmra.mrb[0].mxu0 %v247
      %v283 = vpop.f32.mrb[0].mxu0
      %v284 = vadd.f32 %v188, %v283
      %v285 = vpop.f32.mrb[0].mxu0
      %v286 = vpop.f32.mrb[0].mxu0
      %v287 = vpop.f32.mrb[0].mxu0
      %288 = vdwg.mxu0
      %v290 = vsel %vm202, %v177, 0
      %292 = vmatprep.subr.bf16.mxu0 0
      %293 = vmatpush1.bf16.msra.mxu0 %v198
      %294 = vmatprep.subr.bf16.mxu0 0
      %295 = vmatpush1.bf16.msra.mxu0 %v199
      %296 = vmatprep.subr.bf16.mxu0 0
      %297 = vmatpush1.bf16.msra.mxu0 0
      %298 = vmatprep.subr.bf16.mxu0 0
      %299 = vmatpush1.bf16.msra.mxu0 0
      %300 = vmatprep.subr.bf16.mxu0 0
      %301 = vmatpush1.bf16.msra.mxu0 0
      %302 = vmatprep.subr.bf16.mxu0 0
      %303 = vmatpush1.bf16.msra.mxu0 0
      %304 = vmatprep.subr.bf16.mxu0 0
      %305 = vmatpush1.bf16.msra.mxu0 0
      %306 = vmatprep.subr.bf16.mxu0 0
      %307 = vmatpush1.bf16.msra.mxu0 0
      %308 = vmatprep.subr.bf16.mxu0 0
      %309 = vmatpush1.bf16.msra.mxu0 0
      %310 = vmatprep.subr.bf16.mxu0 0
      %311 = vmatpush1.bf16.msra.mxu0 0
      %312 = vmatprep.subr.bf16.mxu0 0
      %313 = vmatpush1.bf16.msra.mxu0 0
      %314 = vmatprep.subr.bf16.mxu0 0
      %315 = vmatpush1.bf16.msra.mxu0 0
      %316 = vmatprep.subr.bf16.mxu0 0
      %317 = vmatpush1.bf16.msra.mxu0 0
      %318 = vmatprep.subr.bf16.mxu0 0
      %319 = vmatpush1.bf16.msra.mxu0 0
      %320 = vmatprep.subr.bf16.mxu0 0
      %321 = vmatpush1.bf16.msra.mxu0 0
      %322 = vmatprep.subr.bf16.mxu0 0
      %323 = vmatpush1.bf16.msra.mxu0 0
      %324 = vmatprep.mubr.bf16.mxu0 0
      %325 = vmatmul.mubr.bf16.gmra.mrb[0].mxu0 %v290
      %v326 = vpop.f32.mrb[0].mxu0
      %v327 = vadd.f32 %v188, %v326
      %v328 = vpop.f32.mrb[0].mxu0
      %v329 = vpop.f32.mrb[0].mxu0
      %v330 = vpop.f32.mrb[0].mxu0
      %331 = vdwg.mxu0
      %v333 = vsel %vm202, %v178, 0
      %335 = vmatprep.subr.bf16.mxu0 0
      %336 = vmatpush1.bf16.msra.mxu0 %v198
      %337 = vmatprep.subr.bf16.mxu0 0
      %338 = vmatpush1.bf16.msra.mxu0 %v199
      %339 = vmatprep.subr.bf16.mxu0 0
      %340 = vmatpush1.bf16.msra.mxu0 0
      %341 = vmatprep.subr.bf16.mxu0 0
      %342 = vmatpush1.bf16.msra.mxu0 0
      %343 = vmatprep.subr.bf16.mxu0 0
      %344 = vmatpush1.bf16.msra.mxu0 0
      %345 = vmatprep.subr.bf16.mxu0 0
      %346 = vmatpush1.bf16.msra.mxu0 0
      %347 = vmatprep.subr.bf16.mxu0 0
      %348 = vmatpush1.bf16.msra.mxu0 0
      %349 = vmatprep.subr.bf16.mxu0 0
      %350 = vmatpush1.bf16.msra.mxu0 0
      %351 = vmatprep.subr.bf16.mxu0 0
      %352 = vmatpush1.bf16.msra.mxu0 0
      %353 = vmatprep.subr.bf16.mxu0 0
      %354 = vmatpush1.bf16.msra.mxu0 0
      %355 = vmatprep.subr.bf16.mxu0 0
      %356 = vmatpush1.bf16.msra.mxu0 0
      %357 = vmatprep.subr.bf16.mxu0 0
      %358 = vmatpush1.bf16.msra.mxu0 0
      %359 = vmatprep.subr.bf16.mxu0 0
      %360 = vmatpush1.bf16.msra.mxu0 0
      %361 = vmatprep.subr.bf16.mxu0 0
      %362 = vmatpush1.bf16.msra.mxu0 0
      %363 = vmatprep.subr.bf16.mxu0 0
      %364 = vmatpush1.bf16.msra.mxu0 0
      %365 = vmatprep.subr.bf16.mxu0 0
      %366 = vmatpush1.bf16.msra.mxu0 0
      %367 = vmatprep.mubr.bf16.mxu0 0
      %368 = vmatmul.mubr.bf16.gmra.mrb[0].mxu0 %v333
      %v369 = vpop.f32.mrb[0].mxu0
      %v370 = vadd.f32 %v188, %v369
      %v371 = vpop.f32.mrb[0].mxu0
      %v372 = vpop.f32.mrb[0].mxu0
      %v373 = vpop.f32.mrb[0].mxu0
      %374 = vdwg.mxu0
      %v375 = vpack.c.bf16 %v241, %v241
      %v376 = vpack.c.bf16 %v284, %v284
      %v377 = vpack.c.bf16 %v327, %v327
      %v378 = vpack.c.bf16 %v370, %v370
      %380 = vrot.lane.b32.xlu0 %v375, 118
      %v381 = vpop.permute.xlu0 %380
      %vm382 = vcmask 80896
      %v384 = vsel %vm382, %v375, 0
      %v387 = vsel %vm382, %v381, 0
      %389 = vmatprep.subr.bf16.mxu0 0
      %390 = vmatpush1.bf16.xpose.msra.mxu0 %v387
      %391 = vmatprep.subr.bf16.mxu0 0
      %392 = vmatpush1.bf16.xpose.msra.mxu0 0
      %393 = vmatprep.subr.bf16.mxu0 0
      %394 = vmatpush1.bf16.xpose.msra.mxu0 0
      %395 = vmatprep.subr.bf16.mxu0 0
      %396 = vmatpush1.bf16.xpose.msra.mxu0 0
      %397 = vmatprep.subr.bf16.mxu0 0
      %398 = vmatpush1.bf16.xpose.msra.mxu0 0
      %399 = vmatprep.subr.bf16.mxu0 0
      %400 = vmatpush1.bf16.xpose.msra.mxu0 0
      %401 = vmatprep.subr.bf16.mxu0 0
      %402 = vmatpush1.bf16.xpose.msra.mxu0 0
      %403 = vmatprep.subr.bf16.mxu0 0
      %404 = vmatpush1.bf16.xpose.msra.mxu0 0
      %405 = vmatprep.subr.bf16.mxu0 0
      %406 = vmatpush1.bf16.xpose.msra.mxu0 0
      %407 = vmatprep.subr.bf16.mxu0 0
      %408 = vmatpush1.bf16.xpose.msra.mxu0 0
      %409 = vmatprep.subr.bf16.mxu0 0
      %410 = vmatpush1.bf16.xpose.msra.mxu0 0
      %411 = vmatprep.subr.bf16.mxu0 0
      %412 = vmatpush1.bf16.xpose.msra.mxu0 0
      %413 = vmatprep.subr.bf16.mxu0 0
      %414 = vmatpush1.bf16.xpose.msra.mxu0 0
      %415 = vmatprep.subr.bf16.mxu0 0
      %416 = vmatpush1.bf16.xpose.msra.mxu0 0
      %417 = vmatprep.subr.bf16.mxu0 0
      %418 = vmatpush1.bf16.xpose.msra.mxu0 0
      %419 = vmatprep.subr.bf16.mxu0 0
      %420 = vmatpush1.bf16.xpose.msra.mxu0 0
      %421 = vmatprep.mubr.bf16.mxu0 0
      %422 = vmatmul.mubr.bf16.gmra.mrb[0].mxu0 %v384
      %v423 = vpop.f32.mrb[0].mxu0
      %v424 = vadd.f32 0.0, %v423
      %v425 = vpop.f32.mrb[0].mxu0
      %v426 = vpop.f32.mrb[0].mxu0
      %v427 = vpop.f32.mrb[0].mxu0
      %428 = vdwg.mxu0
      %430 = vrot.lane.b32.xlu0 %v376, 118
      %v431 = vpop.permute.xlu0 %430
      %v433 = vsel %vm382, %v376, 0
      %v436 = vsel %vm382, %v431, 0
      %438 = vmatprep.subr.bf16.mxu0 0
      %439 = vmatpush1.bf16.xpose.msra.mxu0 %v436
      %440 = vmatprep.subr.bf16.mxu0 0
      %441 = vmatpush1.bf16.xpose.msra.mxu0 0
      %442 = vmatprep.subr.bf16.mxu0 0
      %443 = vmatpush1.bf16.xpose.msra.mxu0 0
      %444 = vmatprep.subr.bf16.mxu0 0
      %445 = vmatpush1.bf16.xpose.msra.mxu0 0
      %446 = vmatprep.subr.bf16.mxu0 0
      %447 = vmatpush1.bf16.xpose.msra.mxu0 0
      %448 = vmatprep.subr.bf16.mxu0 0
      %449 = vmatpush1.bf16.xpose.msra.mxu0 0
      %450 = vmatprep.subr.bf16.mxu0 0
      %451 = vmatpush1.bf16.xpose.msra.mxu0 0
      %452 = vmatprep.subr.bf16.mxu0 0
      %453 = vmatpush1.bf16.xpose.msra.mxu0 0
      %454 = vmatprep.subr.bf16.mxu0 0
      %455 = vmatpush1.bf16.xpose.msra.mxu0 0
      %456 = vmatprep.subr.bf16.mxu0 0
      %457 = vmatpush1.bf16.xpose.msra.mxu0 0
      %458 = vmatprep.subr.bf16.mxu0 0
      %459 = vmatpush1.bf16.xpose.msra.mxu0 0
      %460 = vmatprep.subr.bf16.mxu0 0
      %461 = vmatpush1.bf16.xpose.msra.mxu0 0
      %462 = vmatprep.subr.bf16.mxu0 0
      %463 = vmatpush1.bf16.xpose.msra.mxu0 0
      %464 = vmatprep.subr.bf16.mxu0 0
      %465 = vmatpush1.bf16.xpose.msra.mxu0 0
      %466 = vmatprep.subr.bf16.mxu0 0
      %467 = vmatpush1.bf16.xpose.msra.mxu0 0
      %468 = vmatprep.subr.bf16.mxu0 0
      %469 = vmatpush1.bf16.xpose.msra.mxu0 0
      %470 = vmatprep.mubr.bf16.mxu0 0
      %471 = vmatmul.mubr.bf16.gmra.mrb[0].mxu0 %v433
      %v472 = vpop.f32.mrb[0].mxu0
      %v473 = vadd.f32 0.0, %v472
      %v474 = vpop.f32.mrb[0].mxu0
      %v475 = vpop.f32.mrb[0].mxu0
      %v476 = vpop.f32.mrb[0].mxu0
      %477 = vdwg.mxu0
      %479 = vrot.lane.b32.xlu0 %v377, 118
      %v480 = vpop.permute.xlu0 %479
      %v482 = vsel %vm382, %v377, 0
      %v485 = vsel %vm382, %v480, 0
      %487 = vmatprep.subr.bf16.mxu0 0
      %488 = vmatpush1.bf16.xpose.msra.mxu0 %v485
      %489 = vmatprep.subr.bf16.mxu0 0
      %490 = vmatpush1.bf16.xpose.msra.mxu0 0
      %491 = vmatprep.subr.bf16.mxu0 0
      %492 = vmatpush1.bf16.xpose.msra.mxu0 0
      %493 = vmatprep.subr.bf16.mxu0 0
      %494 = vmatpush1.bf16.xpose.msra.mxu0 0
      %495 = vmatprep.subr.bf16.mxu0 0
      %496 = vmatpush1.bf16.xpose.msra.mxu0 0
      %497 = vmatprep.subr.bf16.mxu0 0
      %498 = vmatpush1.bf16.xpose.msra.mxu0 0
      %499 = vmatprep.subr.bf16.mxu0 0
      %500 = vmatpush1.bf16.xpose.msra.mxu0 0
      %501 = vmatprep.subr.bf16.mxu0 0
      %502 = vmatpush1.bf16.xpose.msra.mxu0 0
      %503 = vmatprep.subr.bf16.mxu0 0
      %504 = vmatpush1.bf16.xpose.msra.mxu0 0
      %505 = vmatprep.subr.bf16.mxu0 0
      %506 = vmatpush1.bf16.xpose.msra.mxu0 0
      %507 = vmatprep.subr.bf16.mxu0 0
      %508 = vmatpush1.bf16.xpose.msra.mxu0 0
      %509 = vmatprep.subr.bf16.mxu0 0
      %510 = vmatpush1.bf16.xpose.msra.mxu0 0
      %511 = vmatprep.subr.bf16.mxu0 0
      %512 = vmatpush1.bf16.xpose.msra.mxu0 0
      %513 = vmatprep.subr.bf16.mxu0 0
      %514 = vmatpush1.bf16.xpose.msra.mxu0 0
      %515 = vmatprep.subr.bf16.mxu0 0
      %516 = vmatpush1.bf16.xpose.msra.mxu0 0
      %517 = vmatprep.subr.bf16.mxu0 0
      %518 = vmatpush1.bf16.xpose.msra.mxu0 0
      %519 = vmatprep.mubr.bf16.mxu0 0
      %520 = vmatmul.mubr.bf16.gmra.mrb[0].mxu0 %v482
      %v521 = vpop.f32.mrb[0].mxu0
      %v522 = vadd.f32 0.0, %v521
      %v523 = vpop.f32.mrb[0].mxu0
      %v524 = vpop.f32.mrb[0].mxu0
      %v525 = vpop.f32.mrb[0].mxu0
      %526 = vdwg.mxu0
      %528 = vrot.lane.b32.xlu0 %v378, 118
      %v529 = vpop.permute.xlu0 %528
      %v531 = vsel %vm382, %v378, 0
      %v534 = vsel %vm382, %v529, 0
      %536 = vmatprep.subr.bf16.mxu0 0
      %537 = vmatpush1.bf16.xpose.msra.mxu0 %v534
      %538 = vmatprep.subr.bf16.mxu0 0
      %539 = vmatpush1.bf16.xpose.msra.mxu0 0
      %540 = vmatprep.subr.bf16.mxu0 0
      %541 = vmatpush1.bf16.xpose.msra.mxu0 0
      %542 = vmatprep.subr.bf16.mxu0 0
      %543 = vmatpush1.bf16.xpose.msra.mxu0 0
      %544 = vmatprep.subr.bf16.mxu0 0
      %545 = vmatpush1.bf16.xpose.msra.mxu0 0
      %546 = vmatprep.subr.bf16.mxu0 0
      %547 = vmatpush1.bf16.xpose.msra.mxu0 0
      %548 = vmatprep.subr.bf16.mxu0 0
      %549 = vmatpush1.bf16.xpose.msra.mxu0 0
      %550 = vmatprep.subr.bf16.mxu0 0
      %551 = vmatpush1.bf16.xpose.msra.mxu0 0
      %552 = vmatprep.subr.bf16.mxu0 0
      %553 = vmatpush1.bf16.xpose.msra.mxu0 0
      %554 = vmatprep.subr.bf16.mxu0 0
      %555 = vmatpush1.bf16.xpose.msra.mxu0 0
      %556 = vmatprep.subr.bf16.mxu0 0
      %557 = vmatpush1.bf16.xpose.msra.mxu0 0
      %558 = vmatprep.subr.bf16.mxu0 0
      %559 = vmatpush1.bf16.xpose.msra.mxu0 0
      %560 = vmatprep.subr.bf16.mxu0 0
      %561 = vmatpush1.bf16.xpose.msra.mxu0 0
      %562 = vmatprep.subr.bf16.mxu0 0
      %563 = vmatpush1.bf16.xpose.msra.mxu0 0
      %564 = vmatprep.subr.bf16.mxu0 0
      %565 = vmatpush1.bf16.xpose.msra.mxu0 0
      %566 = vmatprep.subr.bf16.mxu0 0
      %567 = vmatpush1.bf16.xpose.msra.mxu0 0
      %568 = vmatprep.mubr.bf16.mxu0 0
      %569 = vmatmul.mubr.bf16.gmra.mrb[0].mxu0 %v531
      %v570 = vpop.f32.mrb[0].mxu0
      %v571 = vadd.f32 0.0, %v570
      %v572 = vpop.f32.mrb[0].mxu0
      %v573 = vpop.f32.mrb[0].mxu0
      %v574 = vpop.f32.mrb[0].mxu0
      %575 = vdwg.mxu0
      %v576 = vmul.f32 %v424, 0.31622776
      %v577 = vmul.f32 %v473, 0.31622776
      %v578 = vmul.f32 %v522, 0.31622776
      %v579 = vmul.f32 %v571, 0.31622776
      %vm580 = vcmask 27648
      %v581 = vsel %vm580, %v576, -inf
      %582 = vmax.xlane.f32.xlu0 %v581
      %v583 = vpop.xlane.xlu0 %582
      %v584 = vsel %vm580, %v577, -inf
      %585 = vmax.xlane.f32.xlu0 %v584
      %v586 = vpop.xlane.xlu0 %585
      %v587 = vsel %vm580, %v578, -inf
      %588 = vmax.xlane.f32.xlu0 %v587
      %v589 = vpop.xlane.xlu0 %588
      %v590 = vsel %vm580, %v579, -inf
      %591 = vmax.xlane.f32.xlu0 %v590
      %v592 = vpop.xlane.xlu0 %591
      %v593 = vsub.f32 %v576, %v583
      %v594 = vsub.f32 %v577, %v586
      %v595 = vsub.f32 %v578, %v589
      %v596 = vsub.f32 %v579, %v592
      %v597 = vmul.f32 %v593, 1.442695
      %v598 = vpow.pop %v597
      %v599 = vmul.f32 %v594, 1.442695
      %v600 = vpow.pop %v599
      %v601 = vmul.f32 %v595, 1.442695
      %v602 = vpow.pop %v601
      %v603 = vmul.f32 %v596, 1.442695
      %v604 = vpow.pop %v603
      %v605 = vsel %vm580, %v598, 0.0
      %606 = vadd.xlane.f32.xlu0 %v605
      %v607 = vpop.xlane.xlu0 %606
      %v608 = vsel %vm580, %v600, 0.0
      %609 = vadd.xlane.f32.xlu0 %v608
      %v610 = vpop.xlane.xlu0 %609
      %v611 = vsel %vm580, %v602, 0.0
      %612 = vadd.xlane.f32.xlu0 %v611
      %v613 = vpop.xlane.xlu0 %612
      %v614 = vsel %vm580, %v604, 0.0
      %615 = vadd.xlane.f32.xlu0 %v614
      %v616 = vpop.xlane.xlu0 %615
      %v617 = vrcp.pop %v607
      %v618 = vrcp.pop %v610
      %v619 = vrcp.pop %v613
      %v620 = vrcp.pop %v616
      %v621 = vmul.f32 %v598, %v617
      %v622 = vmul.f32 %v600, %v618
      %v623 = vmul.f32 %v602, %v619
      %v624 = vmul.f32 %v604, %v620
      %v625 = vpack.c.bf16 %v621, %v621
      %v626 = vpack.c.bf16 %v622, %v622
      %v627 = vpack.c.bf16 %v623, %v623
      %v628 = vpack.c.bf16 %v624, %v624
      %629 = vrot.lane.b32.xlu0 %v375, 108
      %v630 = vpop.permute.xlu0 %629
      %vm631 = vcmask 31744
      %v633 = vsel %vm631, %v625, 0
      %vm635 = vcmask 1041408
      %v637 = vsel %vm635, %v630, 0
      %639 = vmatprep.subr.bf16.mxu0 0
      %640 = vmatpush1.bf16.msra.mxu0 %v637
      %641 = vmatprep.subr.bf16.mxu0 0
      %642 = vmatpush1.bf16.msra.mxu0 0
      %643 = vmatprep.subr.bf16.mxu0 0
      %644 = vmatpush1.bf16.msra.mxu0 0
      %645 = vmatprep.subr.bf16.mxu0 0
      %646 = vmatpush1.bf16.msra.mxu0 0
      %647 = vmatprep.subr.bf16.mxu0 0
      %648 = vmatpush1.bf16.msra.mxu0 0
      %649 = vmatprep.subr.bf16.mxu0 0
      %650 = vmatpush1.bf16.msra.mxu0 0
      %651 = vmatprep.subr.bf16.mxu0 0
      %652 = vmatpush1.bf16.msra.mxu0 0
      %653 = vmatprep.subr.bf16.mxu0 0
      %654 = vmatpush1.bf16.msra.mxu0 0
      %655 = vmatprep.subr.bf16.mxu0 0
      %656 = vmatpush1.bf16.msra.mxu0 0
      %657 = vmatprep.subr.bf16.mxu0 0
      %658 = vmatpush1.bf16.msra.mxu0 0
      %659 = vmatprep.subr.bf16.mxu0 0
      %660 = vmatpush1.bf16.msra.mxu0 0
      %661 = vmatprep.subr.bf16.mxu0 0
      %662 = vmatpush1.bf16.msra.mxu0 0
      %663 = vmatprep.subr.bf16.mxu0 0
      %664 = vmatpush1.bf16.msra.mxu0 0
      %665 = vmatprep.subr.bf16.mxu0 0
      %666 = vmatpush1.bf16.msra.mxu0 0
      %667 = vmatprep.subr.bf16.mxu0 0
      %668 = vmatpush1.bf16.msra.mxu0 0
      %669 = vmatprep.subr.bf16.mxu0 0
      %670 = vmatpush1.bf16.msra.mxu0 0
      %671 = vmatprep.mubr.bf16.mxu0 0
      %672 = vmatmul.mubr.bf16.gmra.mrb[0].mxu0 %v633
      %v673 = vpop.f32.mrb[0].mxu0
      %v674 = vadd.f32 0.0, %v673
      %v675 = vpop.f32.mrb[0].mxu0
      %v676 = vpop.f32.mrb[0].mxu0
      %v677 = vpop.f32.mrb[0].mxu0
      %678 = vdwg.mxu0
      %679 = vrot.lane.b32.xlu0 %v376, 108
      %v680 = vpop.permute.xlu0 %679
      %v682 = vsel %vm631, %v626, 0
      %v685 = vsel %vm635, %v680, 0
      %687 = vmatprep.subr.bf16.mxu0 0
      %688 = vmatpush1.bf16.msra.mxu0 %v685
      %689 = vmatprep.subr.bf16.mxu0 0
      %690 = vmatpush1.bf16.msra.mxu0 0
      %691 = vmatprep.subr.bf16.mxu0 0
      %692 = vmatpush1.bf16.msra.mxu0 0
      %693 = vmatprep.subr.bf16.mxu0 0
      %694 = vmatpush1.bf16.msra.mxu0 0
      %695 = vmatprep.subr.bf16.mxu0 0
      %696 = vmatpush1.bf16.msra.mxu0 0
      %697 = vmatprep.subr.bf16.mxu0 0
      %698 = vmatpush1.bf16.msra.mxu0 0
      %699 = vmatprep.subr.bf16.mxu0 0
      %700 = vmatpush1.bf16.msra.mxu0 0
      %701 = vmatprep.subr.bf16.mxu0 0
      %702 = vmatpush1.bf16.msra.mxu0 0
      %703 = vmatprep.subr.bf16.mxu0 0
      %704 = vmatpush1.bf16.msra.mxu0 0
      %705 = vmatprep.subr.bf16.mxu0 0
      %706 = vmatpush1.bf16.msra.mxu0 0
      %707 = vmatprep.subr.bf16.mxu0 0
      %708 = vmatpush1.bf16.msra.mxu0 0
      %709 = vmatprep.subr.bf16.mxu0 0
      %710 = vmatpush1.bf16.msra.mxu0 0
      %711 = vmatprep.subr.bf16.mxu0 0
      %712 = vmatpush1.bf16.msra.mxu0 0
      %713 = vmatprep.subr.bf16.mxu0 0
      %714 = vmatpush1.bf16.msra.mxu0 0
      %715 = vmatprep.subr.bf16.mxu0 0
      %716 = vmatpush1.bf16.msra.mxu0 0
      %717 = vmatprep.subr.bf16.mxu0 0
      %718 = vmatpush1.bf16.msra.mxu0 0
      %719 = vmatprep.mubr.bf16.mxu0 0
      %720 = vmatmul.mubr.bf16.gmra.mrb[0].mxu0 %v682
      %v721 = vpop.f32.mrb[0].mxu0
      %v722 = vadd.f32 0.0, %v721
      %v723 = vpop.f32.mrb[0].mxu0
      %v724 = vpop.f32.mrb[0].mxu0
      %v725 = vpop.f32.mrb[0].mxu0
      %726 = vdwg.mxu0
      %727 = vrot.lane.b32.xlu0 %v377, 108
      %v728 = vpop.permute.xlu0 %727
      %v730 = vsel %vm631, %v627, 0
      %v733 = vsel %vm635, %v728, 0
      %735 = vmatprep.subr.bf16.mxu0 0
      %736 = vmatpush1.bf16.msra.mxu0 %v733
      %737 = vmatprep.subr.bf16.mxu0 0
      %738 = vmatpush1.bf16.msra.mxu0 0
      %739 = vmatprep.subr.bf16.mxu0 0
      %740 = vmatpush1.bf16.msra.mxu0 0
      %741 = vmatprep.subr.bf16.mxu0 0
      %742 = vmatpush1.bf16.msra.mxu0 0
      %743 = vmatprep.subr.bf16.mxu0 0
      %744 = vmatpush1.bf16.msra.mxu0 0
      %745 = vmatprep.subr.bf16.mxu0 0
      %746 = vmatpush1.bf16.msra.mxu0 0
      %747 = vmatprep.subr.bf16.mxu0 0
      %748 = vmatpush1.bf16.msra.mxu0 0
      %749 = vmatprep.subr.bf16.mxu0 0
      %750 = vmatpush1.bf16.msra.mxu0 0
      %751 = vmatprep.subr.bf16.mxu0 0
      %752 = vmatpush1.bf16.msra.mxu0 0
      %753 = vmatprep.subr.bf16.mxu0 0
      %754 = vmatpush1.bf16.msra.mxu0 0
      %755 = vmatprep.subr.bf16.mxu0 0
      %756 = vmatpush1.bf16.msra.mxu0 0
      %757 = vmatprep.subr.bf16.mxu0 0
      %758 = vmatpush1.bf16.msra.mxu0 0
      %759 = vmatprep.subr.bf16.mxu0 0
      %760 = vmatpush1.bf16.msra.mxu0 0
      %761 = vmatprep.subr.bf16.mxu0 0
      %762 = vmatpush1.bf16.msra.mxu0 0
      %763 = vmatprep.subr.bf16.mxu0 0
      %764 = vmatpush1.bf16.msra.mxu0 0
      %765 = vmatprep.subr.bf16.mxu0 0
      %766 = vmatpush1.bf16.msra.mxu0 0
      %767 = vmatprep.mubr.bf16.mxu0 0
      %768 = vmatmul.mubr.bf16.gmra.mrb[0].mxu0 %v730
      %v769 = vpop.f32.mrb[0].mxu0
      %v770 = vadd.f32 0.0, %v769
      %v771 = vpop.f32.mrb[0].mxu0
      %v772 = vpop.f32.mrb[0].mxu0
      %v773 = vpop.f32.mrb[0].mxu0
      %774 = vdwg.mxu0
      %775 = vrot.lane.b32.xlu0 %v378, 108
      %v776 = vpop.permute.xlu0 %775
      %v778 = vsel %vm631, %v628, 0
      %v781 = vsel %vm635, %v776, 0
      %783 = vmatprep.subr.bf16.mxu0 0
      %784 = vmatpush1.bf16.msra.mxu0 %v781
      %785 = vmatprep.subr.bf16.mxu0 0
      %786 = vmatpush1.bf16.msra.mxu0 0
      %787 = vmatprep.subr.bf16.mxu0 0
      %788 = vmatpush1.bf16.msra.mxu0 0
      %789 = vmatprep.subr.bf16.mxu0 0
      %790 = vmatpush1.bf16.msra.mxu0 0
      %791 = vmatprep.subr.bf16.mxu0 0
      %792 = vmatpush1.bf16.msra.mxu0 0
      %793 = vmatprep.subr.bf16.mxu0 0
      %794 = vmatpush1.bf16.msra.mxu0 0
      %795 = vmatprep.subr.bf16.mxu0 0
      %796 = vmatpush1.bf16.msra.mxu0 0
      %797 = vmatprep.subr.bf16.mxu0 0
      %798 = vmatpush1.bf16.msra.mxu0 0
      %799 = vmatprep.subr.bf16.mxu0 0
      %800 = vmatpush1.bf16.msra.mxu0 0
      %801 = vmatprep.subr.bf16.mxu0 0
      %802 = vmatpush1.bf16.msra.mxu0 0
      %803 = vmatprep.subr.bf16.mxu0 0
      %804 = vmatpush1.bf16.msra.mxu0 0
      %805 = vmatprep.subr.bf16.mxu0 0
      %806 = vmatpush1.bf16.msra.mxu0 0
      %807 = vmatprep.subr.bf16.mxu0 0
      %808 = vmatpush1.bf16.msra.mxu0 0
      %809 = vmatprep.subr.bf16.mxu0 0
      %810 = vmatpush1.bf16.msra.mxu0 0
      %811 = vmatprep.subr.bf16.mxu0 0
      %812 = vmatpush1.bf16.msra.mxu0 0
      %813 = vmatprep.subr.bf16.mxu0 0
      %814 = vmatpush1.bf16.msra.mxu0 0
      %815 = vmatprep.mubr.bf16.mxu0 0
      %816 = vmatmul.mubr.bf16.gmra.mrb[0].mxu0 %v778
      %v817 = vpop.f32.mrb[0].mxu0
      %v818 = vadd.f32 0.0, %v817
      %v819 = vpop.f32.mrb[0].mxu0
      %v820 = vpop.f32.mrb[0].mxu0
      %v821 = vpop.f32.mrb[0].mxu0
      %822 = vdwg.mxu0
      %v823 = vpack.c.bf16 %v674, %v674
      %v824 = vpack.c.bf16 %v722, %v722
      %v825 = vpack.c.bf16 %v770, %v770
      %v826 = vpack.c.bf16 %v818, %v818
      %vm827 = vcmask 254976
      %828 = vst.msk [vmem:[%s172] sm:$0x3] %vm827, %v823
      %829 = vst.msk [vmem:[%s172 + $0x2] sm:$0x3] %vm827, %v824
      %830 = vst.msk [vmem:[%s172 + $0x4] sm:$0x3] %vm827, %v825
      %831 = vst.msk [vmem:[%s172 + $0x6] sm:$0x3] %vm827, %v826
      %s832 = smul.u32 4, %s14
      %p833 = scmp.lt.s32.totalorder %s832, 7
      %s834 = scalar_select %p833, %s832, 7
      %s835 = smul.addr %s834, 2
      %s836 = scalar_lea.vmem %s3, %s835
      // Predicated region
      $region33: #{_lambda_.10} parent=31 // pred_check
        %p837 = pneg %p100
      $region34: #{_lambda_.10} parent=31 // pred_check_branch
        %839 = sbr.rel (%p837) target = $region36
      $region35: #{_lambda_.10} parent=31 // pred_region
        %s840 = smul.u32 4, %s14
      $region36: #{_lambda_.10} parent=31 // pred_fallthru
        _
    $region32: #{_lambda_.10} parent=5 // pred_fallthru
      _
    %p841 = scmp.le.s32.totalorder 2, %s9
    // Predicated region
    $region37: #{_lambda_.10} parent=5 // pred_check
      %p842 = pneg %p841
    $region38: #{_lambda_.10} parent=5 // pred_check_branch
      %844 = sbr.rel (%p842) target = $region40
    $region39: #{_lambda_.10} parent=5 // pred_region
      %s845 = ssub.s32 %s9, 2
      // Predicated region
      $region41: #{_lambda_.10} parent=39 // pred_check
        %p846 = pneg %p106
      $region42: #{_lambda_.10} parent=39 // pred_check_branch
        %848 = sbr.rel (%p846) target = $region44
      $region43: #{_lambda_.10} parent=39 // pred_region
        %s849 = smul.u32 4, %s15
        %p850 = scmp.lt.s32.totalorder %s849, 7
        %s851 = scalar_select %p850, %s849, 7
        %s852 = smul.addr %s851, 2
        %s853 = scalar_lea.vmem %s3, %s852
      $region44: #{_lambda_.10} parent=39 // pred_fallthru
        _
    $region40: #{_lambda_.10} parent=5 // pred_fallthru
      _
  $region6: #{_lambda_.10} parent=0 // loop_footer
    %s13 = sadd.s32 1, %s9
  $region7: #{_lambda_.10} parent=0 // loop_footer_branch
    %8 = sbr.rel target = $region3
  $region8: #{_lambda_.10} parent=0 // loop_exit
    _

// kernel: _lambda_.12
$region0: #{_lambda_.12}
  #allocation0 [shape = 'u32[]', space=smem, size = 0x4, offset = 0x4, fixed_abs, tag = 'smem constant byte address 0x4 - core index']
  #allocation1 [shape = 'u32[144,128]{1,0:T(1,128)}', space=vmem, size = 0x12000, scoped, tag = 'internal scratch']
  %s0 = inlined_call_operand.vmem [shape: bf16[128,32], index: 0, kind: input, shape index: {}]
  %s1 = inlined_call_operand.vmem [shape: bf16[32,128], index: 1, kind: input, shape index: {}]
  %s2 = inlined_call_operand.vmem [shape: f32[1,128], index: 2, kind: input, shape index: {}]
  %s3 = inlined_call_operand.vmem [shape: f32[1,128], index: 3, kind: input, shape index: {}]
  %s4 = inlined_call_operand.vmem [shape: bf16[128,128], index: 4, kind: output, shape index: {}]
  %s5 = sld [smem:[#allocation0]]
  $region49: #{_lambda_.12} parent=0
    _
  %s7 = ssub.s32 1, %s5
  %s8 = scalar_select 0, %s7, %s5
  loop: start=0, step=1, limit=4
  $region2: #{_lambda_.12} parent=0 // loop_pre_header
    _
  $region3: #{_lambda_.12} parent=0 // loop_header
    %s10 = sphi 0, %s14
    %p11 = scmp.ge.s32.totalorder %s10, 4
    %s20 = sphi 0, %s22
    %s23 = sphi 0, %s20
    %s24 = sphi 0, %s23
    %s40 = sphi 0, %s24
    %s44 = sphi 0, %s44
    %s46 = sphi 0, %s44
    %s47 = sphi 0, %s46
    %s61 = sphi 0, %s47
    %s65 = sphi 0, %s65
    %s67 = sphi 0, %s65
    %s68 = sphi 0, %s67
    %s82 = sphi 0, %s68
    %s86 = sphi 0, %s86
    %s88 = sphi 0, %s86
    %s89 = sphi 0, %s88
    %s103 = sphi 0, %s89
    %s109 = sphi 0, %s111
    %s112 = sphi 0, %s109
    %s113 = sphi 0, %s112
    %s129 = sphi 0, %s113
  $region4: #{_lambda_.12} parent=0 // loop_header_branch
    %13 = sbr.rel (%p11) target = $region8
  $region5: #{_lambda_.12} parent=0 // loop_body
    %s15 = ssub.s32 %s10, 1
    %s16 = ssub.s32 %s10, 2
    %s17 = sadd.s32 %s10, 1
    %s18 = ssub.s32 %s10, %s17
    %p19 = scmp.eq.s32.totalorder %s18, 0
    %s21 = sadd.s32 %s20, 1
    %s22 = scalar_select %p19, %s20, %s21
    %p25 = pneg %p19
    %p26 = scmp.eq.s32.totalorder %s10, 1
    %p27 = por %p25, %p26
    %p28 = scmp.ne.s32.totalorder %s20, %s23
    %p29 = scmp.eq.s32.totalorder %s10, 0
    %p30 = por %p28, %p29
    %p31 = scmp.ne.s32.totalorder %s20, %s23
    %p32 = scmp.eq.s32.totalorder %s15, 1
    %p33 = por %p31, %p32
    %p34 = scmp.ne.s32.totalorder %s23, %s24
    %p35 = scmp.eq.s32.totalorder %s15, 0
    %p36 = por %p34, %p35
    %p37 = scmp.ne.s32.totalorder %s23, %s24
    %p38 = scmp.eq.s32.totalorder %s16, 1
    %p39 = por %p37, %p38
    %p41 = scmp.ne.s32.totalorder %s24, %s40
    %p42 = scmp.eq.s32.totalorder %s16, 0
    %p43 = por %p41, %p42
    %s45 = sadd.s32 %s44, 1
    %p48 = scmp.eq.s32.totalorder %s10, 1
    %p49 = scmp.ne.s32.totalorder %s44, %s46
    %p50 = scmp.eq.s32.totalorder %s10, 0
    %p51 = por %p49, %p50
    %p52 = scmp.ne.s32.totalorder %s44, %s46
    %p53 = scmp.eq.s32.totalorder %s15, 1
    %p54 = por %p52, %p53
    %p55 = scmp.ne.s32.totalorder %s46, %s47
    %p56 = scmp.eq.s32.totalorder %s15, 0
    %p57 = por %p55, %p56
    %p58 = scmp.ne.s32.totalorder %s46, %s47
    %p59 = scmp.eq.s32.totalorder %s16, 1
    %p60 = por %p58, %p59
    %p62 = scmp.ne.s32.totalorder %s47, %s61
    %p63 = scmp.eq.s32.totalorder %s16, 0
    %p64 = por %p62, %p63
    %s66 = sadd.s32 %s65, 1
    %p69 = scmp.eq.s32.totalorder %s10, 1
    %p70 = scmp.ne.s32.totalorder %s65, %s67
    %p71 = scmp.eq.s32.totalorder %s10, 0
    %p72 = por %p70, %p71
    %p73 = scmp.ne.s32.totalorder %s65, %s67
    %p74 = scmp.eq.s32.totalorder %s15, 1
    %p75 = por %p73, %p74
    %p76 = scmp.ne.s32.totalorder %s67, %s68
    %p77 = scmp.eq.s32.totalorder %s15, 0
    %p78 = por %p76, %p77
    %p79 = scmp.ne.s32.totalorder %s67, %s68
    %p80 = scmp.eq.s32.totalorder %s16, 1
    %p81 = por %p79, %p80
    %p83 = scmp.ne.s32.totalorder %s68, %s82
    %p84 = scmp.eq.s32.totalorder %s16, 0
    %p85 = por %p83, %p84
    %s87 = sadd.s32 %s86, 1
    %p90 = scmp.eq.s32.totalorder %s10, 1
    %p91 = scmp.ne.s32.totalorder %s86, %s88
    %p92 = scmp.eq.s32.totalorder %s10, 0
    %p93 = por %p91, %p92
    %p94 = scmp.ne.s32.totalorder %s86, %s88
    %p95 = scmp.eq.s32.totalorder %s15, 1
    %p96 = por %p94, %p95
    %p97 = scmp.ne.s32.totalorder %s88, %s89
    %p98 = scmp.eq.s32.totalorder %s15, 0
    %p99 = por %p97, %p98
    %p100 = scmp.ne.s32.totalorder %s88, %s89
    %p101 = scmp.eq.s32.totalorder %s16, 1
    %p102 = por %p100, %p101
    %p104 = scmp.ne.s32.totalorder %s89, %s103
    %p105 = scmp.eq.s32.totalorder %s16, 0
    %p106 = por %p104, %p105
    %s107 = ssub.s32 %s10, %s17
    %p108 = scmp.eq.s32.totalorder %s107, 0
    %s110 = sadd.s32 %s109, 1
    %s111 = scalar_select %p108, %s109, %s110
    %p114 = pneg %p108
    %p115 = scmp.eq.s32.totalorder %s10, 1
    %p116 = por %p114, %p115
    %p117 = scmp.ne.s32.totalorder %s109, %s112
    %p118 = scmp.eq.s32.totalorder %s10, 0
    %p119 = por %p117, %p118
    %p120 = scmp.ne.s32.totalorder %s109, %s112
    %p121 = scmp.eq.s32.totalorder %s15, 1
    %p122 = por %p120, %p121
    %p123 = scmp.ne.s32.totalorder %s112, %s113
    %p124 = scmp.eq.s32.totalorder %s15, 0
    %p125 = por %p123, %p124
    %p126 = scmp.ne.s32.totalorder %s112, %s113
    %p127 = scmp.eq.s32.totalorder %s16, 1
    %p128 = por %p126, %p127
    %p130 = scmp.ne.s32.totalorder %s113, %s129
    %p131 = scmp.eq.s32.totalorder %s16, 0
    %p132 = por %p130, %p131
    %p133 = scmp.le.s32.totalorder 1, %s10
    %p134 = scmp.lt.s32.totalorder %s10, 3
    %p135 = pnand %p133, %p134
    %p136 = pneg %p135
    // Predicated region
    $region9: #{_lambda_.12} parent=5 // pred_check
      _
    $region10: #{_lambda_.12} parent=5 // pred_check_branch
      %138 = sbr.rel (%p135) target = $region12
    $region11: #{_lambda_.12} parent=5 // pred_region
      %s139 = ssub.s32 %s10, 1
      // Predicated region
      $region13: #{_lambda_.12} parent=11 // pred_check
        %p140 = pneg %p57
      $region14: #{_lambda_.12} parent=11 // pred_check_branch
        %142 = sbr.rel (%p140) target = $region16
      $region15: #{_lambda_.12} parent=11 // pred_region
        _
      $region16: #{_lambda_.12} parent=11 // pred_fallthru
        _
      // Predicated region
      $region17: #{_lambda_.12} parent=11 // pred_check
        %p143 = pneg %p78
      $region18: #{_lambda_.12} parent=11 // pred_check_branch
        %145 = sbr.rel (%p143) target = $region20
      $region19: #{_lambda_.12} parent=11 // pred_region
        _
      $region20: #{_lambda_.12} parent=11 // pred_fallthru
        _
      // Predicated region
      $region21: #{_lambda_.12} parent=11 // pred_check
        %p146 = pneg %p99
      $region22: #{_lambda_.12} parent=11 // pred_check_branch
        %148 = sbr.rel (%p146) target = $region24
      $region23: #{_lambda_.12} parent=11 // pred_region
        _
      $region24: #{_lambda_.12} parent=11 // pred_fallthru
        _
    $region12: #{_lambda_.12} parent=5 // pred_fallthru
      _
    %p149 = scmp.lt.s32.totalorder %s10, 2
    // Predicated region
    $region25: #{_lambda_.12} parent=5 // pred_check
      %p150 = pneg %p149
    $region26: #{_lambda_.12} parent=5 // pred_check_branch
      %152 = sbr.rel (%p150) target = $region28
    $region27: #{_lambda_.12} parent=5 // pred_region
      // Predicated region
      $region29: #{_lambda_.12} parent=27 // pred_check
        %p153 = pneg %p30
      $region30: #{_lambda_.12} parent=27 // pred_check_branch
        %155 = sbr.rel (%p153) target = $region32
      $region31: #{_lambda_.12} parent=27 // pred_region
        %s156 = smul.u32 8, %s10
        %p157 = scmp.lt.s32.totalorder %s156, 15
        %s158 = scalar_select %p157, %s156, 15
        %s159 = smul.addr %s158, 4
        %s160 = scalar_lea.vmem %s0, %s159
        %s161 = smul.u32 8, %s10
      $region32: #{_lambda_.12} parent=27 // pred_fallthru
        _
    $region28: #{_lambda_.12} parent=5 // pred_fallthru
      _
    %p162 = scmp.le.s32.totalorder 1, %s10
    %p163 = scmp.lt.s32.totalorder %s10, 3
    %p164 = pnand %p162, %p163
    %p165 = pneg %p164
    // Predicated region
    $region33: #{_lambda_.12} parent=5 // pred_check
      _
    $region34: #{_lambda_.12} parent=5 // pred_check_branch
      %167 = sbr.rel (%p164) target = $region36
    $region35: #{_lambda_.12} parent=5 // pred_region
      %s168 = ssub.s32 %s10, 1
      %s169 = smul.u32 8, %s15
      %p170 = scmp.lt.s32.totalorder %s169, 15
      %s171 = scalar_select %p170, %s169, 15
      %s172 = smul.addr %s171, 4
      %s173 = scalar_lea.vmem %s0, %s172
      %p174 = pneg %p36
      %p175 = pneg %p33
      %p176 = pneg %p57
      %p177 = pneg %p54
      %p178 = pneg %p78
      %p179 = pneg %p75
      %p180 = pneg %p99
      %p181 = pneg %p96
      %p182 = pneg %p125
      %p183 = pneg %p122
      %s184 = smul.u32 8, %s15
      %p185 = scmp.lt.s32.totalorder %s184, 15
      %s186 = scalar_select %p185, %s184, 15
      %s187 = smul.addr %s186, 4
      %s188 = scalar_lea.vmem %s4, %s187
      %s189 = smul.u32 8, %s15
      %p190 = scmp.lt.s32.totalorder %s189, 15
      %s191 = scalar_select %p190, %s189, 15
      %s192 = smul.addr %s191, 4
      %s193 = scalar_lea.vmem %s0, %s192
      %s194 = smul.u32 8, %s15
      %s195 = smul.u32 8, %s15
      %p196 = scmp.lt.s32.totalorder %s195, 15
      %s197 = scalar_select %p196, %s195, 15
      %s198 = smul.addr %s197, 4
      %s199 = scalar_lea.vmem %s4, %s198
      %s200 = smul.u32 8, %s15
      %v202 = vld [vmem:[%s193] sm:$0xf]
      %v203 = vld [vmem:[%s193 + $0x4] sm:$0xf]
      %v204 = vld [vmem:[%s193 + $0x8] sm:$0xf]
      %v205 = vld [vmem:[%s193 + $0xc] sm:$0xf]
      %v206 = vld [vmem:[%s193 + $0x10] sm:$0xf]
      %v207 = vld [vmem:[%s193 + $0x14] sm:$0xf]
      %v208 = vld [vmem:[%s193 + $0x18] sm:$0xf]
      %v209 = vld [vmem:[%s193 + $0x1c] sm:$0xf]
      %v210 = vld [vmem:[%s1] sm:$0xf]
      %v211 = vld [vmem:[%s1 + $0x4] sm:$0xf]
      %v212 = vld [vmem:[%s1 + $0x8] sm:$0xf]
      %v213 = vld [vmem:[%s1 + $0xc] sm:$0xf]
      %v222 = vunpack.c.l.b16 %v202
      %v223 = vunpack.c.l.b16 %v203
      %v224 = vunpack.c.l.b16 %v204
      %v225 = vunpack.c.l.b16 %v205
      %v226 = vunpack.c.l.b16 %v206
      %v227 = vunpack.c.l.b16 %v207
      %v228 = vunpack.c.l.b16 %v208
      %v229 = vunpack.c.l.b16 %v209
      %v230 = vpack.c.b16 %v223, %v222
      %v231 = vpack.c.b16 %v225, %v224
      %v232 = vpack.c.b16 %v227, %v226
      %v233 = vpack.c.b16 %v229, %v228
      %v238 = vunpack.c.l.b16 %v210
      %v239 = vunpack.c.l.b16 %v211
      %v240 = vunpack.c.l.b16 %v212
      %v241 = vunpack.c.l.b16 %v213
      %v242 = vpack.c.b16 %v239, %v238
      %v243 = vpack.c.b16 %v241, %v240
      %vm246 = vcmask 261120
      %v248 = vsel %vm246, %v230, 0
      %v251 = vsel %vm246, %v231, 0
      %v254 = vsel %vm246, %v232, 0
      %v257 = vsel %vm246, %v233, 0
      %259 = vmatprep.subr.bf16.mxu0 0
      %260 = vmatpush1.bf16.msra.mxu0 %v242
      %261 = vmatprep.subr.bf16.mxu0 0
      %262 = vmatpush1.bf16.msra.mxu0 %v243
      %263 = vmatprep.subr.bf16.mxu0 0
      %264 = vmatpush1.bf16.msra.mxu0 0
      %265 = vmatprep.subr.bf16.mxu0 0
      %266 = vmatpush1.bf16.msra.mxu0 0
      %267 = vmatprep.subr.bf16.mxu0 0
      %268 = vmatpush1.bf16.msra.mxu0 0
      %269 = vmatprep.subr.bf16.mxu0 0
      %270 = vmatpush1.bf16.msra.mxu0 0
      %271 = vmatprep.subr.bf16.mxu0 0
      %272 = vmatpush1.bf16.msra.mxu0 0
      %273 = vmatprep.subr.bf16.mxu0 0
      %274 = vmatpush1.bf16.msra.mxu0 0
      %275 = vmatprep.subr.bf16.mxu0 0
      %276 = vmatpush1.bf16.msra.mxu0 0
      %277 = vmatprep.subr.bf16.mxu0 0
      %278 = vmatpush1.bf16.msra.mxu0 0
      %279 = vmatprep.subr.bf16.mxu0 0
      %280 = vmatpush1.bf16.msra.mxu0 0
      %281 = vmatprep.subr.bf16.mxu0 0
      %282 = vmatpush1.bf16.msra.mxu0 0
      %283 = vmatprep.subr.bf16.mxu0 0
      %284 = vmatpush1.bf16.msra.mxu0 0
      %285 = vmatprep.subr.bf16.mxu0 0
      %286 = vmatpush1.bf16.msra.mxu0 0
      %287 = vmatprep.subr.bf16.mxu0 0
      %288 = vmatpush1.bf16.msra.mxu0 0
      %289 = vmatprep.subr.bf16.mxu0 0
      %290 = vmatpush1.bf16.msra.mxu0 0
      %291 = vmatprep.mubr.bf16.mxu0 0
      %292 = vmatmul.mubr.bf16.gmra.mrb[0].mxu0 %v248
      %v293 = vpop.f32.mrb[0].mxu0
      %v294 = vadd.f32 0.0, %v293
      %v295 = vpop.f32.mrb[0].mxu0
      %v296 = vpop.f32.mrb[0].mxu0
      %v297 = vadd.f32 0.0, %v296
      %v298 = vpop.f32.mrb[0].mxu0
      %299 = vmatprep.mubr.bf16.mxu0 0
      %300 = vmatmul.mubr.bf16.gmra.mrb[0].mxu0 %v251
      %v301 = vpop.f32.mrb[0].mxu0
      %v302 = vadd.f32 0.0, %v301
      %v303 = vpop.f32.mrb[0].mxu0
      %v304 = vpop.f32.mrb[0].mxu0
      %v305 = vadd.f32 0.0, %v304
      %v306 = vpop.f32.mrb[0].mxu0
      %307 = vmatprep.mubr.bf16.mxu0 0
      %308 = vmatmul.mubr.bf16.gmra.mrb[0].mxu0 %v254
      %v309 = vpop.f32.mrb[0].mxu0
      %v310 = vadd.f32 0.0, %v309
      %v311 = vpop.f32.mrb[0].mxu0
      %v312 = vpop.f32.mrb[0].mxu0
      %v313 = vadd.f32 0.0, %v312
      %v314 = vpop.f32.mrb[0].mxu0
      %315 = vmatprep.mubr.bf16.mxu0 0
      %316 = vmatmul.mubr.bf16.gmra.mrb[0].mxu0 %v257
      %v317 = vpop.f32.mrb[0].mxu0
      %v318 = vadd.f32 0.0, %v317
      %v319 = vpop.f32.mrb[0].mxu0
      %v320 = vpop.f32.mrb[0].mxu0
      %v321 = vadd.f32 0.0, %v320
      %v322 = vpop.f32.mrb[0].mxu0
      %323 = vdwg.mxu0
      %v324 = vld [vmem:[%s2] sm:$0x1]
      %v326 = vlaneseq
      %v327 = vshrl.u32 %v326, 7
      %v328 = vsub.s32 0, %v327
      %v329 = vrot.slane %v324, %v328
      %v331 = vmul.f32 %v294, %v329
      %v332 = vmul.f32 %v297, %v329
      %v333 = vmul.f32 %v302, %v329
      %v334 = vmul.f32 %v305, %v329
      %v335 = vmul.f32 %v310, %v329
      %v336 = vmul.f32 %v313, %v329
      %v337 = vmul.f32 %v318, %v329
      %v338 = vmul.f32 %v321, %v329
      %v339 = vld [vmem:[%s3] sm:$0x1]
      %v341 = vlaneseq
      %v342 = vshrl.u32 %v341, 7
      %v343 = vsub.s32 0, %v342
      %v344 = vrot.slane %v339, %v343
      %v346 = vadd.f32 %v331, %v344
      %v347 = vadd.f32 %v332, %v344
      %v348 = vadd.f32 %v333, %v344
      %v349 = vadd.f32 %v334, %v344
      %v350 = vadd.f32 %v335, %v344
      %v351 = vadd.f32 %v336, %v344
      %v352 = vadd.f32 %v337, %v344
      %v353 = vadd.f32 %v338, %v344
      %v354 = vmax.f32 %v346, 0.0
      %v355 = vmax.f32 %v347, 0.0
      %v356 = vmax.f32 %v348, 0.0
      %v357 = vmax.f32 %v349, 0.0
      %v358 = vmax.f32 %v350, 0.0
      %v359 = vmax.f32 %v351, 0.0
      %v360 = vmax.f32 %v352, 0.0
      %v361 = vmax.f32 %v353, 0.0
      %v362 = vpack.c.bf16 %v355, %v354
      %v363 = vpack.c.bf16 %v357, %v356
      %v364 = vpack.c.bf16 %v359, %v358
      %v365 = vpack.c.bf16 %v361, %v360
      %v370 = vunpack.c.l.b16 %v362
      %v371 = vunpack.c.h.b16 %v362
      %v372 = vunpack.c.l.b16 %v363
      %v373 = vunpack.c.h.b16 %v363
      %v374 = vunpack.c.l.b16 %v364
      %v375 = vunpack.c.h.b16 %v364
      %v376 = vunpack.c.l.b16 %v365
      %v377 = vunpack.c.h.b16 %v365
      %v378 = vpack.c.b16 %v370, %v370
      %v379 = vpack.c.b16 %v371, %v371
      %v380 = vpack.c.b16 %v372, %v372
      %v381 = vpack.c.b16 %v373, %v373
      %v382 = vpack.c.b16 %v374, %v374
      %v383 = vpack.c.b16 %v375, %v375
      %v384 = vpack.c.b16 %v376, %v376
      %v385 = vpack.c.b16 %v377, %v377
      %394 = vst [vmem:[%s199] sm:$0xf] %v378
      %395 = vst [vmem:[%s199 + $0x4] sm:$0xf] %v379
      %396 = vst [vmem:[%s199 + $0x8] sm:$0xf] %v380
      %397 = vst [vmem:[%s199 + $0xc] sm:$0xf] %v381
      %398 = vst [vmem:[%s199 + $0x10] sm:$0xf] %v382
      %399 = vst [vmem:[%s199 + $0x14] sm:$0xf] %v383
      %400 = vst [vmem:[%s199 + $0x18] sm:$0xf] %v384
      %401 = vst [vmem:[%s199 + $0x1c] sm:$0xf] %v385
      %s402 = smul.u32 8, %s15
      %p403 = scmp.lt.s32.totalorder %s402, 15
      %s404 = scalar_select %p403, %s402, 15
      %s405 = smul.addr %s404, 4
      %s406 = scalar_lea.vmem %s4, %s405
      // Predicated region
      $region37: #{_lambda_.12} parent=35 // pred_check
        %p407 = pneg %p122
      $region38: #{_lambda_.12} parent=35 // pred_check_branch
        %409 = sbr.rel (%p407) target = $region40
      $region39: #{_lambda_.12} parent=35 // pred_region
        %s410 = smul.u32 8, %s15
      $region40: #{_lambda_.12} parent=35 // pred_fallthru
        _
    $region36: #{_lambda_.12} parent=5 // pred_fallthru
      _
    %p411 = scmp.le.s32.totalorder 2, %s10
    // Predicated region
    $region41: #{_lambda_.12} parent=5 // pred_check
      %p412 = pneg %p411
    $region42: #{_lambda_.12} parent=5 // pred_check_branch
      %414 = sbr.rel (%p412) target = $region44
    $region43: #{_lambda_.12} parent=5 // pred_region
      %s415 = ssub.s32 %s10, 2
      // Predicated region
      $region45: #{_lambda_.12} parent=43 // pred_check
        %p416 = pneg %p128
      $region46: #{_lambda_.12} parent=43 // pred_check_branch
        %418 = sbr.rel (%p416) target = $region48
      $region47: #{_lambda_.12} parent=43 // pred_region
        %s419 = smul.u32 8, %s16
        %p420 = scmp.lt.s32.totalorder %s419, 15
        %s421 = scalar_select %p420, %s419, 15
        %s422 = smul.addr %s421, 4
        %s423 = scalar_lea.vmem %s4, %s422
      $region48: #{_lambda_.12} parent=43 // pred_fallthru
        _
    $region44: #{_lambda_.12} parent=5 // pred_fallthru
      _
  $region6: #{_lambda_.12} parent=0 // loop_footer
    %s14 = sadd.s32 1, %s10
  $region7: #{_lambda_.12} parent=0 // loop_footer_branch
    %9 = sbr.rel target = $region3
  $region8: #{_lambda_.12} parent=0 // loop_exit
    _

// kernel: _lambda_.13
$region0: #{_lambda_.13}
  #allocation0 [shape = 'u32[]', space=smem, size = 0x4, offset = 0x4, fixed_abs, tag = 'smem constant byte address 0x4 - core index']
  #allocation1 [shape = 'u32[144,128]{1,0:T(1,128)}', space=vmem, size = 0x12000, scoped, tag = 'internal scratch']
  %s0 = inlined_call_operand.vmem [shape: bf16[512,32], index: 0, kind: input, shape index: {}]
  %s1 = inlined_call_operand.vmem [shape: bf16[32,4], index: 1, kind: input, shape index: {}]
  %s2 = inlined_call_operand.vmem [shape: f32[1,4], index: 2, kind: input, shape index: {}]
  %s3 = inlined_call_operand.vmem [shape: f32[1,4], index: 3, kind: input, shape index: {}]
  %s4 = inlined_call_operand.vmem [shape: f32[512,4], index: 4, kind: output, shape index: {}]
  %s5 = sld [smem:[#allocation0]]
  $region49: #{_lambda_.13} parent=0
    _
  %s7 = ssub.s32 1, %s5
  %s8 = scalar_select 0, %s7, %s5
  loop: start=0, step=1, limit=4
  $region2: #{_lambda_.13} parent=0 // loop_pre_header
    _
  $region3: #{_lambda_.13} parent=0 // loop_header
    %s10 = sphi 0, %s14
    %p11 = scmp.ge.s32.totalorder %s10, 4
    %s20 = sphi 0, %s22
    %s23 = sphi 0, %s20
    %s24 = sphi 0, %s23
    %s40 = sphi 0, %s24
    %s44 = sphi 0, %s44
    %s46 = sphi 0, %s44
    %s47 = sphi 0, %s46
    %s61 = sphi 0, %s47
    %s65 = sphi 0, %s65
    %s67 = sphi 0, %s65
    %s68 = sphi 0, %s67
    %s82 = sphi 0, %s68
    %s86 = sphi 0, %s86
    %s88 = sphi 0, %s86
    %s89 = sphi 0, %s88
    %s103 = sphi 0, %s89
    %s109 = sphi 0, %s111
    %s112 = sphi 0, %s109
    %s113 = sphi 0, %s112
    %s129 = sphi 0, %s113
  $region4: #{_lambda_.13} parent=0 // loop_header_branch
    %13 = sbr.rel (%p11) target = $region8
  $region5: #{_lambda_.13} parent=0 // loop_body
    %s15 = ssub.s32 %s10, 1
    %s16 = ssub.s32 %s10, 2
    %s17 = sadd.s32 %s10, 1
    %s18 = ssub.s32 %s10, %s17
    %p19 = scmp.eq.s32.totalorder %s18, 0
    %s21 = sadd.s32 %s20, 1
    %s22 = scalar_select %p19, %s20, %s21
    %p25 = pneg %p19
    %p26 = scmp.eq.s32.totalorder %s10, 1
    %p27 = por %p25, %p26
    %p28 = scmp.ne.s32.totalorder %s20, %s23
    %p29 = scmp.eq.s32.totalorder %s10, 0
    %p30 = por %p28, %p29
    %p31 = scmp.ne.s32.totalorder %s20, %s23
    %p32 = scmp.eq.s32.totalorder %s15, 1
    %p33 = por %p31, %p32
    %p34 = scmp.ne.s32.totalorder %s23, %s24
    %p35 = scmp.eq.s32.totalorder %s15, 0
    %p36 = por %p34, %p35
    %p37 = scmp.ne.s32.totalorder %s23, %s24
    %p38 = scmp.eq.s32.totalorder %s16, 1
    %p39 = por %p37, %p38
    %p41 = scmp.ne.s32.totalorder %s24, %s40
    %p42 = scmp.eq.s32.totalorder %s16, 0
    %p43 = por %p41, %p42
    %s45 = sadd.s32 %s44, 1
    %p48 = scmp.eq.s32.totalorder %s10, 1
    %p49 = scmp.ne.s32.totalorder %s44, %s46
    %p50 = scmp.eq.s32.totalorder %s10, 0
    %p51 = por %p49, %p50
    %p52 = scmp.ne.s32.totalorder %s44, %s46
    %p53 = scmp.eq.s32.totalorder %s15, 1
    %p54 = por %p52, %p53
    %p55 = scmp.ne.s32.totalorder %s46, %s47
    %p56 = scmp.eq.s32.totalorder %s15, 0
    %p57 = por %p55, %p56
    %p58 = scmp.ne.s32.totalorder %s46, %s47
    %p59 = scmp.eq.s32.totalorder %s16, 1
    %p60 = por %p58, %p59
    %p62 = scmp.ne.s32.totalorder %s47, %s61
    %p63 = scmp.eq.s32.totalorder %s16, 0
    %p64 = por %p62, %p63
    %s66 = sadd.s32 %s65, 1
    %p69 = scmp.eq.s32.totalorder %s10, 1
    %p70 = scmp.ne.s32.totalorder %s65, %s67
    %p71 = scmp.eq.s32.totalorder %s10, 0
    %p72 = por %p70, %p71
    %p73 = scmp.ne.s32.totalorder %s65, %s67
    %p74 = scmp.eq.s32.totalorder %s15, 1
    %p75 = por %p73, %p74
    %p76 = scmp.ne.s32.totalorder %s67, %s68
    %p77 = scmp.eq.s32.totalorder %s15, 0
    %p78 = por %p76, %p77
    %p79 = scmp.ne.s32.totalorder %s67, %s68
    %p80 = scmp.eq.s32.totalorder %s16, 1
    %p81 = por %p79, %p80
    %p83 = scmp.ne.s32.totalorder %s68, %s82
    %p84 = scmp.eq.s32.totalorder %s16, 0
    %p85 = por %p83, %p84
    %s87 = sadd.s32 %s86, 1
    %p90 = scmp.eq.s32.totalorder %s10, 1
    %p91 = scmp.ne.s32.totalorder %s86, %s88
    %p92 = scmp.eq.s32.totalorder %s10, 0
    %p93 = por %p91, %p92
    %p94 = scmp.ne.s32.totalorder %s86, %s88
    %p95 = scmp.eq.s32.totalorder %s15, 1
    %p96 = por %p94, %p95
    %p97 = scmp.ne.s32.totalorder %s88, %s89
    %p98 = scmp.eq.s32.totalorder %s15, 0
    %p99 = por %p97, %p98
    %p100 = scmp.ne.s32.totalorder %s88, %s89
    %p101 = scmp.eq.s32.totalorder %s16, 1
    %p102 = por %p100, %p101
    %p104 = scmp.ne.s32.totalorder %s89, %s103
    %p105 = scmp.eq.s32.totalorder %s16, 0
    %p106 = por %p104, %p105
    %s107 = ssub.s32 %s10, %s17
    %p108 = scmp.eq.s32.totalorder %s107, 0
    %s110 = sadd.s32 %s109, 1
    %s111 = scalar_select %p108, %s109, %s110
    %p114 = pneg %p108
    %p115 = scmp.eq.s32.totalorder %s10, 1
    %p116 = por %p114, %p115
    %p117 = scmp.ne.s32.totalorder %s109, %s112
    %p118 = scmp.eq.s32.totalorder %s10, 0
    %p119 = por %p117, %p118
    %p120 = scmp.ne.s32.totalorder %s109, %s112
    %p121 = scmp.eq.s32.totalorder %s15, 1
    %p122 = por %p120, %p121
    %p123 = scmp.ne.s32.totalorder %s112, %s113
    %p124 = scmp.eq.s32.totalorder %s15, 0
    %p125 = por %p123, %p124
    %p126 = scmp.ne.s32.totalorder %s112, %s113
    %p127 = scmp.eq.s32.totalorder %s16, 1
    %p128 = por %p126, %p127
    %p130 = scmp.ne.s32.totalorder %s113, %s129
    %p131 = scmp.eq.s32.totalorder %s16, 0
    %p132 = por %p130, %p131
    %p133 = scmp.le.s32.totalorder 1, %s10
    %p134 = scmp.lt.s32.totalorder %s10, 3
    %p135 = pnand %p133, %p134
    %p136 = pneg %p135
    // Predicated region
    $region9: #{_lambda_.13} parent=5 // pred_check
      _
    $region10: #{_lambda_.13} parent=5 // pred_check_branch
      %138 = sbr.rel (%p135) target = $region12
    $region11: #{_lambda_.13} parent=5 // pred_region
      %s139 = ssub.s32 %s10, 1
      // Predicated region
      $region13: #{_lambda_.13} parent=11 // pred_check
        %p140 = pneg %p57
      $region14: #{_lambda_.13} parent=11 // pred_check_branch
        %142 = sbr.rel (%p140) target = $region16
      $region15: #{_lambda_.13} parent=11 // pred_region
        _
      $region16: #{_lambda_.13} parent=11 // pred_fallthru
        _
      // Predicated region
      $region17: #{_lambda_.13} parent=11 // pred_check
        %p143 = pneg %p78
      $region18: #{_lambda_.13} parent=11 // pred_check_branch
        %145 = sbr.rel (%p143) target = $region20
      $region19: #{_lambda_.13} parent=11 // pred_region
        _
      $region20: #{_lambda_.13} parent=11 // pred_fallthru
        _
      // Predicated region
      $region21: #{_lambda_.13} parent=11 // pred_check
        %p146 = pneg %p99
      $region22: #{_lambda_.13} parent=11 // pred_check_branch
        %148 = sbr.rel (%p146) target = $region24
      $region23: #{_lambda_.13} parent=11 // pred_region
        _
      $region24: #{_lambda_.13} parent=11 // pred_fallthru
        _
    $region12: #{_lambda_.13} parent=5 // pred_fallthru
      _
    %p149 = scmp.lt.s32.totalorder %s10, 2
    // Predicated region
    $region25: #{_lambda_.13} parent=5 // pred_check
      %p150 = pneg %p149
    $region26: #{_lambda_.13} parent=5 // pred_check_branch
      %152 = sbr.rel (%p150) target = $region28
    $region27: #{_lambda_.13} parent=5 // pred_region
      // Predicated region
      $region29: #{_lambda_.13} parent=27 // pred_check
        %p153 = pneg %p30
      $region30: #{_lambda_.13} parent=27 // pred_check_branch
        %155 = sbr.rel (%p153) target = $region32
      $region31: #{_lambda_.13} parent=27 // pred_region
        %s156 = smul.u32 32, %s10
        %p157 = scmp.lt.s32.totalorder %s156, 63
        %s158 = scalar_select %p157, %s156, 63
        %s159 = smul.addr %s158, 4
        %s160 = scalar_lea.vmem %s0, %s159
        %s161 = smul.u32 32, %s10
      $region32: #{_lambda_.13} parent=27 // pred_fallthru
        _
    $region28: #{_lambda_.13} parent=5 // pred_fallthru
      _
    %p162 = scmp.le.s32.totalorder 1, %s10
    %p163 = scmp.lt.s32.totalorder %s10, 3
    %p164 = pnand %p162, %p163
    %p165 = pneg %p164
    // Predicated region
    $region33: #{_lambda_.13} parent=5 // pred_check
      _
    $region34: #{_lambda_.13} parent=5 // pred_check_branch
      %167 = sbr.rel (%p164) target = $region36
    $region35: #{_lambda_.13} parent=5 // pred_region
      %s168 = ssub.s32 %s10, 1
      %s169 = smul.u32 32, %s15
      %p170 = scmp.lt.s32.totalorder %s169, 63
      %s171 = scalar_select %p170, %s169, 63
      %s172 = smul.addr %s171, 4
      %s173 = scalar_lea.vmem %s0, %s172
      %p174 = pneg %p36
      %p175 = pneg %p33
      %p176 = pneg %p57
      %p177 = pneg %p54
      %p178 = pneg %p78
      %p179 = pneg %p75
      %p180 = pneg %p99
      %p181 = pneg %p96
      %p182 = pneg %p125
      %p183 = pneg %p122
      %s184 = smul.u32 32, %s15
      %p185 = scmp.lt.s32.totalorder %s184, 63
      %s186 = scalar_select %p185, %s184, 63
      %s187 = smul.addr %s186, 8
      %s188 = scalar_lea.vmem %s4, %s187
      %s189 = smul.u32 32, %s15
      %p190 = scmp.lt.s32.totalorder %s189, 63
      %s191 = scalar_select %p190, %s189, 63
      %s192 = smul.addr %s191, 4
      %s193 = scalar_lea.vmem %s0, %s192
      %s194 = smul.u32 32, %s15
      %s195 = smul.u32 32, %s15
      %p196 = scmp.lt.s32.totalorder %s195, 63
      %s197 = scalar_select %p196, %s195, 63
      %s198 = smul.addr %s197, 8
      %s199 = scalar_lea.vmem %s4, %s198
      %s200 = smul.u32 32, %s15
      %v202 = vld [vmem:[%s193] sm:$0xf]
      %v203 = vld [vmem:[%s193 + $0x4] sm:$0xf]
      %v204 = vld [vmem:[%s193 + $0x8] sm:$0xf]
      %v205 = vld [vmem:[%s193 + $0xc] sm:$0xf]
      %v206 = vld [vmem:[%s193 + $0x10] sm:$0xf]
      %v207 = vld [vmem:[%s193 + $0x14] sm:$0xf]
      %v208 = vld [vmem:[%s193 + $0x18] sm:$0xf]
      %v209 = vld [vmem:[%s193 + $0x1c] sm:$0xf]
      %v210 = vld [vmem:[%s193 + $0x20] sm:$0xf]
      %v211 = vld [vmem:[%s193 + $0x24] sm:$0xf]
      %v212 = vld [vmem:[%s193 + $0x28] sm:$0xf]
      %v213 = vld [vmem:[%s193 + $0x2c] sm:$0xf]
      %v214 = vld [vmem:[%s193 + $0x30] sm:$0xf]
      %v215 = vld [vmem:[%s193 + $0x34] sm:$0xf]
      %v216 = vld [vmem:[%s193 + $0x38] sm:$0xf]
      %v217 = vld [vmem:[%s193 + $0x3c] sm:$0xf]
      %v218 = vld [vmem:[%s193 + $0x40] sm:$0xf]
      %v219 = vld [vmem:[%s193 + $0x44] sm:$0xf]
      %v220 = vld [vmem:[%s193 + $0x48] sm:$0xf]
      %v221 = vld [vmem:[%s193 + $0x4c] sm:$0xf]
      %v222 = vld [vmem:[%s193 + $0x50] sm:$0xf]
      %v223 = vld [vmem:[%s193 + $0x54] sm:$0xf]
      %v224 = vld [vmem:[%s193 + $0x58] sm:$0xf]
      %v225 = vld [vmem:[%s193 + $0x5c] sm:$0xf]
      %v226 = vld [vmem:[%s193 + $0x60] sm:$0xf]
      %v227 = vld [vmem:[%s193 + $0x64] sm:$0xf]
      %v228 = vld [vmem:[%s193 + $0x68] sm:$0xf]
      %v229 = vld [vmem:[%s193 + $0x6c] sm:$0xf]
      %v230 = vld [vmem:[%s193 + $0x70] sm:$0xf]
      %v231 = vld [vmem:[%s193 + $0x74] sm:$0xf]
      %v232 = vld [vmem:[%s193 + $0x78] sm:$0xf]
      %v233 = vld [vmem:[%s193 + $0x7c] sm:$0xf]
      %v234 = vld [vmem:[%s1] sm:$0xf]
      %v235 = vld [vmem:[%s1 + $0x4] sm:$0xf]
      %v236 = vld [vmem:[%s1 + $0x8] sm:$0xf]
      %v237 = vld [vmem:[%s1 + $0xc] sm:$0xf]
      %v270 = vunpack.c.l.b16 %v202
      %v271 = vunpack.c.l.b16 %v203
      %v272 = vunpack.c.l.b16 %v204
      %v273 = vunpack.c.l.b16 %v205
      %v274 = vunpack.c.l.b16 %v206
      %v275 = vunpack.c.l.b16 %v207
      %v276 = vunpack.c.l.b16 %v208
      %v277 = vunpack.c.l.b16 %v209
      %v278 = vunpack.c.l.b16 %v210
      %v279 = vunpack.c.l.b16 %v211
      %v280 = vunpack.c.l.b16 %v212
      %v281 = vunpack.c.l.b16 %v213
      %v282 = vunpack.c.l.b16 %v214
      %v283 = vunpack.c.l.b16 %v215
      %v284 = vunpack.c.l.b16 %v216
      %v285 = vunpack.c.l.b16 %v217
      %v286 = vunpack.c.l.b16 %v218
      %v287 = vunpack.c.l.b16 %v219
      %v288 = vunpack.c.l.b16 %v220
      %v289 = vunpack.c.l.b16 %v221
      %v290 = vunpack.c.l.b16 %v222
      %v291 = vunpack.c.l.b16 %v223
      %v292 = vunpack.c.l.b16 %v224
      %v293 = vunpack.c.l.b16 %v225
      %v294 = vunpack.c.l.b16 %v226
      %v295 = vunpack.c.l.b16 %v227
      %v296 = vunpack.c.l.b16 %v228
      %v297 = vunpack.c.l.b16 %v229
      %v298 = vunpack.c.l.b16 %v230
      %v299 = vunpack.c.l.b16 %v231
      %v300 = vunpack.c.l.b16 %v232
      %v301 = vunpack.c.l.b16 %v233
      %v302 = vpack.c.b16 %v271, %v270
      %v303 = vpack.c.b16 %v273, %v272
      %v304 = vpack.c.b16 %v275, %v274
      %v305 = vpack.c.b16 %v277, %v276
      %v306 = vpack.c.b16 %v279, %v278
      %v307 = vpack.c.b16 %v281, %v280
      %v308 = vpack.c.b16 %v283, %v282
      %v309 = vpack.c.b16 %v285, %v284
      %v310 = vpack.c.b16 %v287, %v286
      %v311 = vpack.c.b16 %v289, %v288
      %v312 = vpack.c.b16 %v291, %v290
      %v313 = vpack.c.b16 %v293, %v292
      %v314 = vpack.c.b16 %v295, %v294
      %v315 = vpack.c.b16 %v297, %v296
      %v316 = vpack.c.b16 %v299, %v298
      %v317 = vpack.c.b16 %v301, %v300
      %v322 = vunpack.c.l.b16 %v234
      %v323 = vunpack.c.l.b16 %v235
      %v324 = vunpack.c.l.b16 %v236
      %v325 = vunpack.c.l.b16 %v237
      %v326 = vpack.c.b16 %v323, %v322
      %v327 = vpack.c.b16 %v325, %v324
      %vm330 = vcmask 261120
      %v332 = vsel %vm330, %v302, 0
      %v335 = vsel %vm330, %v303, 0
      %v338 = vsel %vm330, %v304, 0
      %v341 = vsel %vm330, %v305, 0
      %v344 = vsel %vm330, %v306, 0
      %v347 = vsel %vm330, %v307, 0
      %v350 = vsel %vm330, %v308, 0
      %v353 = vsel %vm330, %v309, 0
      %v356 = vsel %vm330, %v310, 0
      %v359 = vsel %vm330, %v311, 0
      %v362 = vsel %vm330, %v312, 0
      %v365 = vsel %vm330, %v313, 0
      %v368 = vsel %vm330, %v314, 0
      %v371 = vsel %vm330, %v315, 0
      %v374 = vsel %vm330, %v316, 0
      %v377 = vsel %vm330, %v317, 0
      %379 = vmatprep.subr.bf16.mxu0 0
      %380 = vmatpush1.bf16.msra.mxu0 %v326
      %381 = vmatprep.subr.bf16.mxu0 0
      %382 = vmatpush1.bf16.msra.mxu0 %v327
      %383 = vmatprep.subr.bf16.mxu0 0
      %384 = vmatpush1.bf16.msra.mxu0 0
      %385 = vmatprep.subr.bf16.mxu0 0
      %386 = vmatpush1.bf16.msra.mxu0 0
      %387 = vmatprep.subr.bf16.mxu0 0
      %388 = vmatpush1.bf16.msra.mxu0 0
      %389 = vmatprep.subr.bf16.mxu0 0
      %390 = vmatpush1.bf16.msra.mxu0 0
      %391 = vmatprep.subr.bf16.mxu0 0
      %392 = vmatpush1.bf16.msra.mxu0 0
      %393 = vmatprep.subr.bf16.mxu0 0
      %394 = vmatpush1.bf16.msra.mxu0 0
      %395 = vmatprep.subr.bf16.mxu0 0
      %396 = vmatpush1.bf16.msra.mxu0 0
      %397 = vmatprep.subr.bf16.mxu0 0
      %398 = vmatpush1.bf16.msra.mxu0 0
      %399 = vmatprep.subr.bf16.mxu0 0
      %400 = vmatpush1.bf16.msra.mxu0 0
      %401 = vmatprep.subr.bf16.mxu0 0
      %402 = vmatpush1.bf16.msra.mxu0 0
      %403 = vmatprep.subr.bf16.mxu0 0
      %404 = vmatpush1.bf16.msra.mxu0 0
      %405 = vmatprep.subr.bf16.mxu0 0
      %406 = vmatpush1.bf16.msra.mxu0 0
      %407 = vmatprep.subr.bf16.mxu0 0
      %408 = vmatpush1.bf16.msra.mxu0 0
      %409 = vmatprep.subr.bf16.mxu0 0
      %410 = vmatpush1.bf16.msra.mxu0 0
      %411 = vmatprep.mubr.bf16.mxu0 0
      %412 = vmatmul.mubr.bf16.gmra.mrb[0].mxu0 %v332
      %v413 = vpop.f32.mrb[0].mxu0
      %v414 = vadd.f32 0.0, %v413
      %v415 = vpop.f32.mrb[0].mxu0
      %v416 = vpop.f32.mrb[0].mxu0
      %v417 = vadd.f32 0.0, %v416
      %v418 = vpop.f32.mrb[0].mxu0
      %419 = vmatprep.mubr.bf16.mxu0 0
      %420 = vmatmul.mubr.bf16.gmra.mrb[0].mxu0 %v335
      %v421 = vpop.f32.mrb[0].mxu0
      %v422 = vadd.f32 0.0, %v421
      %v423 = vpop.f32.mrb[0].mxu0
      %v424 = vpop.f32.mrb[0].mxu0
      %v425 = vadd.f32 0.0, %v424
      %v426 = vpop.f32.mrb[0].mxu0
      %427 = vmatprep.mubr.bf16.mxu0 0
      %428 = vmatmul.mubr.bf16.gmra.mrb[0].mxu0 %v338
      %v429 = vpop.f32.mrb[0].mxu0
      %v430 = vadd.f32 0.0, %v429
      %v431 = vpop.f32.mrb[0].mxu0
      %v432 = vpop.f32.mrb[0].mxu0
      %v433 = vadd.f32 0.0, %v432
      %v434 = vpop.f32.mrb[0].mxu0
      %435 = vmatprep.mubr.bf16.mxu0 0
      %436 = vmatmul.mubr.bf16.gmra.mrb[0].mxu0 %v341
      %v437 = vpop.f32.mrb[0].mxu0
      %v438 = vadd.f32 0.0, %v437
      %v439 = vpop.f32.mrb[0].mxu0
      %v440 = vpop.f32.mrb[0].mxu0
      %v441 = vadd.f32 0.0, %v440
      %v442 = vpop.f32.mrb[0].mxu0
      %443 = vmatprep.mubr.bf16.mxu0 0
      %444 = vmatmul.mubr.bf16.gmra.mrb[0].mxu0 %v344
      %v445 = vpop.f32.mrb[0].mxu0
      %v446 = vadd.f32 0.0, %v445
      %v447 = vpop.f32.mrb[0].mxu0
      %v448 = vpop.f32.mrb[0].mxu0
      %v449 = vadd.f32 0.0, %v448
      %v450 = vpop.f32.mrb[0].mxu0
      %451 = vmatprep.mubr.bf16.mxu0 0
      %452 = vmatmul.mubr.bf16.gmra.mrb[0].mxu0 %v347
      %v453 = vpop.f32.mrb[0].mxu0
      %v454 = vadd.f32 0.0, %v453
      %v455 = vpop.f32.mrb[0].mxu0
      %v456 = vpop.f32.mrb[0].mxu0
      %v457 = vadd.f32 0.0, %v456
      %v458 = vpop.f32.mrb[0].mxu0
      %459 = vmatprep.mubr.bf16.mxu0 0
      %460 = vmatmul.mubr.bf16.gmra.mrb[0].mxu0 %v350
      %v461 = vpop.f32.mrb[0].mxu0
      %v462 = vadd.f32 0.0, %v461
      %v463 = vpop.f32.mrb[0].mxu0
      %v464 = vpop.f32.mrb[0].mxu0
      %v465 = vadd.f32 0.0, %v464
      %v466 = vpop.f32.mrb[0].mxu0
      %467 = vmatprep.mubr.bf16.mxu0 0
      %468 = vmatmul.mubr.bf16.gmra.mrb[0].mxu0 %v353
      %v469 = vpop.f32.mrb[0].mxu0
      %v470 = vadd.f32 0.0, %v469
      %v471 = vpop.f32.mrb[0].mxu0
      %v472 = vpop.f32.mrb[0].mxu0
      %v473 = vadd.f32 0.0, %v472
      %v474 = vpop.f32.mrb[0].mxu0
      %475 = vmatprep.mubr.bf16.mxu0 0
      %476 = vmatmul.mubr.bf16.gmra.mrb[0].mxu0 %v356
      %v477 = vpop.f32.mrb[0].mxu0
      %v478 = vadd.f32 0.0, %v477
      %v479 = vpop.f32.mrb[0].mxu0
      %v480 = vpop.f32.mrb[0].mxu0
      %v481 = vadd.f32 0.0, %v480
      %v482 = vpop.f32.mrb[0].mxu0
      %483 = vmatprep.mubr.bf16.mxu0 0
      %484 = vmatmul.mubr.bf16.gmra.mrb[0].mxu0 %v359
      %v485 = vpop.f32.mrb[0].mxu0
      %v486 = vadd.f32 0.0, %v485
      %v487 = vpop.f32.mrb[0].mxu0
      %v488 = vpop.f32.mrb[0].mxu0
      %v489 = vadd.f32 0.0, %v488
      %v490 = vpop.f32.mrb[0].mxu0
      %491 = vmatprep.mubr.bf16.mxu0 0
      %492 = vmatmul.mubr.bf16.gmra.mrb[0].mxu0 %v362
      %v493 = vpop.f32.mrb[0].mxu0
      %v494 = vadd.f32 0.0, %v493
      %v495 = vpop.f32.mrb[0].mxu0
      %v496 = vpop.f32.mrb[0].mxu0
      %v497 = vadd.f32 0.0, %v496
      %v498 = vpop.f32.mrb[0].mxu0
      %499 = vmatprep.mubr.bf16.mxu0 0
      %500 = vmatmul.mubr.bf16.gmra.mrb[0].mxu0 %v365
      %v501 = vpop.f32.mrb[0].mxu0
      %v502 = vadd.f32 0.0, %v501
      %v503 = vpop.f32.mrb[0].mxu0
      %v504 = vpop.f32.mrb[0].mxu0
      %v505 = vadd.f32 0.0, %v504
      %v506 = vpop.f32.mrb[0].mxu0
      %507 = vmatprep.mubr.bf16.mxu0 0
      %508 = vmatmul.mubr.bf16.gmra.mrb[0].mxu0 %v368
      %v509 = vpop.f32.mrb[0].mxu0
      %v510 = vadd.f32 0.0, %v509
      %v511 = vpop.f32.mrb[0].mxu0
      %v512 = vpop.f32.mrb[0].mxu0
      %v513 = vadd.f32 0.0, %v512
      %v514 = vpop.f32.mrb[0].mxu0
      %515 = vmatprep.mubr.bf16.mxu0 0
      %516 = vmatmul.mubr.bf16.gmra.mrb[0].mxu0 %v371
      %v517 = vpop.f32.mrb[0].mxu0
      %v518 = vadd.f32 0.0, %v517
      %v519 = vpop.f32.mrb[0].mxu0
      %v520 = vpop.f32.mrb[0].mxu0
      %v521 = vadd.f32 0.0, %v520
      %v522 = vpop.f32.mrb[0].mxu0
      %523 = vmatprep.mubr.bf16.mxu0 0
      %524 = vmatmul.mubr.bf16.gmra.mrb[0].mxu0 %v374
      %v525 = vpop.f32.mrb[0].mxu0
      %v526 = vadd.f32 0.0, %v525
      %v527 = vpop.f32.mrb[0].mxu0
      %v528 = vpop.f32.mrb[0].mxu0
      %v529 = vadd.f32 0.0, %v528
      %v530 = vpop.f32.mrb[0].mxu0
      %531 = vmatprep.mubr.bf16.mxu0 0
      %532 = vmatmul.mubr.bf16.gmra.mrb[0].mxu0 %v377
      %v533 = vpop.f32.mrb[0].mxu0
      %v534 = vadd.f32 0.0, %v533
      %v535 = vpop.f32.mrb[0].mxu0
      %v536 = vpop.f32.mrb[0].mxu0
      %v537 = vadd.f32 0.0, %v536
      %v538 = vpop.f32.mrb[0].mxu0
      %539 = vdwg.mxu0
      %v540 = vld [vmem:[%s2] sm:$0x1]
      %v542 = vlaneseq
      %v543 = vshrl.u32 %v542, 7
      %v544 = vsub.s32 0, %v543
      %v545 = vrot.slane %v540, %v544
      %v547 = vmul.f32 %v414, %v545
      %v548 = vmul.f32 %v417, %v545
      %v549 = vmul.f32 %v422, %v545
      %v550 = vmul.f32 %v425, %v545
      %v551 = vmul.f32 %v430, %v545
      %v552 = vmul.f32 %v433, %v545
      %v553 = vmul.f32 %v438, %v545
      %v554 = vmul.f32 %v441, %v545
      %v555 = vmul.f32 %v446, %v545
      %v556 = vmul.f32 %v449, %v545
      %v557 = vmul.f32 %v454, %v545
      %v558 = vmul.f32 %v457, %v545
      %v559 = vmul.f32 %v462, %v545
      %v560 = vmul.f32 %v465, %v545
      %v561 = vmul.f32 %v470, %v545
      %v562 = vmul.f32 %v473, %v545
      %v563 = vmul.f32 %v478, %v545
      %v564 = vmul.f32 %v481, %v545
      %v565 = vmul.f32 %v486, %v545
      %v566 = vmul.f32 %v489, %v545
      %v567 = vmul.f32 %v494, %v545
      %v568 = vmul.f32 %v497, %v545
      %v569 = vmul.f32 %v502, %v545
      %v570 = vmul.f32 %v505, %v545
      %v571 = vmul.f32 %v510, %v545
      %v572 = vmul.f32 %v513, %v545
      %v573 = vmul.f32 %v518, %v545
      %v574 = vmul.f32 %v521, %v545
      %v575 = vmul.f32 %v526, %v545
      %v576 = vmul.f32 %v529, %v545
      %v577 = vmul.f32 %v534, %v545
      %v578 = vmul.f32 %v537, %v545
      %v579 = vld [vmem:[%s3] sm:$0x1]
      %v581 = vlaneseq
      %v582 = vshrl.u32 %v581, 7
      %v583 = vsub.s32 0, %v582
      %v584 = vrot.slane %v579, %v583
      %v586 = vadd.f32 %v547, %v584
      %v587 = vadd.f32 %v548, %v584
      %v588 = vadd.f32 %v549, %v584
      %v589 = vadd.f32 %v550, %v584
      %v590 = vadd.f32 %v551, %v584
      %v591 = vadd.f32 %v552, %v584
      %v592 = vadd.f32 %v553, %v584
      %v593 = vadd.f32 %v554, %v584
      %v594 = vadd.f32 %v555, %v584
      %v595 = vadd.f32 %v556, %v584
      %v596 = vadd.f32 %v557, %v584
      %v597 = vadd.f32 %v558, %v584
      %v598 = vadd.f32 %v559, %v584
      %v599 = vadd.f32 %v560, %v584
      %v600 = vadd.f32 %v561, %v584
      %v601 = vadd.f32 %v562, %v584
      %v602 = vadd.f32 %v563, %v584
      %v603 = vadd.f32 %v564, %v584
      %v604 = vadd.f32 %v565, %v584
      %v605 = vadd.f32 %v566, %v584
      %v606 = vadd.f32 %v567, %v584
      %v607 = vadd.f32 %v568, %v584
      %v608 = vadd.f32 %v569, %v584
      %v609 = vadd.f32 %v570, %v584
      %v610 = vadd.f32 %v571, %v584
      %v611 = vadd.f32 %v572, %v584
      %v612 = vadd.f32 %v573, %v584
      %v613 = vadd.f32 %v574, %v584
      %v614 = vadd.f32 %v575, %v584
      %v615 = vadd.f32 %v576, %v584
      %v616 = vadd.f32 %v577, %v584
      %v617 = vadd.f32 %v578, %v584
      %vm618 = vcmask 31744
      %619 = vst.msk [vmem:[%s199] sm:$0xff] %vm618, %v586
      %620 = vst.msk [vmem:[%s199 + $0x8] sm:$0xff] %vm618, %v587
      %621 = vst.msk [vmem:[%s199 + $0x10] sm:$0xff] %vm618, %v588
      %622 = vst.msk [vmem:[%s199 + $0x18] sm:$0xff] %vm618, %v589
      %623 = vst.msk [vmem:[%s199 + $0x20] sm:$0xff] %vm618, %v590
      %624 = vst.msk [vmem:[%s199 + $0x28] sm:$0xff] %vm618, %v591
      %625 = vst.msk [vmem:[%s199 + $0x30] sm:$0xff] %vm618, %v592
      %626 = vst.msk [vmem:[%s199 + $0x38] sm:$0xff] %vm618, %v593
      %627 = vst.msk [vmem:[%s199 + $0x40] sm:$0xff] %vm618, %v594
      %628 = vst.msk [vmem:[%s199 + $0x48] sm:$0xff] %vm618, %v595
      %629 = vst.msk [vmem:[%s199 + $0x50] sm:$0xff] %vm618, %v596
      %630 = vst.msk [vmem:[%s199 + $0x58] sm:$0xff] %vm618, %v597
      %631 = vst.msk [vmem:[%s199 + $0x60] sm:$0xff] %vm618, %v598
      %632 = vst.msk [vmem:[%s199 + $0x68] sm:$0xff] %vm618, %v599
      %633 = vst.msk [vmem:[%s199 + $0x70] sm:$0xff] %vm618, %v600
      %634 = vst.msk [vmem:[%s199 + $0x78] sm:$0xff] %vm618, %v601
      %635 = vst.msk [vmem:[%s199 + $0x80] sm:$0xff] %vm618, %v602
      %636 = vst.msk [vmem:[%s199 + $0x88] sm:$0xff] %vm618, %v603
      %637 = vst.msk [vmem:[%s199 + $0x90] sm:$0xff] %vm618, %v604
      %638 = vst.msk [vmem:[%s199 + $0x98] sm:$0xff] %vm618, %v605
      %639 = vst.msk [vmem:[%s199 + $0xa0] sm:$0xff] %vm618, %v606
      %640 = vst.msk [vmem:[%s199 + $0xa8] sm:$0xff] %vm618, %v607
      %641 = vst.msk [vmem:[%s199 + $0xb0] sm:$0xff] %vm618, %v608
      %642 = vst.msk [vmem:[%s199 + $0xb8] sm:$0xff] %vm618, %v609
      %643 = vst.msk [vmem:[%s199 + $0xc0] sm:$0xff] %vm618, %v610
      %644 = vst.msk [vmem:[%s199 + $0xc8] sm:$0xff] %vm618, %v611
      %645 = vst.msk [vmem:[%s199 + $0xd0] sm:$0xff] %vm618, %v612
      %646 = vst.msk [vmem:[%s199 + $0xd8] sm:$0xff] %vm618, %v613
      %647 = vst.msk [vmem:[%s199 + $0xe0] sm:$0xff] %vm618, %v614
      %648 = vst.msk [vmem:[%s199 + $0xe8] sm:$0xff] %vm618, %v615
      %649 = vst.msk [vmem:[%s199 + $0xf0] sm:$0xff] %vm618, %v616
      %650 = vst.msk [vmem:[%s199 + $0xf8] sm:$0xff] %vm618, %v617
      %s651 = smul.u32 32, %s15
      %p652 = scmp.lt.s32.totalorder %s651, 63
      %s653 = scalar_select %p652, %s651, 63
      %s654 = smul.addr %s653, 8
      %s655 = scalar_lea.vmem %s4, %s654
      // Predicated region
      $region37: #{_lambda_.13} parent=35 // pred_check
        %p656 = pneg %p122
      $region38: #{_lambda_.13} parent=35 // pred_check_branch
        %658 = sbr.rel (%p656) target = $region40
      $region39: #{_lambda_.13} parent=35 // pred_region
        %s659 = smul.u32 32, %s15
      $region40: #{_lambda_.13} parent=35 // pred_fallthru
        _
    $region36: #{_lambda_.13} parent=5 // pred_fallthru
      _
    %p660 = scmp.le.s32.totalorder 2, %s10
    // Predicated region
    $region41: #{_lambda_.13} parent=5 // pred_check
      %p661 = pneg %p660
    $region42: #{_lambda_.13} parent=5 // pred_check_branch
      %663 = sbr.rel (%p661) target = $region44
    $region43: #{_lambda_.13} parent=5 // pred_region
      %s664 = ssub.s32 %s10, 2
      // Predicated region
      $region45: #{_lambda_.13} parent=43 // pred_check
        %p665 = pneg %p128
      $region46: #{_lambda_.13} parent=43 // pred_check_branch
        %667 = sbr.rel (%p665) target = $region48
      $region47: #{_lambda_.13} parent=43 // pred_region
        %s668 = smul.u32 32, %s16
        %p669 = scmp.lt.s32.totalorder %s668, 63
        %s670 = scalar_select %p669, %s668, 63
        %s671 = smul.addr %s670, 8
        %s672 = scalar_lea.vmem %s4, %s671
      $region48: #{_lambda_.13} parent=43 // pred_fallthru
        _
    $region44: #{_lambda_.13} parent=5 // pred_fallthru
      _
  $region6: #{_lambda_.13} parent=0 // loop_footer
    %s14 = sadd.s32 1, %s10
  $region7: #{_lambda_.13} parent=0 // loop_footer_branch
    %9 = sbr.rel target = $region3
  $region8: #{_lambda_.13} parent=0 // loop_exit
    _

</llo_original>
